<compile_context>
chip_gen: v5e
topology: v5e:2x2
jax: 0.10.0
libtpu: 0.0.40
codegen_flags: <defaults>
</compile_context>

<pallas_src>
import functools

import jax
import jax.numpy as jnp
import numpy as np
from jax.experimental import pallas as pl
from jax.experimental.pallas import tpu as pltpu

LN_EPS = 1e-5  # torch.nn.LayerNorm default


def _round_up(x, m):
    return ((x + m - 1) // m) * m


# ---------------- in-kernel helpers ----------------
def _mxu_dot(x, w):
    # bf16 operands, f32 accumulation (w is already bf16; x cast here).
    return jnp.dot(x.astype(jnp.bfloat16), w, preferred_element_type=jnp.float32)


def _layernorm(x, gamma, beta):
    # Two-pass (x - mu)^2 form (matches torch, no cancellation risk) + EUP rsqrt.
    mu = jnp.mean(x, axis=-1, keepdims=True)
    d = x - mu
    var = jnp.mean(d * d, axis=-1, keepdims=True)
    return d * jax.lax.rsqrt(var + LN_EPS) * gamma + beta


def _mlp_block(x, w, b, gamma, beta):
    # Linear -> LayerNorm -> ReLU (one hidden block of torchgfn MLP with add_layer_norm=True)
    return jnp.maximum(_layernorm(_mxu_dot(x, w) + b, gamma, beta), 0.0)


# ---------------- Pallas kernel ----------------
def adjacency_policy_kernel(out_size, x_ref, w1_ref, w2_ref, wh_ref, wfe_ref, small_ref, out_ref):
    """out_size is a static python int (closed over via functools.partial)."""
    e = wh_ref.shape[0]          # embedding_dim
    op = out_ref.shape[1]        # padded lane-dense output width

    s = small_ref[...]           # (16, W) f32 packed small params
    b1, g1, be1 = s[0:1, :e], s[1:2, :e], s[2:3, :e]
    b2, g2, be2 = s[3:4, :e], s[4:5, :e], s[5:6, :e]
    bh_e, bh_x = s[6:7, :e], s[7:8, :e]          # folded head-hidden biases (b3 @ Wh + bh)
    eg, ebe = s[8:9, :e], s[9:10, :e]            # edge head LN params
    xg, xbe = s[10:11, :e], s[11:12, :e]         # exit head LN params
    bf = s[12:13, :op]                           # fused output bias (edge biases + exit bias)
    xw2_row = s[13:14, :e]                       # exit head output weights as a (1, E) row

    x = x_ref[...]                                         # (TB, K) bf16, K = n_nodes^2 (unpadded)

    # main MLP (2 hidden blocks); W3 is folded into the head projection below.
    h = _mlp_block(x, w1_ref[...], b1, g1, be1)
    h = _mlp_block(h, w2_ref[...], b2, g2, be2)

    # fused edge/exit head hidden projection: (TB, 2E) in one matmul (W3 already folded in).
    hf = _mxu_dot(h, wh_ref[...])
    he = jnp.maximum(_layernorm(hf[:, :e] + bh_e, eg, ebe), 0.0)
    hx = jnp.maximum(_layernorm(hf[:, e:] + bh_x, xg, xbe), 0.0)

    # edge logits: one lane-dense matmul into the zero-padded OP columns.
    edge = _mxu_dot(he, wfe_ref[...])                      # (TB, OP); zeros beyond out_size
    # exit logit: VPU multiply + XLU row reduction (avoids a 127/128-wasted matmul + concat).
    exit_val = jnp.sum(hx * xw2_row, axis=-1, keepdims=True)   # (TB, 1) f32
    lane = jax.lax.broadcasted_iota(jnp.int32, (1, op), 1)
    exit_mask = (lane == out_size).astype(jnp.float32)         # one-hot column `out_size`

    out_ref[...] = (edge + bf + exit_val * exit_mask).astype(out_ref.dtype)


# ---------------- parameter packing (torch layout -> kernel layout) ----------------
def pack_params(params, n_nodes):
    """Fold/fuse the 22 torch-like params into 5 kernel arrays (4 bf16 weights + 1 f32 small pack)."""
    (w1, b1, g1, be1, w2, b2, g2, be2, w3, b3,
     ew1, eb1, eg1, ebe1, ew2, eb2,
     xw1, xb1, xg1, xbe1, xw2, xb2) = params

    in_dim = n_nodes * n_nodes
    e = w1.shape[1]                     # embedding_dim
    out_size = ew2.shape[1]             # number of edge actions
    op = _round_up(out_size + 1, 128)   # lane-dense output width

    # Fold W3 into the fused head hidden projection (exact, done in f32):
    #   emb = h @ W3 + b3 ; hf = emb @ [We1 | Wx1] + [be1 | bx1]
    #   =>  hf = h @ (W3 @ [We1|Wx1]) + (b3 @ [We1|Wx1] + [be1|bx1])
    wh = jnp.concatenate([w3 @ ew1, w3 @ xw1], axis=1)            # (E, 2E)
    bh_e = b3 @ ew1 + eb1                                         # (1, E)
    bh_x = b3 @ xw1 + xb1                                         # (1, E)

    # Edge output projection, padded to OP lanes (zeros beyond out_size).
    wfe = jnp.zeros((e, op), jnp.float32).at[:, :out_size].set(ew2)

    # Fused output bias: edge biases in [:out_size], exit bias at column out_size.
    bf = jnp.zeros((1, op), jnp.float32)
    bf = bf.at[:, :out_size].set(eb2).at[:, out_size].set(xb2[0, 0])

    # Pack all tiny row params into one (16, W) f32 array -> one DMA descriptor.
    W = max(e, op)

    def padrow(r):
        r = r.reshape(1, -1).astype(jnp.float32)
        return jnp.zeros((1, W), jnp.float32).at[:, :r.shape[1]].set(r)

    rows = [b1, g1, be1, b2, g2, be2, bh_e, bh_x,
            eg1, ebe1, xg1, xbe1, bf, xw2.reshape(1, e)]
    n_rows = _round_up(len(rows), 8)
    small = jnp.concatenate(
        [padrow(r) for r in rows] + [jnp.zeros((n_rows - len(rows), W), jnp.float32)], axis=0)

    packed = [w1.astype(jnp.bfloat16),    # (K, E)
              w2.astype(jnp.bfloat16),    # (E, E)
              wh.astype(jnp.bfloat16),    # (E, 2E)  -- W3 folded in
              wfe.astype(jnp.bfloat16),   # (E, OP)
              small]                      # (16, W) f32
    return packed, in_dim, out_size


# ---------------- wrapper ----------------
def adjacency_policy_forward(adj_flat, packed_params, in_dim, out_size, *,
                             block_batch=1024, split_across_cores=False,
                             out_dtype=jnp.float32):
    """adj_flat: (B, n_nodes*n_nodes) 0/1 matrix. Returns (B, out_size + 1) logits (out_dtype)."""
    w1, w2, wh, wfe, small = packed_params
    b = adj_flat.shape[0]
    k = w1.shape[0]                 # n_nodes^2, unpadded contraction dim
    e = w1.shape[1]
    op = wfe.shape[1]
    assert adj_flat.shape[1] == k == in_dim

    # batch tile: multiple of 8 sublanes; 1024 default amortizes per-grid-step overhead,
    # stays well under the 32 MiB scoped VMEM default on every generation (v7x included).
    tb = min(block_batch, _round_up(b, 8))
    bp = _round_up(b, tb)

    # adjacency entries are exactly {0, 1} -> bf16 cast is exact; zero-pad only the batch rows.
    x = adj_flat.astype(jnp.bfloat16)
    if bp != b:
        x = jnp.zeros((bp, k), jnp.bfloat16).at[:b, :].set(x)

    x_spec = pl.BlockSpec((tb, k), lambda i: (i, 0))
    out_spec = pl.BlockSpec((tb, op), lambda i: (i, 0))
    # weights: full-array blocks with constant index_map -> VMEM-resident across grid steps
    w_specs = [pl.BlockSpec(p.shape, lambda i: (0, 0)) for p in packed_params]

    weight_bytes = sum(int(np.prod(p.shape)) * p.dtype.itemsize for p in packed_params)
    cost = pl.CostEstimate(
        flops=2 * bp * (k * e + e * e + e * 2 * e + e * op + e),
        transcendentals=4 * bp,                                   # one rsqrt per row per LayerNorm
        bytes_accessed=bp * k * 2 + bp * op * 2 + weight_bytes,   # bf16 in/out streams
    )

    # On v7x, split_across_cores=True shards the batch grid across the 2 TensorCores.
    dim_sem = (pltpu.CORE_PARALLEL,) if split_across_cores else ("parallel",)

    out = pl.pallas_call(
        functools.partial(adjacency_policy_kernel, out_size),
        out_shape=jax.ShapeDtypeStruct((bp, op), jnp.bfloat16),
        grid_spec=pltpu.PrefetchScalarGridSpec(
            num_scalar_prefetch=0,
            grid=(bp // tb,),
            in_specs=[x_spec] + w_specs,
            out_specs=out_spec,
        ),
        compiler_params=pltpu.CompilerParams(
            dimension_semantics=dim_sem,
            vmem_limit_bytes=32 * 1024 * 1024,
        ),
        cost_estimate=cost,
    )(x, *packed_params)

    return out[:b, :out_size + 1].astype(out_dtype)


# ---------------- deterministic parameter init (PyTorch-Linear-like, torch layout) ----------------
def _init_linear(key, fan_in, fan_out):
    kw, kb = jax.random.split(key)
    bound = 1.0 / float(np.sqrt(fan_in))
    w = jax.random.uniform(kw, (fan_in, fan_out), jnp.float32, -bound, bound)
    b = jax.random.uniform(kb, (1, fan_out), jnp.float32, -bound, bound)
    return w, b


def _init_ln(dim):
    return jnp.ones((1, dim), jnp.float32), jnp.zeros((1, dim), jnp.float32)


def make_params(key, n_nodes, embedding_dim, directed=True):
    in_dim = n_nodes * n_nodes
    out_size = (n_nodes ** 2 - n_nodes) if directed else (n_nodes ** 2 - n_nodes) // 2
    keys = jax.random.split(key, 7)
    # main MLP
    w1, b1 = _init_linear(keys[0], in_dim, embedding_dim)
    g1, be1 = _init_ln(embedding_dim)
    w2, b2 = _init_linear(keys[1], embedding_dim, embedding_dim)
    g2, be2 = _init_ln(embedding_dim)
    w3, b3 = _init_linear(keys[2], embedding_dim, embedding_dim)
    # edge MLP
    ew1, eb1 = _init_linear(keys[3], embedding_dim, embedding_dim)
    eg1, ebe1 = _init_ln(embedding_dim)
    ew2, eb2 = _init_linear(keys[4], embedding_dim, out_size)
    # exit MLP
    xw1, xb1 = _init_linear(keys[5], embedding_dim, embedding_dim)
    xg1, xbe1 = _init_ln(embedding_dim)
    xw2, xb2 = _init_linear(keys[6], embedding_dim, 1)
    return [
        w1, b1, g1, be1, w2, b2, g2, be2, w3, b3,
        ew1, eb1, eg1, ebe1, ew2, eb2,
        xw1, xb1, xg1, xbe1, xw2, xb2,
    ]


# ---------------- pure-JAX reference (torch semantics; operand_dtype mirrors MXU precision) ----------------
def reference_forward(adj_flat, p, operand_dtype=jnp.float32):
    (w1, b1, g1, be1, w2, b2, g2, be2, w3, b3,
     ew1, eb1, eg1, ebe1, ew2, eb2,
     xw1, xb1, xg1, xbe1, xw2, xb2) = p

    def mm(x, w):
        return jnp.dot(x.astype(operand_dtype), w.astype(operand_dtype),
                       preferred_element_type=jnp.float32)

    def ln(x, g, b):
        mu = jnp.mean(x, -1, keepdims=True)
        var = jnp.mean((x - mu) ** 2, -1, keepdims=True)
        return (x - mu) * jax.lax.rsqrt(var + LN_EPS) * g + b

    def blk(x, w, b, g, beta):
        return jnp.maximum(ln(mm(x, w) + b, g, beta), 0.0)

    h = blk(adj_flat, w1, b1, g1, be1)
    h = blk(h, w2, b2, g2, be2)
    emb = mm(h, w3) + b3
    edge = mm(blk(emb, ew1, eb1, eg1, ebe1), ew2) + eb2
    exit_ = mm(blk(emb, xw1, xb1, xg1, xbe1), xw2) + xb2
    return jnp.concatenate([edge, exit_], axis=-1)


if __name__ == "__main__":
    n_nodes = 8
    embedding_dim = 128
    batch = 200          # deliberately not a multiple of 8 or of the batch tile
    directed = True

    key = jax.random.PRNGKey(0)
    k_adj, k_params = jax.random.split(key)

    # Glue: build adjacency matrices (stands in for the data-dependent edge_index scatter loop).
    adj = (jax.random.uniform(k_adj, (batch, n_nodes, n_nodes)) < 0.3).astype(jnp.float32)
    adj = adj * (1.0 - jnp.eye(n_nodes, dtype=jnp.float32))  # no self loops
    adj_flat = adj.reshape(batch, n_nodes * n_nodes)

    params = make_params(k_params, n_nodes, embedding_dim, directed=directed)
    packed, in_dim, out_size = pack_params(params, n_nodes)

    # Production-default tile (single grid step at this small batch).
    out = adjacency_policy_forward(adj_flat, packed, in_dim, out_size)
    out = jax.block_until_ready(out)

    # Small tile forcing a multi-step grid + batch padding (pipeline / index_map correctness).
    out_tiled = adjacency_policy_forward(adj_flat, packed, in_dim, out_size, block_batch=64)
    out_tiled = jax.block_until_ready(out_tiled)

    assert out.shape == (batch, out_size + 1), out.shape

    # 1) precision-matched reference: bf16 MXU operands, f32 accumulation/LN, bf16 writeback.
    ref_bf16 = reference_forward(adj_flat, params, operand_dtype=jnp.bfloat16)
    ref_bf16 = ref_bf16.astype(jnp.bfloat16).astype(jnp.float32)
    np.testing.assert_allclose(np.asarray(out), np.asarray(ref_bf16), atol=3e-2, rtol=3e-2)

    # 2) exact f32 module semantics (loose: bounds the mixed-precision error of the kernel).
    ref_f32 = reference_forward(adj_flat, params, operand_dtype=jnp.float32)
    np.testing.assert_allclose(np.asarray(out), np.asarray(ref_f32), atol=1e-1, rtol=1e-1)

    # 3) tiling invariance (different batch tile / padding must not change the real rows).
    np.testing.assert_allclose(np.asarray(out_tiled), np.asarray(out), atol=1e-2, rtol=1e-2)

    print("KERNEL_OK")
</pallas_src>

<mosaic_0001>
module attributes {stable_mosaic.version = 11 : i64} {
  func.func @adjacency_policy_kernel(%arg0: i32, %arg1: memref<200x64xbf16, #tpu.memory_space<vmem>>, %arg2: memref<64x128xbf16, #tpu.memory_space<vmem>>, %arg3: memref<128x128xbf16, #tpu.memory_space<vmem>>, %arg4: memref<128x256xbf16, #tpu.memory_space<vmem>>, %arg5: memref<128x128xbf16, #tpu.memory_space<vmem>>, %arg6: memref<16x128xf32, #tpu.memory_space<vmem>>, %arg7: memref<200x128xbf16, #tpu.memory_space<vmem>>) attributes {dimension_semantics = [#tpu.dimension_semantics<parallel>], iteration_bounds = array<i64: 1>, scalar_prefetch = 0 : i64, scratch_operands = 0 : i64, tpu.core_type = #tpu.core_type<tc>, window_params = [{transform_indices = @transform_0, window_bounds = array<i64: 200, 64>}, {pipeline_mode = #tpu.pipeline_mode<synchronous>, transform_indices = @transform_1, window_bounds = array<i64: 64, 128>}, {pipeline_mode = #tpu.pipeline_mode<synchronous>, transform_indices = @transform_2, window_bounds = array<i64: 128, 128>}, {pipeline_mode = #tpu.pipeline_mode<synchronous>, transform_indices = @transform_3, window_bounds = array<i64: 128, 256>}, {pipeline_mode = #tpu.pipeline_mode<synchronous>, transform_indices = @transform_4, window_bounds = array<i64: 128, 128>}, {pipeline_mode = #tpu.pipeline_mode<synchronous>, transform_indices = @transform_5, window_bounds = array<i64: 16, 128>}, {transform_indices = @transform_6, window_bounds = array<i64: 200, 128>}]} {
    %c0 = arith.constant 0 : index
    %c0_0 = arith.constant 0 : index
    %0 = vector.load %arg6[%c0, %c0_0] : memref<16x128xf32, #tpu.memory_space<vmem>>, vector<16x128xf32>
    %1 = vector.extract_strided_slice %0 {offsets = [0, 0], sizes = [1, 128], strides = [1, 1]} : vector<16x128xf32> to vector<1x128xf32>
    %2 = vector.extract_strided_slice %0 {offsets = [1, 0], sizes = [1, 128], strides = [1, 1]} : vector<16x128xf32> to vector<1x128xf32>
    %3 = vector.extract_strided_slice %0 {offsets = [2, 0], sizes = [1, 128], strides = [1, 1]} : vector<16x128xf32> to vector<1x128xf32>
    %4 = vector.extract_strided_slice %0 {offsets = [3, 0], sizes = [1, 128], strides = [1, 1]} : vector<16x128xf32> to vector<1x128xf32>
    %5 = vector.extract_strided_slice %0 {offsets = [4, 0], sizes = [1, 128], strides = [1, 1]} : vector<16x128xf32> to vector<1x128xf32>
    %6 = vector.extract_strided_slice %0 {offsets = [5, 0], sizes = [1, 128], strides = [1, 1]} : vector<16x128xf32> to vector<1x128xf32>
    %7 = vector.extract_strided_slice %0 {offsets = [6, 0], sizes = [1, 128], strides = [1, 1]} : vector<16x128xf32> to vector<1x128xf32>
    %8 = vector.extract_strided_slice %0 {offsets = [7, 0], sizes = [1, 128], strides = [1, 1]} : vector<16x128xf32> to vector<1x128xf32>
    %9 = vector.extract_strided_slice %0 {offsets = [8, 0], sizes = [1, 128], strides = [1, 1]} : vector<16x128xf32> to vector<1x128xf32>
    %10 = vector.extract_strided_slice %0 {offsets = [9, 0], sizes = [1, 128], strides = [1, 1]} : vector<16x128xf32> to vector<1x128xf32>
    %11 = vector.extract_strided_slice %0 {offsets = [10, 0], sizes = [1, 128], strides = [1, 1]} : vector<16x128xf32> to vector<1x128xf32>
    %12 = vector.extract_strided_slice %0 {offsets = [11, 0], sizes = [1, 128], strides = [1, 1]} : vector<16x128xf32> to vector<1x128xf32>
    %13 = vector.extract_strided_slice %0 {offsets = [12, 0], sizes = [1, 128], strides = [1, 1]} : vector<16x128xf32> to vector<1x128xf32>
    %14 = vector.extract_strided_slice %0 {offsets = [13, 0], sizes = [1, 128], strides = [1, 1]} : vector<16x128xf32> to vector<1x128xf32>
    %c0_1 = arith.constant 0 : index
    %c0_2 = arith.constant 0 : index
    %15 = vector.load %arg1[%c0_1, %c0_2] : memref<200x64xbf16, #tpu.memory_space<vmem>>, vector<200x64xbf16>
    %c0_3 = arith.constant 0 : index
    %c0_4 = arith.constant 0 : index
    %16 = vector.load %arg2[%c0_3, %c0_4] : memref<64x128xbf16, #tpu.memory_space<vmem>>, vector<64x128xbf16>
    %cst = arith.constant dense<0.000000e+00> : vector<200x128xf32>
    %17 = tpu.matmul %15, %16, %cst {dimension_numbers = #tpu.dot_dimension_numbers<[1], [0], [0], [1], [0, 0, 1, 1], [], []>} : vector<200x64xbf16>, vector<64x128xbf16>, vector<200x128xf32> -> vector<200x128xf32>
    %18 = vector.broadcast %1 : vector<1x128xf32> to vector<200x128xf32>
    %19 = arith.addf %17, %18 : vector<200x128xf32>
    %cst_5 = arith.constant dense<0.000000e+00> : vector<200xf32>
    %20 = vector.multi_reduction <add>, %19, %cst_5 [1] : vector<200x128xf32> to vector<200xf32>
    %21 = vector.shape_cast %20 : vector<200xf32> to vector<200x1xf32>
    %cst_6 = arith.constant 1.280000e+02 : f32
    %22 = vector.broadcast %cst_6 : f32 to vector<200x1xf32>
    %23 = arith.divf %21, %22 : vector<200x1xf32>
    %24 = vector.broadcast %23 : vector<200x1xf32> to vector<200x128xf32>
    %25 = arith.subf %19, %24 : vector<200x128xf32>
    %26 = arith.mulf %25, %25 : vector<200x128xf32>
    %cst_7 = arith.constant dense<0.000000e+00> : vector<200xf32>
    %27 = vector.multi_reduction <add>, %26, %cst_7 [1] : vector<200x128xf32> to vector<200xf32>
    %28 = vector.shape_cast %27 : vector<200xf32> to vector<200x1xf32>
    %cst_8 = arith.constant 1.280000e+02 : f32
    %29 = vector.broadcast %cst_8 : f32 to vector<200x1xf32>
    %30 = arith.divf %28, %29 : vector<200x1xf32>
    %cst_9 = arith.constant 9.99999974E-6 : f32
    %31 = vector.broadcast %cst_9 : f32 to vector<200x1xf32>
    %32 = arith.addf %30, %31 : vector<200x1xf32>
    %33 = math.rsqrt %32 : vector<200x1xf32>
    %34 = vector.broadcast %33 : vector<200x1xf32> to vector<200x128xf32>
    %35 = arith.mulf %25, %34 : vector<200x128xf32>
    %36 = vector.broadcast %2 : vector<1x128xf32> to vector<200x128xf32>
    %37 = arith.mulf %35, %36 : vector<200x128xf32>
    %38 = vector.broadcast %3 : vector<1x128xf32> to vector<200x128xf32>
    %39 = arith.addf %37, %38 : vector<200x128xf32>
    %cst_10 = arith.constant 0.000000e+00 : f32
    %40 = vector.broadcast %cst_10 : f32 to vector<200x128xf32>
    %41 = arith.maximumf %39, %40 : vector<200x128xf32>
    %c0_11 = arith.constant 0 : index
    %c0_12 = arith.constant 0 : index
    %42 = vector.load %arg3[%c0_11, %c0_12] : memref<128x128xbf16, #tpu.memory_space<vmem>>, vector<128x128xbf16>
    %43 = arith.truncf %41 : vector<200x128xf32> to vector<200x128xbf16>
    %cst_13 = arith.constant dense<0.000000e+00> : vector<200x128xf32>
    %44 = tpu.matmul %43, %42, %cst_13 {dimension_numbers = #tpu.dot_dimension_numbers<[1], [0], [0], [1], [0, 0, 1, 1], [], []>} : vector<200x128xbf16>, vector<128x128xbf16>, vector<200x128xf32> -> vector<200x128xf32>
    %45 = vector.broadcast %4 : vector<1x128xf32> to vector<200x128xf32>
    %46 = arith.addf %44, %45 : vector<200x128xf32>
    %cst_14 = arith.constant dense<0.000000e+00> : vector<200xf32>
    %47 = vector.multi_reduction <add>, %46, %cst_14 [1] : vector<200x128xf32> to vector<200xf32>
    %48 = vector.shape_cast %47 : vector<200xf32> to vector<200x1xf32>
    %cst_15 = arith.constant 1.280000e+02 : f32
    %49 = vector.broadcast %cst_15 : f32 to vector<200x1xf32>
    %50 = arith.divf %48, %49 : vector<200x1xf32>
    %51 = vector.broadcast %50 : vector<200x1xf32> to vector<200x128xf32>
    %52 = arith.subf %46, %51 : vector<200x128xf32>
    %53 = arith.mulf %52, %52 : vector<200x128xf32>
    %cst_16 = arith.constant dense<0.000000e+00> : vector<200xf32>
    %54 = vector.multi_reduction <add>, %53, %cst_16 [1] : vector<200x128xf32> to vector<200xf32>
    %55 = vector.shape_cast %54 : vector<200xf32> to vector<200x1xf32>
    %cst_17 = arith.constant 1.280000e+02 : f32
    %56 = vector.broadcast %cst_17 : f32 to vector<200x1xf32>
    %57 = arith.divf %55, %56 : vector<200x1xf32>
    %cst_18 = arith.constant 9.99999974E-6 : f32
    %58 = vector.broadcast %cst_18 : f32 to vector<200x1xf32>
    %59 = arith.addf %57, %58 : vector<200x1xf32>
    %60 = math.rsqrt %59 : vector<200x1xf32>
    %61 = vector.broadcast %60 : vector<200x1xf32> to vector<200x128xf32>
    %62 = arith.mulf %52, %61 : vector<200x128xf32>
    %63 = vector.broadcast %5 : vector<1x128xf32> to vector<200x128xf32>
    %64 = arith.mulf %62, %63 : vector<200x128xf32>
    %65 = vector.broadcast %6 : vector<1x128xf32> to vector<200x128xf32>
    %66 = arith.addf %64, %65 : vector<200x128xf32>
    %cst_19 = arith.constant 0.000000e+00 : f32
    %67 = vector.broadcast %cst_19 : f32 to vector<200x128xf32>
    %68 = arith.maximumf %66, %67 : vector<200x128xf32>
    %c0_20 = arith.constant 0 : index
    %c0_21 = arith.constant 0 : index
    %69 = vector.load %arg4[%c0_20, %c0_21] : memref<128x256xbf16, #tpu.memory_space<vmem>>, vector<128x256xbf16>
    %70 = arith.truncf %68 : vector<200x128xf32> to vector<200x128xbf16>
    %cst_22 = arith.constant dense<0.000000e+00> : vector<200x256xf32>
    %71 = tpu.matmul %70, %69, %cst_22 {dimension_numbers = #tpu.dot_dimension_numbers<[1], [0], [0], [1], [0, 0, 1, 1], [], []>} : vector<200x128xbf16>, vector<128x256xbf16>, vector<200x256xf32> -> vector<200x256xf32>
    %72 = vector.extract_strided_slice %71 {offsets = [0, 0], sizes = [200, 128], strides = [1, 1]} : vector<200x256xf32> to vector<200x128xf32>
    %73 = vector.broadcast %7 : vector<1x128xf32> to vector<200x128xf32>
    %74 = arith.addf %72, %73 : vector<200x128xf32>
    %cst_23 = arith.constant dense<0.000000e+00> : vector<200xf32>
    %75 = vector.multi_reduction <add>, %74, %cst_23 [1] : vector<200x128xf32> to vector<200xf32>
    %76 = vector.shape_cast %75 : vector<200xf32> to vector<200x1xf32>
    %cst_24 = arith.constant 1.280000e+02 : f32
    %77 = vector.broadcast %cst_24 : f32 to vector<200x1xf32>
    %78 = arith.divf %76, %77 : vector<200x1xf32>
    %79 = vector.broadcast %78 : vector<200x1xf32> to vector<200x128xf32>
    %80 = arith.subf %74, %79 : vector<200x128xf32>
    %81 = arith.mulf %80, %80 : vector<200x128xf32>
    %cst_25 = arith.constant dense<0.000000e+00> : vector<200xf32>
    %82 = vector.multi_reduction <add>, %81, %cst_25 [1] : vector<200x128xf32> to vector<200xf32>
    %83 = vector.shape_cast %82 : vector<200xf32> to vector<200x1xf32>
    %cst_26 = arith.constant 1.280000e+02 : f32
    %84 = vector.broadcast %cst_26 : f32 to vector<200x1xf32>
    %85 = arith.divf %83, %84 : vector<200x1xf32>
    %cst_27 = arith.constant 9.99999974E-6 : f32
    %86 = vector.broadcast %cst_27 : f32 to vector<200x1xf32>
    %87 = arith.addf %85, %86 : vector<200x1xf32>
    %88 = math.rsqrt %87 : vector<200x1xf32>
    %89 = vector.broadcast %88 : vector<200x1xf32> to vector<200x128xf32>
    %90 = arith.mulf %80, %89 : vector<200x128xf32>
    %91 = vector.broadcast %9 : vector<1x128xf32> to vector<200x128xf32>
    %92 = arith.mulf %90, %91 : vector<200x128xf32>
    %93 = vector.broadcast %10 : vector<1x128xf32> to vector<200x128xf32>
    %94 = arith.addf %92, %93 : vector<200x128xf32>
    %cst_28 = arith.constant 0.000000e+00 : f32
    %95 = vector.broadcast %cst_28 : f32 to vector<200x128xf32>
    %96 = arith.maximumf %94, %95 : vector<200x128xf32>
    %97 = vector.extract_strided_slice %71 {offsets = [0, 128], sizes = [200, 128], strides = [1, 1]} : vector<200x256xf32> to vector<200x128xf32>
    %98 = vector.broadcast %8 : vector<1x128xf32> to vector<200x128xf32>
    %99 = arith.addf %97, %98 : vector<200x128xf32>
    %cst_29 = arith.constant dense<0.000000e+00> : vector<200xf32>
    %100 = vector.multi_reduction <add>, %99, %cst_29 [1] : vector<200x128xf32> to vector<200xf32>
    %101 = vector.shape_cast %100 : vector<200xf32> to vector<200x1xf32>
    %cst_30 = arith.constant 1.280000e+02 : f32
    %102 = vector.broadcast %cst_30 : f32 to vector<200x1xf32>
    %103 = arith.divf %101, %102 : vector<200x1xf32>
    %104 = vector.broadcast %103 : vector<200x1xf32> to vector<200x128xf32>
    %105 = arith.subf %99, %104 : vector<200x128xf32>
    %106 = arith.mulf %105, %105 : vector<200x128xf32>
    %cst_31 = arith.constant dense<0.000000e+00> : vector<200xf32>
    %107 = vector.multi_reduction <add>, %106, %cst_31 [1] : vector<200x128xf32> to vector<200xf32>
    %108 = vector.shape_cast %107 : vector<200xf32> to vector<200x1xf32>
    %cst_32 = arith.constant 1.280000e+02 : f32
    %109 = vector.broadcast %cst_32 : f32 to vector<200x1xf32>
    %110 = arith.divf %108, %109 : vector<200x1xf32>
    %cst_33 = arith.constant 9.99999974E-6 : f32
    %111 = vector.broadcast %cst_33 : f32 to vector<200x1xf32>
    %112 = arith.addf %110, %111 : vector<200x1xf32>
    %113 = math.rsqrt %112 : vector<200x1xf32>
    %114 = vector.broadcast %113 : vector<200x1xf32> to vector<200x128xf32>
    %115 = arith.mulf %105, %114 : vector<200x128xf32>
    %116 = vector.broadcast %11 : vector<1x128xf32> to vector<200x128xf32>
    %117 = arith.mulf %115, %116 : vector<200x128xf32>
    %118 = vector.broadcast %12 : vector<1x128xf32> to vector<200x128xf32>
    %119 = arith.addf %117, %118 : vector<200x128xf32>
    %cst_34 = arith.constant 0.000000e+00 : f32
    %120 = vector.broadcast %cst_34 : f32 to vector<200x128xf32>
    %121 = arith.maximumf %119, %120 : vector<200x128xf32>
    %c0_35 = arith.constant 0 : index
    %c0_36 = arith.constant 0 : index
    %122 = vector.load %arg5[%c0_35, %c0_36] : memref<128x128xbf16, #tpu.memory_space<vmem>>, vector<128x128xbf16>
    %123 = arith.truncf %96 : vector<200x128xf32> to vector<200x128xbf16>
    %cst_37 = arith.constant dense<0.000000e+00> : vector<200x128xf32>
    %124 = tpu.matmul %123, %122, %cst_37 {dimension_numbers = #tpu.dot_dimension_numbers<[1], [0], [0], [1], [0, 0, 1, 1], [], []>} : vector<200x128xbf16>, vector<128x128xbf16>, vector<200x128xf32> -> vector<200x128xf32>
    %125 = vector.broadcast %14 : vector<1x128xf32> to vector<200x128xf32>
    %126 = arith.mulf %121, %125 : vector<200x128xf32>
    %cst_38 = arith.constant dense<0.000000e+00> : vector<200xf32>
    %127 = vector.multi_reduction <add>, %126, %cst_38 [1] : vector<200x128xf32> to vector<200xf32>
    %128 = vector.shape_cast %127 : vector<200xf32> to vector<200x1xf32>
    %129 = tpu.iota {dimensions = array<i32: 1>} : vector<1x128xi32>
    %c56_i32 = arith.constant 56 : i32
    %130 = vector.broadcast %c56_i32 : i32 to vector<1x128xi32>
    %131 = arith.cmpi eq, %129, %130 : vector<1x128xi32>
    %132 = arith.extui %131 : vector<1x128xi1> to vector<1x128xi32>
    %133 = arith.sitofp %132 : vector<1x128xi32> to vector<1x128xf32>
    %134 = vector.broadcast %13 : vector<1x128xf32> to vector<200x128xf32>
    %135 = arith.addf %124, %134 : vector<200x128xf32>
    %136 = vector.broadcast %128 : vector<200x1xf32> to vector<200x128xf32>
    %137 = vector.broadcast %133 : vector<1x128xf32> to vector<200x128xf32>
    %138 = arith.mulf %136, %137 : vector<200x128xf32>
    %139 = arith.addf %135, %138 : vector<200x128xf32>
    %140 = arith.truncf %139 : vector<200x128xf32> to vector<200x128xbf16>
    %c0_39 = arith.constant 0 : index
    %c0_40 = arith.constant 0 : index
    %141 = vector.load %arg7[%c0_39, %c0_40] : memref<200x128xbf16, #tpu.memory_space<vmem>>, vector<200x128xbf16>
    tpu.vector_store %arg7[%c0_39, %c0_40], %140 {strides = array<i32>} : memref<200x128xbf16, #tpu.memory_space<vmem>>, vector<200x128xbf16>,
    return
  }
  func.func @transform_0(%arg0: i32) -> (i32, i32) {
    %c0_i32 = arith.constant 0 : i32
    %c0_i32_0 = arith.constant 0 : i32
    return %arg0, %c0_i32 : i32, i32
  }
  func.func @transform_1(%arg0: i32) -> (i32, i32) {
    %c0_i32 = arith.constant 0 : i32
    %c0_i32_0 = arith.constant 0 : i32
    %c0_i32_1 = arith.constant 0 : i32
    return %c0_i32, %c0_i32_0 : i32, i32
  }
  func.func @transform_2(%arg0: i32) -> (i32, i32) {
    %c0_i32 = arith.constant 0 : i32
    %c0_i32_0 = arith.constant 0 : i32
    %c0_i32_1 = arith.constant 0 : i32
    return %c0_i32, %c0_i32_0 : i32, i32
  }
  func.func @transform_3(%arg0: i32) -> (i32, i32) {
    %c0_i32 = arith.constant 0 : i32
    %c0_i32_0 = arith.constant 0 : i32
    %c0_i32_1 = arith.constant 0 : i32
    return %c0_i32, %c0_i32_0 : i32, i32
  }
  func.func @transform_4(%arg0: i32) -> (i32, i32) {
    %c0_i32 = arith.constant 0 : i32
    %c0_i32_0 = arith.constant 0 : i32
    %c0_i32_1 = arith.constant 0 : i32
    return %c0_i32, %c0_i32_0 : i32, i32
  }
  func.func @transform_5(%arg0: i32) -> (i32, i32) {
    %c0_i32 = arith.constant 0 : i32
    %c0_i32_0 = arith.constant 0 : i32
    %c0_i32_1 = arith.constant 0 : i32
    return %c0_i32, %c0_i32_0 : i32, i32
  }
  func.func @transform_6(%arg0: i32) -> (i32, i32) {
    %c0_i32 = arith.constant 0 : i32
    %c0_i32_0 = arith.constant 0 : i32
    return %arg0, %c0_i32 : i32, i32
  }
}

</mosaic_0001>

<llo_original>
// kernel: tpu_custom_call.1
$region0: #{tpu_custom_call.1}
  #allocation0 [shape = 'u32[]', space=smem, size = 0x4, offset = 0x4, fixed_abs, tag = 'smem constant byte address 0x4 - core index']
  #allocation1 [shape = 'u32[72,128]{1,0:T(1,128)}', space=vmem, size = 0x9000, scoped, tag = 'internal scratch']
  %s0 = inlined_call_operand.vmem [shape: bf16[200,64], index: 0, kind: input, shape index: {}]
  %s1 = inlined_call_operand.vmem [shape: bf16[64,128], index: 1, kind: input, shape index: {}]
  %s2 = inlined_call_operand.hbm [shape: bf16[128,128], index: 2, kind: input, shape index: {}]
  %s3 = inlined_call_operand.vmem [shape: bf16[128,256], index: 3, kind: input, shape index: {}]
  %s4 = inlined_call_operand.hbm [shape: bf16[128,128], index: 4, kind: input, shape index: {}]
  %s5 = inlined_call_operand.hbm [shape: f32[16,128], index: 5, kind: input, shape index: {}]
  %s6 = inlined_call_operand.hbm [shape: bf16[200,128], index: 6, kind: output, shape index: {}]
  %s7 = sld [smem:[#allocation0]]
  $region46: #{tpu_custom_call.1} parent=0
    _
  %s9 = ssub.s32 1, %s7
  %s10 = scalar_select 0, %s9, %s7
  $region1: #{tpu_custom_call.1} parent=0
    #allocation2 [shape = 'u8[32768]{0}', space=vmem, size = 0x8000, scoped, tag = 'input window, operand 2, single buffered']
    #allocation3 [shape = 's32[1]{0}', space=sflag, size = 0x4, scoped, tag = 'scoped memory for tpu_custom_call.1']
    #allocation4 [shape = 's32[1]{0}', space=sflag, size = 0x4, scoped, tag = 'scoped memory for tpu_custom_call.1']
    #allocation5 [shape = 'u8[32768]{0}', space=vmem, size = 0x8000, scoped, tag = 'input window, operand 4, single buffered']
    #allocation6 [shape = 's32[1]{0}', space=sflag, size = 0x4, scoped, tag = 'scoped memory for tpu_custom_call.1']
    #allocation7 [shape = 'u8[8192]{0}', space=vmem, size = 0x2000, scoped, tag = 'input window, operand 5, single buffered']
    #allocation8 [shape = 'u8[51200]{0}', space=vmem, size = 0xc800, scoped, tag = 'output window, operand 0, single buffered']
    %11 = vsyncpa [#allocation3], 0
    %12 = vsyncpa [#allocation6], 0
    %13 = vsyncpa [#allocation4], 0
    // Predicated region
    $region2: #{tpu_custom_call.1} parent=1 // pred_check
      _
    $region3: #{tpu_custom_call.1} parent=1 // pred_check_branch
      %15 = sbr.rel (0) target = $region5
    $region4: #{tpu_custom_call.1} parent=1 // pred_region
      _
    $region5: #{tpu_custom_call.1} parent=1 // pred_fallthru
      _
    // Predicated region
    $region6: #{tpu_custom_call.1} parent=1 // pred_check
      _
    $region7: #{tpu_custom_call.1} parent=1 // pred_check_branch
      %17 = sbr.rel (0) target = $region9
    $region8: #{tpu_custom_call.1} parent=1 // pred_region
      _
    $region9: #{tpu_custom_call.1} parent=1 // pred_fallthru
      _
    // Predicated region
    $region10: #{tpu_custom_call.1} parent=1 // pred_check
      _
    $region11: #{tpu_custom_call.1} parent=1 // pred_check_branch
      %19 = sbr.rel (0) target = $region13
    $region12: #{tpu_custom_call.1} parent=1 // pred_region
      %21 = vsyncadd [#allocation3], 0
      %s22 = sshll.u32 %s2, 4
      %s23 = int_to_ptr.hbm [resolvable:$true] %s22
      %s24 = sshll.u32 [#allocation2], 4
      %s25 = int_to_ptr.vmem [resolvable:$true] %s24
      %30 = dma.hbm_to_vmem [thread:$0]  %s23, 1024, %s25, [#allocation3], 64, 64, 4
    $region13: #{tpu_custom_call.1} parent=1 // pred_fallthru
      _
    // Predicated region
    $region14: #{tpu_custom_call.1} parent=1 // pred_check
      _
    $region15: #{tpu_custom_call.1} parent=1 // pred_check_branch
      %32 = sbr.rel (0) target = $region17
    $region16: #{tpu_custom_call.1} parent=1 // pred_region
      _
    $region17: #{tpu_custom_call.1} parent=1 // pred_fallthru
      _
    // Predicated region
    $region18: #{tpu_custom_call.1} parent=1 // pred_check
      _
    $region19: #{tpu_custom_call.1} parent=1 // pred_check_branch
      %34 = sbr.rel (0) target = $region21
    $region20: #{tpu_custom_call.1} parent=1 // pred_region
      %36 = vsyncadd [#allocation6], 0
      %s37 = sshll.u32 %s4, 4
      %s38 = int_to_ptr.hbm [resolvable:$true] %s37
      %s39 = sshll.u32 [#allocation5], 4
      %s40 = int_to_ptr.vmem [resolvable:$true] %s39
      %45 = dma.hbm_to_vmem [thread:$0]  %s38, 1024, %s40, [#allocation6], 64, 64, 4
    $region21: #{tpu_custom_call.1} parent=1 // pred_fallthru
      _
    // Predicated region
    $region22: #{tpu_custom_call.1} parent=1 // pred_check
      _
    $region23: #{tpu_custom_call.1} parent=1 // pred_check_branch
      %47 = sbr.rel (0) target = $region25
    $region24: #{tpu_custom_call.1} parent=1 // pred_region
      %49 = vsyncadd [#allocation6], 0
      %s50 = sshll.u32 %s5, 4
      %s51 = int_to_ptr.hbm [resolvable:$true] %s50
      %s52 = sshll.u32 [#allocation7], 4
      %s53 = int_to_ptr.vmem [resolvable:$true] %s52
      %58 = dma.hbm_to_vmem [thread:$0]  %s51, 256, %s53, [#allocation6], 128, 128, 8
    $region25: #{tpu_custom_call.1} parent=1 // pred_fallthru
      _
    // Predicated region
    $region26: #{tpu_custom_call.1} parent=1 // pred_check
      _
    $region27: #{tpu_custom_call.1} parent=1 // pred_check_branch
      %60 = sbr.rel (0) target = $region29
    $region28: #{tpu_custom_call.1} parent=1 // pred_region
      %62 = dma.done [#allocation3], 1024
    $region29: #{tpu_custom_call.1} parent=1 // pred_fallthru
      _
    // Predicated region
    $region30: #{tpu_custom_call.1} parent=1 // pred_check
      _
    $region31: #{tpu_custom_call.1} parent=1 // pred_check_branch
      %64 = sbr.rel (0) target = $region33
    $region32: #{tpu_custom_call.1} parent=1 // pred_region
      %66 = dma.done [#allocation6], 1024
    $region33: #{tpu_custom_call.1} parent=1 // pred_fallthru
      _
    // Predicated region
    $region34: #{tpu_custom_call.1} parent=1 // pred_check
      _
    $region35: #{tpu_custom_call.1} parent=1 // pred_check_branch
      %68 = sbr.rel (0) target = $region37
    $region36: #{tpu_custom_call.1} parent=1 // pred_region
      %70 = dma.done [#allocation6], 256
    $region37: #{tpu_custom_call.1} parent=1 // pred_fallthru
      _
    %v72 = vld [vmem:[#allocation7] sm:$0xff]
    %v73 = vld [vmem:[#allocation7 + $0x8] sm:$0xff]
    %v74 = vld [vmem:[%s0] sm:$0xf]
    %v75 = vld [vmem:[%s0 + $0x4] sm:$0xf]
    %v76 = vld [vmem:[%s0 + $0x8] sm:$0xf]
    %v77 = vld [vmem:[%s0 + $0xc] sm:$0xf]
    %v78 = vld [vmem:[%s0 + $0x10] sm:$0xf]
    %v79 = vld [vmem:[%s0 + $0x14] sm:$0xf]
    %v80 = vld [vmem:[%s0 + $0x18] sm:$0xf]
    %v81 = vld [vmem:[%s0 + $0x1c] sm:$0xf]
    %v82 = vld [vmem:[%s0 + $0x20] sm:$0xf]
    %v83 = vld [vmem:[%s0 + $0x24] sm:$0xf]
    %v84 = vld [vmem:[%s0 + $0x28] sm:$0xf]
    %v85 = vld [vmem:[%s0 + $0x2c] sm:$0xf]
    %v86 = vld [vmem:[%s0 + $0x30] sm:$0xf]
    %v87 = vld [vmem:[%s0 + $0x34] sm:$0xf]
    %v88 = vld [vmem:[%s0 + $0x38] sm:$0xf]
    %v89 = vld [vmem:[%s0 + $0x3c] sm:$0xf]
    %v90 = vld [vmem:[%s0 + $0x40] sm:$0xf]
    %v91 = vld [vmem:[%s0 + $0x44] sm:$0xf]
    %v92 = vld [vmem:[%s0 + $0x48] sm:$0xf]
    %v93 = vld [vmem:[%s0 + $0x4c] sm:$0xf]
    %v94 = vld [vmem:[%s0 + $0x50] sm:$0xf]
    %v95 = vld [vmem:[%s0 + $0x54] sm:$0xf]
    %v96 = vld [vmem:[%s0 + $0x58] sm:$0xf]
    %v97 = vld [vmem:[%s0 + $0x5c] sm:$0xf]
    %v98 = vld [vmem:[%s0 + $0x60] sm:$0xf]
    %v99 = vld [vmem:[%s1] sm:$0xf]
    %v100 = vld [vmem:[%s1 + $0x4] sm:$0xf]
    %v101 = vld [vmem:[%s1 + $0x8] sm:$0xf]
    %v102 = vld [vmem:[%s1 + $0xc] sm:$0xf]
    %v103 = vld [vmem:[%s1 + $0x10] sm:$0xf]
    %v104 = vld [vmem:[%s1 + $0x14] sm:$0xf]
    %v105 = vld [vmem:[%s1 + $0x18] sm:$0xf]
    %v106 = vld [vmem:[%s1 + $0x1c] sm:$0xf]
    %v107 = vperm.slane %v72, 0
    %v133 = vunpack.c.l.b16 %v74
    %v134 = vunpack.c.l.b16 %v75
    %v135 = vunpack.c.l.b16 %v76
    %v136 = vunpack.c.l.b16 %v77
    %v137 = vunpack.c.l.b16 %v78
    %v138 = vunpack.c.l.b16 %v79
    %v139 = vunpack.c.l.b16 %v80
    %v140 = vunpack.c.l.b16 %v81
    %v141 = vunpack.c.l.b16 %v82
    %v142 = vunpack.c.l.b16 %v83
    %v143 = vunpack.c.l.b16 %v84
    %v144 = vunpack.c.l.b16 %v85
    %v145 = vunpack.c.l.b16 %v86
    %v146 = vunpack.c.l.b16 %v87
    %v147 = vunpack.c.l.b16 %v88
    %v148 = vunpack.c.l.b16 %v89
    %v149 = vunpack.c.l.b16 %v90
    %v150 = vunpack.c.l.b16 %v91
    %v151 = vunpack.c.l.b16 %v92
    %v152 = vunpack.c.l.b16 %v93
    %v153 = vunpack.c.l.b16 %v94
    %v154 = vunpack.c.l.b16 %v95
    %v155 = vunpack.c.l.b16 %v96
    %v156 = vunpack.c.l.b16 %v97
    %v157 = vunpack.c.l.b16 %v98
    %v158 = vpack.c.b16 %v134, %v133
    %v159 = vpack.c.b16 %v136, %v135
    %v160 = vpack.c.b16 %v138, %v137
    %v161 = vpack.c.b16 %v140, %v139
    %v162 = vpack.c.b16 %v142, %v141
    %v163 = vpack.c.b16 %v144, %v143
    %v164 = vpack.c.b16 %v146, %v145
    %v165 = vpack.c.b16 %v148, %v147
    %v166 = vpack.c.b16 %v150, %v149
    %v167 = vpack.c.b16 %v152, %v151
    %v168 = vpack.c.b16 %v154, %v153
    %v169 = vpack.c.b16 %v156, %v155
    %v170 = vpack.c.b16 %v157, %v157
    %v179 = vunpack.c.l.b16 %v99
    %v180 = vunpack.c.l.b16 %v100
    %v181 = vunpack.c.l.b16 %v101
    %v182 = vunpack.c.l.b16 %v102
    %v183 = vunpack.c.l.b16 %v103
    %v184 = vunpack.c.l.b16 %v104
    %v185 = vunpack.c.l.b16 %v105
    %v186 = vunpack.c.l.b16 %v106
    %v187 = vpack.c.b16 %v180, %v179
    %v188 = vpack.c.b16 %v182, %v181
    %v189 = vpack.c.b16 %v184, %v183
    %v190 = vpack.c.b16 %v186, %v185
    %vm195 = vcmask 523264
    %v197 = vsel %vm195, %v158, 0
    %v200 = vsel %vm195, %v159, 0
    %v203 = vsel %vm195, %v160, 0
    %v206 = vsel %vm195, %v161, 0
    %v209 = vsel %vm195, %v162, 0
    %v212 = vsel %vm195, %v163, 0
    %v215 = vsel %vm195, %v164, 0
    %v218 = vsel %vm195, %v165, 0
    %v221 = vsel %vm195, %v166, 0
    %v224 = vsel %vm195, %v167, 0
    %v227 = vsel %vm195, %v168, 0
    %v230 = vsel %vm195, %v169, 0
    %v233 = vsel %vm195, %v170, 0
    %235 = vmatpush.bf16.msra.mxu0 0
    %236 = vmatpush.bf16.msra.mxu0 0
    %237 = vmatpush.bf16.msra.mxu0 0
    %238 = vmatpush.bf16.msra.mxu0 0
    %239 = vmatpush.bf16.msra.mxu0 %v190
    %240 = vmatpush.bf16.msra.mxu0 %v189
    %241 = vmatpush.bf16.msra.mxu0 %v188
    %242 = vmatpush.bf16.msra.mxu0 %v187
    %243 = vmatmul.bf16.gmra.mxu0 %v197
    %v244 = vpop.f32.mrf.mxu0
    %v245 = vadd.f32 %v107, %v244
    %v246 = vpop.f32.mrf.mxu0
    %v247 = vadd.f32 %v107, %v246
    %248 = vmatmul.bf16.gmra.mxu0 %v200
    %v249 = vpop.f32.mrf.mxu0
    %v250 = vadd.f32 %v107, %v249
    %v251 = vpop.f32.mrf.mxu0
    %v252 = vadd.f32 %v107, %v251
    %253 = vmatmul.bf16.gmra.mxu0 %v203
    %v254 = vpop.f32.mrf.mxu0
    %v255 = vadd.f32 %v107, %v254
    %v256 = vpop.f32.mrf.mxu0
    %v257 = vadd.f32 %v107, %v256
    %258 = vmatmul.bf16.gmra.mxu0 %v206
    %v259 = vpop.f32.mrf.mxu0
    %v260 = vadd.f32 %v107, %v259
    %v261 = vpop.f32.mrf.mxu0
    %v262 = vadd.f32 %v107, %v261
    %263 = vmatmul.bf16.gmra.mxu0 %v209
    %v264 = vpop.f32.mrf.mxu0
    %v265 = vadd.f32 %v107, %v264
    %v266 = vpop.f32.mrf.mxu0
    %v267 = vadd.f32 %v107, %v266
    %268 = vmatmul.bf16.gmra.mxu0 %v212
    %v269 = vpop.f32.mrf.mxu0
    %v270 = vadd.f32 %v107, %v269
    %v271 = vpop.f32.mrf.mxu0
    %v272 = vadd.f32 %v107, %v271
    %273 = vmatmul.bf16.gmra.mxu0 %v215
    %v274 = vpop.f32.mrf.mxu0
    %v275 = vadd.f32 %v107, %v274
    %v276 = vpop.f32.mrf.mxu0
    %v277 = vadd.f32 %v107, %v276
    %278 = vmatmul.bf16.gmra.mxu0 %v218
    %v279 = vpop.f32.mrf.mxu0
    %v280 = vadd.f32 %v107, %v279
    %v281 = vpop.f32.mrf.mxu0
    %v282 = vadd.f32 %v107, %v281
    %283 = vmatmul.bf16.gmra.mxu0 %v221
    %v284 = vpop.f32.mrf.mxu0
    %v285 = vadd.f32 %v107, %v284
    %v286 = vpop.f32.mrf.mxu0
    %v287 = vadd.f32 %v107, %v286
    %288 = vmatmul.bf16.gmra.mxu0 %v224
    %v289 = vpop.f32.mrf.mxu0
    %v290 = vadd.f32 %v107, %v289
    %v291 = vpop.f32.mrf.mxu0
    %v292 = vadd.f32 %v107, %v291
    %293 = vmatmul.bf16.gmra.mxu0 %v227
    %v294 = vpop.f32.mrf.mxu0
    %v295 = vadd.f32 %v107, %v294
    %v296 = vpop.f32.mrf.mxu0
    %v297 = vadd.f32 %v107, %v296
    %298 = vmatmul.bf16.gmra.mxu0 %v230
    %v299 = vpop.f32.mrf.mxu0
    %v300 = vadd.f32 %v107, %v299
    %v301 = vpop.f32.mrf.mxu0
    %v302 = vadd.f32 %v107, %v301
    %303 = vmatmul.bf16.gmra.mxu0 %v233
    %v304 = vpop.f32.mrf.mxu0
    %v305 = vadd.f32 %v107, %v304
    %v306 = vpop.f32.mrf.mxu0
    %307 = vdwg.mxu0
    %308 = vadd.xlane.f32.xlu0 %v245
    %v309 = vpop.xlane.xlu0 %308
    %310 = vadd.xlane.f32.xlu0 %v247
    %v311 = vpop.xlane.xlu0 %310
    %312 = vadd.xlane.f32.xlu0 %v250
    %v313 = vpop.xlane.xlu0 %312
    %314 = vadd.xlane.f32.xlu0 %v252
    %v315 = vpop.xlane.xlu0 %314
    %316 = vadd.xlane.f32.xlu0 %v255
    %v317 = vpop.xlane.xlu0 %316
    %318 = vadd.xlane.f32.xlu0 %v257
    %v319 = vpop.xlane.xlu0 %318
    %320 = vadd.xlane.f32.xlu0 %v260
    %v321 = vpop.xlane.xlu0 %320
    %322 = vadd.xlane.f32.xlu0 %v262
    %v323 = vpop.xlane.xlu0 %322
    %324 = vadd.xlane.f32.xlu0 %v265
    %v325 = vpop.xlane.xlu0 %324
    %326 = vadd.xlane.f32.xlu0 %v267
    %v327 = vpop.xlane.xlu0 %326
    %328 = vadd.xlane.f32.xlu0 %v270
    %v329 = vpop.xlane.xlu0 %328
    %330 = vadd.xlane.f32.xlu0 %v272
    %v331 = vpop.xlane.xlu0 %330
    %332 = vadd.xlane.f32.xlu0 %v275
    %v333 = vpop.xlane.xlu0 %332
    %334 = vadd.xlane.f32.xlu0 %v277
    %v335 = vpop.xlane.xlu0 %334
    %336 = vadd.xlane.f32.xlu0 %v280
    %v337 = vpop.xlane.xlu0 %336
    %338 = vadd.xlane.f32.xlu0 %v282
    %v339 = vpop.xlane.xlu0 %338
    %340 = vadd.xlane.f32.xlu0 %v285
    %v341 = vpop.xlane.xlu0 %340
    %342 = vadd.xlane.f32.xlu0 %v287
    %v343 = vpop.xlane.xlu0 %342
    %344 = vadd.xlane.f32.xlu0 %v290
    %v345 = vpop.xlane.xlu0 %344
    %346 = vadd.xlane.f32.xlu0 %v292
    %v347 = vpop.xlane.xlu0 %346
    %348 = vadd.xlane.f32.xlu0 %v295
    %v349 = vpop.xlane.xlu0 %348
    %350 = vadd.xlane.f32.xlu0 %v297
    %v351 = vpop.xlane.xlu0 %350
    %352 = vadd.xlane.f32.xlu0 %v300
    %v353 = vpop.xlane.xlu0 %352
    %354 = vadd.xlane.f32.xlu0 %v302
    %v355 = vpop.xlane.xlu0 %354
    %356 = vadd.xlane.f32.xlu0 %v305
    %v357 = vpop.xlane.xlu0 %356
    %v358 = vrcp.pop 128.0
    %v359 = vmul.f32 128.0, %v358
    %v360 = vsub.f32 1.0, %v359
    %v361 = vmul.f32 %v358, %v360
    %v362 = vadd.f32 %v358, %v361
    %vm363 = vweird.f32 %v358
    %v364 = vsel %vm363, %v358, %v362
    %v365 = vmul.f32 %v309, %v364
    %v366 = vmul.f32 %v311, %v364
    %v367 = vmul.f32 %v313, %v364
    %v368 = vmul.f32 %v315, %v364
    %v369 = vmul.f32 %v317, %v364
    %v370 = vmul.f32 %v319, %v364
    %v371 = vmul.f32 %v321, %v364
    %v372 = vmul.f32 %v323, %v364
    %v373 = vmul.f32 %v325, %v364
    %v374 = vmul.f32 %v327, %v364
    %v375 = vmul.f32 %v329, %v364
    %v376 = vmul.f32 %v331, %v364
    %v377 = vmul.f32 %v333, %v364
    %v378 = vmul.f32 %v335, %v364
    %v379 = vmul.f32 %v337, %v364
    %v380 = vmul.f32 %v339, %v364
    %v381 = vmul.f32 %v341, %v364
    %v382 = vmul.f32 %v343, %v364
    %v383 = vmul.f32 %v345, %v364
    %v384 = vmul.f32 %v347, %v364
    %v385 = vmul.f32 %v349, %v364
    %v386 = vmul.f32 %v351, %v364
    %v387 = vmul.f32 %v353, %v364
    %v388 = vmul.f32 %v355, %v364
    %v389 = vmul.f32 %v357, %v364
    %v390 = vsub.f32 %v245, %v365
    %v391 = vsub.f32 %v247, %v366
    %v392 = vsub.f32 %v250, %v367
    %v393 = vsub.f32 %v252, %v368
    %v394 = vsub.f32 %v255, %v369
    %v395 = vsub.f32 %v257, %v370
    %v396 = vsub.f32 %v260, %v371
    %v397 = vsub.f32 %v262, %v372
    %v398 = vsub.f32 %v265, %v373
    %v399 = vsub.f32 %v267, %v374
    %v400 = vsub.f32 %v270, %v375
    %v401 = vsub.f32 %v272, %v376
    %v402 = vsub.f32 %v275, %v377
    %v403 = vsub.f32 %v277, %v378
    %v404 = vsub.f32 %v280, %v379
    %v405 = vsub.f32 %v282, %v380
    %v406 = vsub.f32 %v285, %v381
    %v407 = vsub.f32 %v287, %v382
    %v408 = vsub.f32 %v290, %v383
    %v409 = vsub.f32 %v292, %v384
    %v410 = vsub.f32 %v295, %v385
    %v411 = vsub.f32 %v297, %v386
    %v412 = vsub.f32 %v300, %v387
    %v413 = vsub.f32 %v302, %v388
    %v414 = vsub.f32 %v305, %v389
    %v415 = vmul.f32 %v390, %v390
    %v416 = vmul.f32 %v391, %v391
    %v417 = vmul.f32 %v392, %v392
    %v418 = vmul.f32 %v393, %v393
    %v419 = vmul.f32 %v394, %v394
    %v420 = vmul.f32 %v395, %v395
    %v421 = vmul.f32 %v396, %v396
    %v422 = vmul.f32 %v397, %v397
    %v423 = vmul.f32 %v398, %v398
    %v424 = vmul.f32 %v399, %v399
    %v425 = vmul.f32 %v400, %v400
    %v426 = vmul.f32 %v401, %v401
    %v427 = vmul.f32 %v402, %v402
    %v428 = vmul.f32 %v403, %v403
    %v429 = vmul.f32 %v404, %v404
    %v430 = vmul.f32 %v405, %v405
    %v431 = vmul.f32 %v406, %v406
    %v432 = vmul.f32 %v407, %v407
    %v433 = vmul.f32 %v408, %v408
    %v434 = vmul.f32 %v409, %v409
    %v435 = vmul.f32 %v410, %v410
    %v436 = vmul.f32 %v411, %v411
    %v437 = vmul.f32 %v412, %v412
    %v438 = vmul.f32 %v413, %v413
    %v439 = vmul.f32 %v414, %v414
    %440 = vadd.xlane.f32.xlu0 %v415
    %v441 = vpop.xlane.xlu0 %440
    %442 = vadd.xlane.f32.xlu0 %v416
    %v443 = vpop.xlane.xlu0 %442
    %444 = vadd.xlane.f32.xlu0 %v417
    %v445 = vpop.xlane.xlu0 %444
    %446 = vadd.xlane.f32.xlu0 %v418
    %v447 = vpop.xlane.xlu0 %446
    %448 = vadd.xlane.f32.xlu0 %v419
    %v449 = vpop.xlane.xlu0 %448
    %450 = vadd.xlane.f32.xlu0 %v420
    %v451 = vpop.xlane.xlu0 %450
    %452 = vadd.xlane.f32.xlu0 %v421
    %v453 = vpop.xlane.xlu0 %452
    %454 = vadd.xlane.f32.xlu0 %v422
    %v455 = vpop.xlane.xlu0 %454
    %456 = vadd.xlane.f32.xlu0 %v423
    %v457 = vpop.xlane.xlu0 %456
    %458 = vadd.xlane.f32.xlu0 %v424
    %v459 = vpop.xlane.xlu0 %458
    %460 = vadd.xlane.f32.xlu0 %v425
    %v461 = vpop.xlane.xlu0 %460
    %462 = vadd.xlane.f32.xlu0 %v426
    %v463 = vpop.xlane.xlu0 %462
    %464 = vadd.xlane.f32.xlu0 %v427
    %v465 = vpop.xlane.xlu0 %464
    %466 = vadd.xlane.f32.xlu0 %v428
    %v467 = vpop.xlane.xlu0 %466
    %468 = vadd.xlane.f32.xlu0 %v429
    %v469 = vpop.xlane.xlu0 %468
    %470 = vadd.xlane.f32.xlu0 %v430
    %v471 = vpop.xlane.xlu0 %470
    %472 = vadd.xlane.f32.xlu0 %v431
    %v473 = vpop.xlane.xlu0 %472
    %474 = vadd.xlane.f32.xlu0 %v432
    %v475 = vpop.xlane.xlu0 %474
    %476 = vadd.xlane.f32.xlu0 %v433
    %v477 = vpop.xlane.xlu0 %476
    %478 = vadd.xlane.f32.xlu0 %v434
    %v479 = vpop.xlane.xlu0 %478
    %480 = vadd.xlane.f32.xlu0 %v435
    %v481 = vpop.xlane.xlu0 %480
    %482 = vadd.xlane.f32.xlu0 %v436
    %v483 = vpop.xlane.xlu0 %482
    %484 = vadd.xlane.f32.xlu0 %v437
    %v485 = vpop.xlane.xlu0 %484
    %486 = vadd.xlane.f32.xlu0 %v438
    %v487 = vpop.xlane.xlu0 %486
    %488 = vadd.xlane.f32.xlu0 %v439
    %v489 = vpop.xlane.xlu0 %488
    %v490 = vmul.f32 %v441, %v364
    %v491 = vmul.f32 %v443, %v364
    %v492 = vmul.f32 %v445, %v364
    %v493 = vmul.f32 %v447, %v364
    %v494 = vmul.f32 %v449, %v364
    %v495 = vmul.f32 %v451, %v364
    %v496 = vmul.f32 %v453, %v364
    %v497 = vmul.f32 %v455, %v364
    %v498 = vmul.f32 %v457, %v364
    %v499 = vmul.f32 %v459, %v364
    %v500 = vmul.f32 %v461, %v364
    %v501 = vmul.f32 %v463, %v364
    %v502 = vmul.f32 %v465, %v364
    %v503 = vmul.f32 %v467, %v364
    %v504 = vmul.f32 %v469, %v364
    %v505 = vmul.f32 %v471, %v364
    %v506 = vmul.f32 %v473, %v364
    %v507 = vmul.f32 %v475, %v364
    %v508 = vmul.f32 %v477, %v364
    %v509 = vmul.f32 %v479, %v364
    %v510 = vmul.f32 %v481, %v364
    %v511 = vmul.f32 %v483, %v364
    %v512 = vmul.f32 %v485, %v364
    %v513 = vmul.f32 %v487, %v364
    %v514 = vmul.f32 %v489, %v364
    %v515 = vadd.f32 %v490, 1e-05
    %v516 = vadd.f32 %v491, 1e-05
    %v517 = vadd.f32 %v492, 1e-05
    %v518 = vadd.f32 %v493, 1e-05
    %v519 = vadd.f32 %v494, 1e-05
    %v520 = vadd.f32 %v495, 1e-05
    %v521 = vadd.f32 %v496, 1e-05
    %v522 = vadd.f32 %v497, 1e-05
    %v523 = vadd.f32 %v498, 1e-05
    %v524 = vadd.f32 %v499, 1e-05
    %v525 = vadd.f32 %v500, 1e-05
    %v526 = vadd.f32 %v501, 1e-05
    %v527 = vadd.f32 %v502, 1e-05
    %v528 = vadd.f32 %v503, 1e-05
    %v529 = vadd.f32 %v504, 1e-05
    %v530 = vadd.f32 %v505, 1e-05
    %v531 = vadd.f32 %v506, 1e-05
    %v532 = vadd.f32 %v507, 1e-05
    %v533 = vadd.f32 %v508, 1e-05
    %v534 = vadd.f32 %v509, 1e-05
    %v535 = vadd.f32 %v510, 1e-05
    %v536 = vadd.f32 %v511, 1e-05
    %v537 = vadd.f32 %v512, 1e-05
    %v538 = vadd.f32 %v513, 1e-05
    %v539 = vadd.f32 %v514, 1e-05
    %v540 = vrsqrt.pop %v515
    %v541 = vmul.f32 %v540, %v515
    %v542 = vmul.f32 %v541, %v540
    %v543 = vmul.f32 0.5, %v542
    %v544 = vsub.f32 1.5, %v543
    %v545 = vmul.f32 %v540, %v544
    %vm546 = vweird.f32 %v515
    %vm547 = vweird.f32 %v540
    %vm548 = vmor %vm546, %vm547
    %v549 = vsel %vm548, %v540, %v545
    %v550 = vrsqrt.pop %v516
    %v551 = vmul.f32 %v550, %v516
    %v552 = vmul.f32 %v551, %v550
    %v553 = vmul.f32 0.5, %v552
    %v554 = vsub.f32 1.5, %v553
    %v555 = vmul.f32 %v550, %v554
    %vm556 = vweird.f32 %v516
    %vm557 = vweird.f32 %v550
    %vm558 = vmor %vm556, %vm557
    %v559 = vsel %vm558, %v550, %v555
    %v560 = vrsqrt.pop %v517
    %v561 = vmul.f32 %v560, %v517
    %v562 = vmul.f32 %v561, %v560
    %v563 = vmul.f32 0.5, %v562
    %v564 = vsub.f32 1.5, %v563
    %v565 = vmul.f32 %v560, %v564
    %vm566 = vweird.f32 %v517
    %vm567 = vweird.f32 %v560
    %vm568 = vmor %vm566, %vm567
    %v569 = vsel %vm568, %v560, %v565
    %v570 = vrsqrt.pop %v518
    %v571 = vmul.f32 %v570, %v518
    %v572 = vmul.f32 %v571, %v570
    %v573 = vmul.f32 0.5, %v572
    %v574 = vsub.f32 1.5, %v573
    %v575 = vmul.f32 %v570, %v574
    %vm576 = vweird.f32 %v518
    %vm577 = vweird.f32 %v570
    %vm578 = vmor %vm576, %vm577
    %v579 = vsel %vm578, %v570, %v575
    %v580 = vrsqrt.pop %v519
    %v581 = vmul.f32 %v580, %v519
    %v582 = vmul.f32 %v581, %v580
    %v583 = vmul.f32 0.5, %v582
    %v584 = vsub.f32 1.5, %v583
    %v585 = vmul.f32 %v580, %v584
    %vm586 = vweird.f32 %v519
    %vm587 = vweird.f32 %v580
    %vm588 = vmor %vm586, %vm587
    %v589 = vsel %vm588, %v580, %v585
    %v590 = vrsqrt.pop %v520
    %v591 = vmul.f32 %v590, %v520
    %v592 = vmul.f32 %v591, %v590
    %v593 = vmul.f32 0.5, %v592
    %v594 = vsub.f32 1.5, %v593
    %v595 = vmul.f32 %v590, %v594
    %vm596 = vweird.f32 %v520
    %vm597 = vweird.f32 %v590
    %vm598 = vmor %vm596, %vm597
    %v599 = vsel %vm598, %v590, %v595
    %v600 = vrsqrt.pop %v521
    %v601 = vmul.f32 %v600, %v521
    %v602 = vmul.f32 %v601, %v600
    %v603 = vmul.f32 0.5, %v602
    %v604 = vsub.f32 1.5, %v603
    %v605 = vmul.f32 %v600, %v604
    %vm606 = vweird.f32 %v521
    %vm607 = vweird.f32 %v600
    %vm608 = vmor %vm606, %vm607
    %v609 = vsel %vm608, %v600, %v605
    %v610 = vrsqrt.pop %v522
    %v611 = vmul.f32 %v610, %v522
    %v612 = vmul.f32 %v611, %v610
    %v613 = vmul.f32 0.5, %v612
    %v614 = vsub.f32 1.5, %v613
    %v615 = vmul.f32 %v610, %v614
    %vm616 = vweird.f32 %v522
    %vm617 = vweird.f32 %v610
    %vm618 = vmor %vm616, %vm617
    %v619 = vsel %vm618, %v610, %v615
    %v620 = vrsqrt.pop %v523
    %v621 = vmul.f32 %v620, %v523
    %v622 = vmul.f32 %v621, %v620
    %v623 = vmul.f32 0.5, %v622
    %v624 = vsub.f32 1.5, %v623
    %v625 = vmul.f32 %v620, %v624
    %vm626 = vweird.f32 %v523
    %vm627 = vweird.f32 %v620
    %vm628 = vmor %vm626, %vm627
    %v629 = vsel %vm628, %v620, %v625
    %v630 = vrsqrt.pop %v524
    %v631 = vmul.f32 %v630, %v524
    %v632 = vmul.f32 %v631, %v630
    %v633 = vmul.f32 0.5, %v632
    %v634 = vsub.f32 1.5, %v633
    %v635 = vmul.f32 %v630, %v634
    %vm636 = vweird.f32 %v524
    %vm637 = vweird.f32 %v630
    %vm638 = vmor %vm636, %vm637
    %v639 = vsel %vm638, %v630, %v635
    %v640 = vrsqrt.pop %v525
    %v641 = vmul.f32 %v640, %v525
    %v642 = vmul.f32 %v641, %v640
    %v643 = vmul.f32 0.5, %v642
    %v644 = vsub.f32 1.5, %v643
    %v645 = vmul.f32 %v640, %v644
    %vm646 = vweird.f32 %v525
    %vm647 = vweird.f32 %v640
    %vm648 = vmor %vm646, %vm647
    %v649 = vsel %vm648, %v640, %v645
    %v650 = vrsqrt.pop %v526
    %v651 = vmul.f32 %v650, %v526
    %v652 = vmul.f32 %v651, %v650
    %v653 = vmul.f32 0.5, %v652
    %v654 = vsub.f32 1.5, %v653
    %v655 = vmul.f32 %v650, %v654
    %vm656 = vweird.f32 %v526
    %vm657 = vweird.f32 %v650
    %vm658 = vmor %vm656, %vm657
    %v659 = vsel %vm658, %v650, %v655
    %v660 = vrsqrt.pop %v527
    %v661 = vmul.f32 %v660, %v527
    %v662 = vmul.f32 %v661, %v660
    %v663 = vmul.f32 0.5, %v662
    %v664 = vsub.f32 1.5, %v663
    %v665 = vmul.f32 %v660, %v664
    %vm666 = vweird.f32 %v527
    %vm667 = vweird.f32 %v660
    %vm668 = vmor %vm666, %vm667
    %v669 = vsel %vm668, %v660, %v665
    %v670 = vrsqrt.pop %v528
    %v671 = vmul.f32 %v670, %v528
    %v672 = vmul.f32 %v671, %v670
    %v673 = vmul.f32 0.5, %v672
    %v674 = vsub.f32 1.5, %v673
    %v675 = vmul.f32 %v670, %v674
    %vm676 = vweird.f32 %v528
    %vm677 = vweird.f32 %v670
    %vm678 = vmor %vm676, %vm677
    %v679 = vsel %vm678, %v670, %v675
    %v680 = vrsqrt.pop %v529
    %v681 = vmul.f32 %v680, %v529
    %v682 = vmul.f32 %v681, %v680
    %v683 = vmul.f32 0.5, %v682
    %v684 = vsub.f32 1.5, %v683
    %v685 = vmul.f32 %v680, %v684
    %vm686 = vweird.f32 %v529
    %vm687 = vweird.f32 %v680
    %vm688 = vmor %vm686, %vm687
    %v689 = vsel %vm688, %v680, %v685
    %v690 = vrsqrt.pop %v530
    %v691 = vmul.f32 %v690, %v530
    %v692 = vmul.f32 %v691, %v690
    %v693 = vmul.f32 0.5, %v692
    %v694 = vsub.f32 1.5, %v693
    %v695 = vmul.f32 %v690, %v694
    %vm696 = vweird.f32 %v530
    %vm697 = vweird.f32 %v690
    %vm698 = vmor %vm696, %vm697
    %v699 = vsel %vm698, %v690, %v695
    %v700 = vrsqrt.pop %v531
    %v701 = vmul.f32 %v700, %v531
    %v702 = vmul.f32 %v701, %v700
    %v703 = vmul.f32 0.5, %v702
    %v704 = vsub.f32 1.5, %v703
    %v705 = vmul.f32 %v700, %v704
    %vm706 = vweird.f32 %v531
    %vm707 = vweird.f32 %v700
    %vm708 = vmor %vm706, %vm707
    %v709 = vsel %vm708, %v700, %v705
    %v710 = vrsqrt.pop %v532
    %v711 = vmul.f32 %v710, %v532
    %v712 = vmul.f32 %v711, %v710
    %v713 = vmul.f32 0.5, %v712
    %v714 = vsub.f32 1.5, %v713
    %v715 = vmul.f32 %v710, %v714
    %vm716 = vweird.f32 %v532
    %vm717 = vweird.f32 %v710
    %vm718 = vmor %vm716, %vm717
    %v719 = vsel %vm718, %v710, %v715
    %v720 = vrsqrt.pop %v533
    %v721 = vmul.f32 %v720, %v533
    %v722 = vmul.f32 %v721, %v720
    %v723 = vmul.f32 0.5, %v722
    %v724 = vsub.f32 1.5, %v723
    %v725 = vmul.f32 %v720, %v724
    %vm726 = vweird.f32 %v533
    %vm727 = vweird.f32 %v720
    %vm728 = vmor %vm726, %vm727
    %v729 = vsel %vm728, %v720, %v725
    %v730 = vrsqrt.pop %v534
    %v731 = vmul.f32 %v730, %v534
    %v732 = vmul.f32 %v731, %v730
    %v733 = vmul.f32 0.5, %v732
    %v734 = vsub.f32 1.5, %v733
    %v735 = vmul.f32 %v730, %v734
    %vm736 = vweird.f32 %v534
    %vm737 = vweird.f32 %v730
    %vm738 = vmor %vm736, %vm737
    %v739 = vsel %vm738, %v730, %v735
    %v740 = vrsqrt.pop %v535
    %v741 = vmul.f32 %v740, %v535
    %v742 = vmul.f32 %v741, %v740
    %v743 = vmul.f32 0.5, %v742
    %v744 = vsub.f32 1.5, %v743
    %v745 = vmul.f32 %v740, %v744
    %vm746 = vweird.f32 %v535
    %vm747 = vweird.f32 %v740
    %vm748 = vmor %vm746, %vm747
    %v749 = vsel %vm748, %v740, %v745
    %v750 = vrsqrt.pop %v536
    %v751 = vmul.f32 %v750, %v536
    %v752 = vmul.f32 %v751, %v750
    %v753 = vmul.f32 0.5, %v752
    %v754 = vsub.f32 1.5, %v753
    %v755 = vmul.f32 %v750, %v754
    %vm756 = vweird.f32 %v536
    %vm757 = vweird.f32 %v750
    %vm758 = vmor %vm756, %vm757
    %v759 = vsel %vm758, %v750, %v755
    %v760 = vrsqrt.pop %v537
    %v761 = vmul.f32 %v760, %v537
    %v762 = vmul.f32 %v761, %v760
    %v763 = vmul.f32 0.5, %v762
    %v764 = vsub.f32 1.5, %v763
    %v765 = vmul.f32 %v760, %v764
    %vm766 = vweird.f32 %v537
    %vm767 = vweird.f32 %v760
    %vm768 = vmor %vm766, %vm767
    %v769 = vsel %vm768, %v760, %v765
    %v770 = vrsqrt.pop %v538
    %v771 = vmul.f32 %v770, %v538
    %v772 = vmul.f32 %v771, %v770
    %v773 = vmul.f32 0.5, %v772
    %v774 = vsub.f32 1.5, %v773
    %v775 = vmul.f32 %v770, %v774
    %vm776 = vweird.f32 %v538
    %vm777 = vweird.f32 %v770
    %vm778 = vmor %vm776, %vm777
    %v779 = vsel %vm778, %v770, %v775
    %v780 = vrsqrt.pop %v539
    %v781 = vmul.f32 %v780, %v539
    %v782 = vmul.f32 %v781, %v780
    %v783 = vmul.f32 0.5, %v782
    %v784 = vsub.f32 1.5, %v783
    %v785 = vmul.f32 %v780, %v784
    %vm786 = vweird.f32 %v539
    %vm787 = vweird.f32 %v780
    %vm788 = vmor %vm786, %vm787
    %v789 = vsel %vm788, %v780, %v785
    %v790 = vmul.f32 %v390, %v549
    %v791 = vmul.f32 %v391, %v559
    %v792 = vmul.f32 %v392, %v569
    %v793 = vmul.f32 %v393, %v579
    %v794 = vmul.f32 %v394, %v589
    %v795 = vmul.f32 %v395, %v599
    %v796 = vmul.f32 %v396, %v609
    %v797 = vmul.f32 %v397, %v619
    %v798 = vmul.f32 %v398, %v629
    %v799 = vmul.f32 %v399, %v639
    %v800 = vmul.f32 %v400, %v649
    %v801 = vmul.f32 %v401, %v659
    %v802 = vmul.f32 %v402, %v669
    %v803 = vmul.f32 %v403, %v679
    %v804 = vmul.f32 %v404, %v689
    %v805 = vmul.f32 %v405, %v699
    %v806 = vmul.f32 %v406, %v709
    %v807 = vmul.f32 %v407, %v719
    %v808 = vmul.f32 %v408, %v729
    %v809 = vmul.f32 %v409, %v739
    %v810 = vmul.f32 %v410, %v749
    %v811 = vmul.f32 %v411, %v759
    %v812 = vmul.f32 %v412, %v769
    %v813 = vmul.f32 %v413, %v779
    %v814 = vmul.f32 %v414, %v789
    %v815 = vperm.slane %v72, 1
    %v816 = vmul.f32 %v790, %v815
    %v817 = vmul.f32 %v791, %v815
    %v818 = vmul.f32 %v792, %v815
    %v819 = vmul.f32 %v793, %v815
    %v820 = vmul.f32 %v794, %v815
    %v821 = vmul.f32 %v795, %v815
    %v822 = vmul.f32 %v796, %v815
    %v823 = vmul.f32 %v797, %v815
    %v824 = vmul.f32 %v798, %v815
    %v825 = vmul.f32 %v799, %v815
    %v826 = vmul.f32 %v800, %v815
    %v827 = vmul.f32 %v801, %v815
    %v828 = vmul.f32 %v802, %v815
    %v829 = vmul.f32 %v803, %v815
    %v830 = vmul.f32 %v804, %v815
    %v831 = vmul.f32 %v805, %v815
    %v832 = vmul.f32 %v806, %v815
    %v833 = vmul.f32 %v807, %v815
    %v834 = vmul.f32 %v808, %v815
    %v835 = vmul.f32 %v809, %v815
    %v836 = vmul.f32 %v810, %v815
    %v837 = vmul.f32 %v811, %v815
    %v838 = vmul.f32 %v812, %v815
    %v839 = vmul.f32 %v813, %v815
    %v840 = vmul.f32 %v814, %v815
    %v841 = vperm.slane %v72, 2
    %v842 = vadd.f32 %v816, %v841
    %v843 = vadd.f32 %v817, %v841
    %v844 = vadd.f32 %v818, %v841
    %v845 = vadd.f32 %v819, %v841
    %v846 = vadd.f32 %v820, %v841
    %v847 = vadd.f32 %v821, %v841
    %v848 = vadd.f32 %v822, %v841
    %v849 = vadd.f32 %v823, %v841
    %v850 = vadd.f32 %v824, %v841
    %v851 = vadd.f32 %v825, %v841
    %v852 = vadd.f32 %v826, %v841
    %v853 = vadd.f32 %v827, %v841
    %v854 = vadd.f32 %v828, %v841
    %v855 = vadd.f32 %v829, %v841
    %v856 = vadd.f32 %v830, %v841
    %v857 = vadd.f32 %v831, %v841
    %v858 = vadd.f32 %v832, %v841
    %v859 = vadd.f32 %v833, %v841
    %v860 = vadd.f32 %v834, %v841
    %v861 = vadd.f32 %v835, %v841
    %v862 = vadd.f32 %v836, %v841
    %v863 = vadd.f32 %v837, %v841
    %v864 = vadd.f32 %v838, %v841
    %v865 = vadd.f32 %v839, %v841
    %v866 = vadd.f32 %v840, %v841
    %v867 = vmax.f32 %v842, 0.0
    %v868 = vmax.f32 %v843, 0.0
    %v869 = vmax.f32 %v844, 0.0
    %v870 = vmax.f32 %v845, 0.0
    %v871 = vmax.f32 %v846, 0.0
    %v872 = vmax.f32 %v847, 0.0
    %v873 = vmax.f32 %v848, 0.0
    %v874 = vmax.f32 %v849, 0.0
    %v875 = vmax.f32 %v850, 0.0
    %v876 = vmax.f32 %v851, 0.0
    %v877 = vmax.f32 %v852, 0.0
    %v878 = vmax.f32 %v853, 0.0
    %v879 = vmax.f32 %v854, 0.0
    %v880 = vmax.f32 %v855, 0.0
    %v881 = vmax.f32 %v856, 0.0
    %v882 = vmax.f32 %v857, 0.0
    %v883 = vmax.f32 %v858, 0.0
    %v884 = vmax.f32 %v859, 0.0
    %v885 = vmax.f32 %v860, 0.0
    %v886 = vmax.f32 %v861, 0.0
    %v887 = vmax.f32 %v862, 0.0
    %v888 = vmax.f32 %v863, 0.0
    %v889 = vmax.f32 %v864, 0.0
    %v890 = vmax.f32 %v865, 0.0
    %v891 = vmax.f32 %v866, 0.0
    %v892 = vld [vmem:[#allocation2] sm:$0xf]
    %v893 = vld [vmem:[#allocation2 + $0x4] sm:$0xf]
    %v894 = vld [vmem:[#allocation2 + $0x8] sm:$0xf]
    %v895 = vld [vmem:[#allocation2 + $0xc] sm:$0xf]
    %v896 = vld [vmem:[#allocation2 + $0x10] sm:$0xf]
    %v897 = vld [vmem:[#allocation2 + $0x14] sm:$0xf]
    %v898 = vld [vmem:[#allocation2 + $0x18] sm:$0xf]
    %v899 = vld [vmem:[#allocation2 + $0x1c] sm:$0xf]
    %v900 = vld [vmem:[#allocation2 + $0x20] sm:$0xf]
    %v901 = vld [vmem:[#allocation2 + $0x24] sm:$0xf]
    %v902 = vld [vmem:[#allocation2 + $0x28] sm:$0xf]
    %v903 = vld [vmem:[#allocation2 + $0x2c] sm:$0xf]
    %v904 = vld [vmem:[#allocation2 + $0x30] sm:$0xf]
    %v905 = vld [vmem:[#allocation2 + $0x34] sm:$0xf]
    %v906 = vld [vmem:[#allocation2 + $0x38] sm:$0xf]
    %v907 = vld [vmem:[#allocation2 + $0x3c] sm:$0xf]
    %v908 = vpack.c.bf16 %v868, %v867
    %v909 = vpack.c.bf16 %v870, %v869
    %v910 = vpack.c.bf16 %v872, %v871
    %v911 = vpack.c.bf16 %v874, %v873
    %v912 = vpack.c.bf16 %v876, %v875
    %v913 = vpack.c.bf16 %v878, %v877
    %v914 = vpack.c.bf16 %v880, %v879
    %v915 = vpack.c.bf16 %v882, %v881
    %v916 = vpack.c.bf16 %v884, %v883
    %v917 = vpack.c.bf16 %v886, %v885
    %v918 = vpack.c.bf16 %v888, %v887
    %v919 = vpack.c.bf16 %v890, %v889
    %v920 = vpack.c.bf16 %v891, %v891
    %v921 = vperm.slane %v72, 3
    %v938 = vunpack.c.l.b16 %v892
    %v939 = vunpack.c.l.b16 %v893
    %v940 = vunpack.c.l.b16 %v894
    %v941 = vunpack.c.l.b16 %v895
    %v942 = vunpack.c.l.b16 %v896
    %v943 = vunpack.c.l.b16 %v897
    %v944 = vunpack.c.l.b16 %v898
    %v945 = vunpack.c.l.b16 %v899
    %v946 = vunpack.c.l.b16 %v900
    %v947 = vunpack.c.l.b16 %v901
    %v948 = vunpack.c.l.b16 %v902
    %v949 = vunpack.c.l.b16 %v903
    %v950 = vunpack.c.l.b16 %v904
    %v951 = vunpack.c.l.b16 %v905
    %v952 = vunpack.c.l.b16 %v906
    %v953 = vunpack.c.l.b16 %v907
    %v954 = vpack.c.b16 %v939, %v938
    %v955 = vpack.c.b16 %v941, %v940
    %v956 = vpack.c.b16 %v943, %v942
    %v957 = vpack.c.b16 %v945, %v944
    %v958 = vpack.c.b16 %v947, %v946
    %v959 = vpack.c.b16 %v949, %v948
    %v960 = vpack.c.b16 %v951, %v950
    %v961 = vpack.c.b16 %v953, %v952
    %970 = vmatpush.bf16.msra.mxu0 %v961
    %971 = vmatpush.bf16.msra.mxu0 %v960
    %972 = vmatpush.bf16.msra.mxu0 %v959
    %973 = vmatpush.bf16.msra.mxu0 %v958
    %974 = vmatpush.bf16.msra.mxu0 %v957
    %975 = vmatpush.bf16.msra.mxu0 %v956
    %976 = vmatpush.bf16.msra.mxu0 %v955
    %977 = vmatpush.bf16.msra.mxu0 %v954
    %978 = vmatmul.bf16.gmra.mxu0 %v908
    %v979 = vpop.f32.mrf.mxu0
    %v980 = vadd.f32 %v921, %v979
    %v981 = vpop.f32.mrf.mxu0
    %v982 = vadd.f32 %v921, %v981
    %983 = vmatmul.bf16.gmra.mxu0 %v909
    %v984 = vpop.f32.mrf.mxu0
    %v985 = vadd.f32 %v921, %v984
    %v986 = vpop.f32.mrf.mxu0
    %v987 = vadd.f32 %v921, %v986
    %988 = vmatmul.bf16.gmra.mxu0 %v910
    %v989 = vpop.f32.mrf.mxu0
    %v990 = vadd.f32 %v921, %v989
    %v991 = vpop.f32.mrf.mxu0
    %v992 = vadd.f32 %v921, %v991
    %993 = vmatmul.bf16.gmra.mxu0 %v911
    %v994 = vpop.f32.mrf.mxu0
    %v995 = vadd.f32 %v921, %v994
    %v996 = vpop.f32.mrf.mxu0
    %v997 = vadd.f32 %v921, %v996
    %998 = vmatmul.bf16.gmra.mxu0 %v912
    %v999 = vpop.f32.mrf.mxu0
    %v1000 = vadd.f32 %v921, %v999
    %v1001 = vpop.f32.mrf.mxu0
    %v1002 = vadd.f32 %v921, %v1001
    %1003 = vmatmul.bf16.gmra.mxu0 %v913
    %v1004 = vpop.f32.mrf.mxu0
    %v1005 = vadd.f32 %v921, %v1004
    %v1006 = vpop.f32.mrf.mxu0
    %v1007 = vadd.f32 %v921, %v1006
    %1008 = vmatmul.bf16.gmra.mxu0 %v914
    %v1009 = vpop.f32.mrf.mxu0
    %v1010 = vadd.f32 %v921, %v1009
    %v1011 = vpop.f32.mrf.mxu0
    %v1012 = vadd.f32 %v921, %v1011
    %1013 = vmatmul.bf16.gmra.mxu0 %v915
    %v1014 = vpop.f32.mrf.mxu0
    %v1015 = vadd.f32 %v921, %v1014
    %v1016 = vpop.f32.mrf.mxu0
    %v1017 = vadd.f32 %v921, %v1016
    %1018 = vmatmul.bf16.gmra.mxu0 %v916
    %v1019 = vpop.f32.mrf.mxu0
    %v1020 = vadd.f32 %v921, %v1019
    %v1021 = vpop.f32.mrf.mxu0
    %v1022 = vadd.f32 %v921, %v1021
    %1023 = vmatmul.bf16.gmra.mxu0 %v917
    %v1024 = vpop.f32.mrf.mxu0
    %v1025 = vadd.f32 %v921, %v1024
    %v1026 = vpop.f32.mrf.mxu0
    %v1027 = vadd.f32 %v921, %v1026
    %1028 = vmatmul.bf16.gmra.mxu0 %v918
    %v1029 = vpop.f32.mrf.mxu0
    %v1030 = vadd.f32 %v921, %v1029
    %v1031 = vpop.f32.mrf.mxu0
    %v1032 = vadd.f32 %v921, %v1031
    %1033 = vmatmul.bf16.gmra.mxu0 %v919
    %v1034 = vpop.f32.mrf.mxu0
    %v1035 = vadd.f32 %v921, %v1034
    %v1036 = vpop.f32.mrf.mxu0
    %v1037 = vadd.f32 %v921, %v1036
    %1038 = vmatmul.bf16.gmra.mxu0 %v920
    %v1039 = vpop.f32.mrf.mxu0
    %v1040 = vadd.f32 %v921, %v1039
    %v1041 = vpop.f32.mrf.mxu0
    %1042 = vdwg.mxu0
    %1043 = vadd.xlane.f32.xlu0 %v980
    %v1044 = vpop.xlane.xlu0 %1043
    %1045 = vadd.xlane.f32.xlu0 %v982
    %v1046 = vpop.xlane.xlu0 %1045
    %1047 = vadd.xlane.f32.xlu0 %v985
    %v1048 = vpop.xlane.xlu0 %1047
    %1049 = vadd.xlane.f32.xlu0 %v987
    %v1050 = vpop.xlane.xlu0 %1049
    %1051 = vadd.xlane.f32.xlu0 %v990
    %v1052 = vpop.xlane.xlu0 %1051
    %1053 = vadd.xlane.f32.xlu0 %v992
    %v1054 = vpop.xlane.xlu0 %1053
    %1055 = vadd.xlane.f32.xlu0 %v995
    %v1056 = vpop.xlane.xlu0 %1055
    %1057 = vadd.xlane.f32.xlu0 %v997
    %v1058 = vpop.xlane.xlu0 %1057
    %1059 = vadd.xlane.f32.xlu0 %v1000
    %v1060 = vpop.xlane.xlu0 %1059
    %1061 = vadd.xlane.f32.xlu0 %v1002
    %v1062 = vpop.xlane.xlu0 %1061
    %1063 = vadd.xlane.f32.xlu0 %v1005
    %v1064 = vpop.xlane.xlu0 %1063
    %1065 = vadd.xlane.f32.xlu0 %v1007
    %v1066 = vpop.xlane.xlu0 %1065
    %1067 = vadd.xlane.f32.xlu0 %v1010
    %v1068 = vpop.xlane.xlu0 %1067
    %1069 = vadd.xlane.f32.xlu0 %v1012
    %v1070 = vpop.xlane.xlu0 %1069
    %1071 = vadd.xlane.f32.xlu0 %v1015
    %v1072 = vpop.xlane.xlu0 %1071
    %1073 = vadd.xlane.f32.xlu0 %v1017
    %v1074 = vpop.xlane.xlu0 %1073
    %1075 = vadd.xlane.f32.xlu0 %v1020
    %v1076 = vpop.xlane.xlu0 %1075
    %1077 = vadd.xlane.f32.xlu0 %v1022
    %v1078 = vpop.xlane.xlu0 %1077
    %1079 = vadd.xlane.f32.xlu0 %v1025
    %v1080 = vpop.xlane.xlu0 %1079
    %1081 = vadd.xlane.f32.xlu0 %v1027
    %v1082 = vpop.xlane.xlu0 %1081
    %1083 = vadd.xlane.f32.xlu0 %v1030
    %v1084 = vpop.xlane.xlu0 %1083
    %1085 = vadd.xlane.f32.xlu0 %v1032
    %v1086 = vpop.xlane.xlu0 %1085
    %1087 = vadd.xlane.f32.xlu0 %v1035
    %v1088 = vpop.xlane.xlu0 %1087
    %1089 = vadd.xlane.f32.xlu0 %v1037
    %v1090 = vpop.xlane.xlu0 %1089
    %1091 = vadd.xlane.f32.xlu0 %v1040
    %v1092 = vpop.xlane.xlu0 %1091
    %v1093 = vmul.f32 %v1044, %v364
    %v1094 = vmul.f32 %v1046, %v364
    %v1095 = vmul.f32 %v1048, %v364
    %v1096 = vmul.f32 %v1050, %v364
    %v1097 = vmul.f32 %v1052, %v364
    %v1098 = vmul.f32 %v1054, %v364
    %v1099 = vmul.f32 %v1056, %v364
    %v1100 = vmul.f32 %v1058, %v364
    %v1101 = vmul.f32 %v1060, %v364
    %v1102 = vmul.f32 %v1062, %v364
    %v1103 = vmul.f32 %v1064, %v364
    %v1104 = vmul.f32 %v1066, %v364
    %v1105 = vmul.f32 %v1068, %v364
    %v1106 = vmul.f32 %v1070, %v364
    %v1107 = vmul.f32 %v1072, %v364
    %v1108 = vmul.f32 %v1074, %v364
    %v1109 = vmul.f32 %v1076, %v364
    %v1110 = vmul.f32 %v1078, %v364
    %v1111 = vmul.f32 %v1080, %v364
    %v1112 = vmul.f32 %v1082, %v364
    %v1113 = vmul.f32 %v1084, %v364
    %v1114 = vmul.f32 %v1086, %v364
    %v1115 = vmul.f32 %v1088, %v364
    %v1116 = vmul.f32 %v1090, %v364
    %v1117 = vmul.f32 %v1092, %v364
    %v1118 = vsub.f32 %v980, %v1093
    %v1119 = vsub.f32 %v982, %v1094
    %v1120 = vsub.f32 %v985, %v1095
    %v1121 = vsub.f32 %v987, %v1096
    %v1122 = vsub.f32 %v990, %v1097
    %v1123 = vsub.f32 %v992, %v1098
    %v1124 = vsub.f32 %v995, %v1099
    %v1125 = vsub.f32 %v997, %v1100
    %v1126 = vsub.f32 %v1000, %v1101
    %v1127 = vsub.f32 %v1002, %v1102
    %v1128 = vsub.f32 %v1005, %v1103
    %v1129 = vsub.f32 %v1007, %v1104
    %v1130 = vsub.f32 %v1010, %v1105
    %v1131 = vsub.f32 %v1012, %v1106
    %v1132 = vsub.f32 %v1015, %v1107
    %v1133 = vsub.f32 %v1017, %v1108
    %v1134 = vsub.f32 %v1020, %v1109
    %v1135 = vsub.f32 %v1022, %v1110
    %v1136 = vsub.f32 %v1025, %v1111
    %v1137 = vsub.f32 %v1027, %v1112
    %v1138 = vsub.f32 %v1030, %v1113
    %v1139 = vsub.f32 %v1032, %v1114
    %v1140 = vsub.f32 %v1035, %v1115
    %v1141 = vsub.f32 %v1037, %v1116
    %v1142 = vsub.f32 %v1040, %v1117
    %v1143 = vmul.f32 %v1118, %v1118
    %v1144 = vmul.f32 %v1119, %v1119
    %v1145 = vmul.f32 %v1120, %v1120
    %v1146 = vmul.f32 %v1121, %v1121
    %v1147 = vmul.f32 %v1122, %v1122
    %v1148 = vmul.f32 %v1123, %v1123
    %v1149 = vmul.f32 %v1124, %v1124
    %v1150 = vmul.f32 %v1125, %v1125
    %v1151 = vmul.f32 %v1126, %v1126
    %v1152 = vmul.f32 %v1127, %v1127
    %v1153 = vmul.f32 %v1128, %v1128
    %v1154 = vmul.f32 %v1129, %v1129
    %v1155 = vmul.f32 %v1130, %v1130
    %v1156 = vmul.f32 %v1131, %v1131
    %v1157 = vmul.f32 %v1132, %v1132
    %v1158 = vmul.f32 %v1133, %v1133
    %v1159 = vmul.f32 %v1134, %v1134
    %v1160 = vmul.f32 %v1135, %v1135
    %v1161 = vmul.f32 %v1136, %v1136
    %v1162 = vmul.f32 %v1137, %v1137
    %v1163 = vmul.f32 %v1138, %v1138
    %v1164 = vmul.f32 %v1139, %v1139
    %v1165 = vmul.f32 %v1140, %v1140
    %v1166 = vmul.f32 %v1141, %v1141
    %v1167 = vmul.f32 %v1142, %v1142
    %1168 = vadd.xlane.f32.xlu0 %v1143
    %v1169 = vpop.xlane.xlu0 %1168
    %1170 = vadd.xlane.f32.xlu0 %v1144
    %v1171 = vpop.xlane.xlu0 %1170
    %1172 = vadd.xlane.f32.xlu0 %v1145
    %v1173 = vpop.xlane.xlu0 %1172
    %1174 = vadd.xlane.f32.xlu0 %v1146
    %v1175 = vpop.xlane.xlu0 %1174
    %1176 = vadd.xlane.f32.xlu0 %v1147
    %v1177 = vpop.xlane.xlu0 %1176
    %1178 = vadd.xlane.f32.xlu0 %v1148
    %v1179 = vpop.xlane.xlu0 %1178
    %1180 = vadd.xlane.f32.xlu0 %v1149
    %v1181 = vpop.xlane.xlu0 %1180
    %1182 = vadd.xlane.f32.xlu0 %v1150
    %v1183 = vpop.xlane.xlu0 %1182
    %1184 = vadd.xlane.f32.xlu0 %v1151
    %v1185 = vpop.xlane.xlu0 %1184
    %1186 = vadd.xlane.f32.xlu0 %v1152
    %v1187 = vpop.xlane.xlu0 %1186
    %1188 = vadd.xlane.f32.xlu0 %v1153
    %v1189 = vpop.xlane.xlu0 %1188
    %1190 = vadd.xlane.f32.xlu0 %v1154
    %v1191 = vpop.xlane.xlu0 %1190
    %1192 = vadd.xlane.f32.xlu0 %v1155
    %v1193 = vpop.xlane.xlu0 %1192
    %1194 = vadd.xlane.f32.xlu0 %v1156
    %v1195 = vpop.xlane.xlu0 %1194
    %1196 = vadd.xlane.f32.xlu0 %v1157
    %v1197 = vpop.xlane.xlu0 %1196
    %1198 = vadd.xlane.f32.xlu0 %v1158
    %v1199 = vpop.xlane.xlu0 %1198
    %1200 = vadd.xlane.f32.xlu0 %v1159
    %v1201 = vpop.xlane.xlu0 %1200
    %1202 = vadd.xlane.f32.xlu0 %v1160
    %v1203 = vpop.xlane.xlu0 %1202
    %1204 = vadd.xlane.f32.xlu0 %v1161
    %v1205 = vpop.xlane.xlu0 %1204
    %1206 = vadd.xlane.f32.xlu0 %v1162
    %v1207 = vpop.xlane.xlu0 %1206
    %1208 = vadd.xlane.f32.xlu0 %v1163
    %v1209 = vpop.xlane.xlu0 %1208
    %1210 = vadd.xlane.f32.xlu0 %v1164
    %v1211 = vpop.xlane.xlu0 %1210
    %1212 = vadd.xlane.f32.xlu0 %v1165
    %v1213 = vpop.xlane.xlu0 %1212
    %1214 = vadd.xlane.f32.xlu0 %v1166
    %v1215 = vpop.xlane.xlu0 %1214
    %1216 = vadd.xlane.f32.xlu0 %v1167
    %v1217 = vpop.xlane.xlu0 %1216
    %v1218 = vmul.f32 %v1169, %v364
    %v1219 = vmul.f32 %v1171, %v364
    %v1220 = vmul.f32 %v1173, %v364
    %v1221 = vmul.f32 %v1175, %v364
    %v1222 = vmul.f32 %v1177, %v364
    %v1223 = vmul.f32 %v1179, %v364
    %v1224 = vmul.f32 %v1181, %v364
    %v1225 = vmul.f32 %v1183, %v364
    %v1226 = vmul.f32 %v1185, %v364
    %v1227 = vmul.f32 %v1187, %v364
    %v1228 = vmul.f32 %v1189, %v364
    %v1229 = vmul.f32 %v1191, %v364
    %v1230 = vmul.f32 %v1193, %v364
    %v1231 = vmul.f32 %v1195, %v364
    %v1232 = vmul.f32 %v1197, %v364
    %v1233 = vmul.f32 %v1199, %v364
    %v1234 = vmul.f32 %v1201, %v364
    %v1235 = vmul.f32 %v1203, %v364
    %v1236 = vmul.f32 %v1205, %v364
    %v1237 = vmul.f32 %v1207, %v364
    %v1238 = vmul.f32 %v1209, %v364
    %v1239 = vmul.f32 %v1211, %v364
    %v1240 = vmul.f32 %v1213, %v364
    %v1241 = vmul.f32 %v1215, %v364
    %v1242 = vmul.f32 %v1217, %v364
    %v1243 = vadd.f32 %v1218, 1e-05
    %v1244 = vadd.f32 %v1219, 1e-05
    %v1245 = vadd.f32 %v1220, 1e-05
    %v1246 = vadd.f32 %v1221, 1e-05
    %v1247 = vadd.f32 %v1222, 1e-05
    %v1248 = vadd.f32 %v1223, 1e-05
    %v1249 = vadd.f32 %v1224, 1e-05
    %v1250 = vadd.f32 %v1225, 1e-05
    %v1251 = vadd.f32 %v1226, 1e-05
    %v1252 = vadd.f32 %v1227, 1e-05
    %v1253 = vadd.f32 %v1228, 1e-05
    %v1254 = vadd.f32 %v1229, 1e-05
    %v1255 = vadd.f32 %v1230, 1e-05
    %v1256 = vadd.f32 %v1231, 1e-05
    %v1257 = vadd.f32 %v1232, 1e-05
    %v1258 = vadd.f32 %v1233, 1e-05
    %v1259 = vadd.f32 %v1234, 1e-05
    %v1260 = vadd.f32 %v1235, 1e-05
    %v1261 = vadd.f32 %v1236, 1e-05
    %v1262 = vadd.f32 %v1237, 1e-05
    %v1263 = vadd.f32 %v1238, 1e-05
    %v1264 = vadd.f32 %v1239, 1e-05
    %v1265 = vadd.f32 %v1240, 1e-05
    %v1266 = vadd.f32 %v1241, 1e-05
    %v1267 = vadd.f32 %v1242, 1e-05
    %v1268 = vrsqrt.pop %v1243
    %v1269 = vmul.f32 %v1268, %v1243
    %v1270 = vmul.f32 %v1269, %v1268
    %v1271 = vmul.f32 0.5, %v1270
    %v1272 = vsub.f32 1.5, %v1271
    %v1273 = vmul.f32 %v1268, %v1272
    %vm1274 = vweird.f32 %v1243
    %vm1275 = vweird.f32 %v1268
    %vm1276 = vmor %vm1274, %vm1275
    %v1277 = vsel %vm1276, %v1268, %v1273
    %v1278 = vrsqrt.pop %v1244
    %v1279 = vmul.f32 %v1278, %v1244
    %v1280 = vmul.f32 %v1279, %v1278
    %v1281 = vmul.f32 0.5, %v1280
    %v1282 = vsub.f32 1.5, %v1281
    %v1283 = vmul.f32 %v1278, %v1282
    %vm1284 = vweird.f32 %v1244
    %vm1285 = vweird.f32 %v1278
    %vm1286 = vmor %vm1284, %vm1285
    %v1287 = vsel %vm1286, %v1278, %v1283
    %v1288 = vrsqrt.pop %v1245
    %v1289 = vmul.f32 %v1288, %v1245
    %v1290 = vmul.f32 %v1289, %v1288
    %v1291 = vmul.f32 0.5, %v1290
    %v1292 = vsub.f32 1.5, %v1291
    %v1293 = vmul.f32 %v1288, %v1292
    %vm1294 = vweird.f32 %v1245
    %vm1295 = vweird.f32 %v1288
    %vm1296 = vmor %vm1294, %vm1295
    %v1297 = vsel %vm1296, %v1288, %v1293
    %v1298 = vrsqrt.pop %v1246
    %v1299 = vmul.f32 %v1298, %v1246
    %v1300 = vmul.f32 %v1299, %v1298
    %v1301 = vmul.f32 0.5, %v1300
    %v1302 = vsub.f32 1.5, %v1301
    %v1303 = vmul.f32 %v1298, %v1302
    %vm1304 = vweird.f32 %v1246
    %vm1305 = vweird.f32 %v1298
    %vm1306 = vmor %vm1304, %vm1305
    %v1307 = vsel %vm1306, %v1298, %v1303
    %v1308 = vrsqrt.pop %v1247
    %v1309 = vmul.f32 %v1308, %v1247
    %v1310 = vmul.f32 %v1309, %v1308
    %v1311 = vmul.f32 0.5, %v1310
    %v1312 = vsub.f32 1.5, %v1311
    %v1313 = vmul.f32 %v1308, %v1312
    %vm1314 = vweird.f32 %v1247
    %vm1315 = vweird.f32 %v1308
    %vm1316 = vmor %vm1314, %vm1315
    %v1317 = vsel %vm1316, %v1308, %v1313
    %v1318 = vrsqrt.pop %v1248
    %v1319 = vmul.f32 %v1318, %v1248
    %v1320 = vmul.f32 %v1319, %v1318
    %v1321 = vmul.f32 0.5, %v1320
    %v1322 = vsub.f32 1.5, %v1321
    %v1323 = vmul.f32 %v1318, %v1322
    %vm1324 = vweird.f32 %v1248
    %vm1325 = vweird.f32 %v1318
    %vm1326 = vmor %vm1324, %vm1325
    %v1327 = vsel %vm1326, %v1318, %v1323
    %v1328 = vrsqrt.pop %v1249
    %v1329 = vmul.f32 %v1328, %v1249
    %v1330 = vmul.f32 %v1329, %v1328
    %v1331 = vmul.f32 0.5, %v1330
    %v1332 = vsub.f32 1.5, %v1331
    %v1333 = vmul.f32 %v1328, %v1332
    %vm1334 = vweird.f32 %v1249
    %vm1335 = vweird.f32 %v1328
    %vm1336 = vmor %vm1334, %vm1335
    %v1337 = vsel %vm1336, %v1328, %v1333
    %v1338 = vrsqrt.pop %v1250
    %v1339 = vmul.f32 %v1338, %v1250
    %v1340 = vmul.f32 %v1339, %v1338
    %v1341 = vmul.f32 0.5, %v1340
    %v1342 = vsub.f32 1.5, %v1341
    %v1343 = vmul.f32 %v1338, %v1342
    %vm1344 = vweird.f32 %v1250
    %vm1345 = vweird.f32 %v1338
    %vm1346 = vmor %vm1344, %vm1345
    %v1347 = vsel %vm1346, %v1338, %v1343
    %v1348 = vrsqrt.pop %v1251
    %v1349 = vmul.f32 %v1348, %v1251
    %v1350 = vmul.f32 %v1349, %v1348
    %v1351 = vmul.f32 0.5, %v1350
    %v1352 = vsub.f32 1.5, %v1351
    %v1353 = vmul.f32 %v1348, %v1352
    %vm1354 = vweird.f32 %v1251
    %vm1355 = vweird.f32 %v1348
    %vm1356 = vmor %vm1354, %vm1355
    %v1357 = vsel %vm1356, %v1348, %v1353
    %v1358 = vrsqrt.pop %v1252
    %v1359 = vmul.f32 %v1358, %v1252
    %v1360 = vmul.f32 %v1359, %v1358
    %v1361 = vmul.f32 0.5, %v1360
    %v1362 = vsub.f32 1.5, %v1361
    %v1363 = vmul.f32 %v1358, %v1362
    %vm1364 = vweird.f32 %v1252
    %vm1365 = vweird.f32 %v1358
    %vm1366 = vmor %vm1364, %vm1365
    %v1367 = vsel %vm1366, %v1358, %v1363
    %v1368 = vrsqrt.pop %v1253
    %v1369 = vmul.f32 %v1368, %v1253
    %v1370 = vmul.f32 %v1369, %v1368
    %v1371 = vmul.f32 0.5, %v1370
    %v1372 = vsub.f32 1.5, %v1371
    %v1373 = vmul.f32 %v1368, %v1372
    %vm1374 = vweird.f32 %v1253
    %vm1375 = vweird.f32 %v1368
    %vm1376 = vmor %vm1374, %vm1375
    %v1377 = vsel %vm1376, %v1368, %v1373
    %v1378 = vrsqrt.pop %v1254
    %v1379 = vmul.f32 %v1378, %v1254
    %v1380 = vmul.f32 %v1379, %v1378
    %v1381 = vmul.f32 0.5, %v1380
    %v1382 = vsub.f32 1.5, %v1381
    %v1383 = vmul.f32 %v1378, %v1382
    %vm1384 = vweird.f32 %v1254
    %vm1385 = vweird.f32 %v1378
    %vm1386 = vmor %vm1384, %vm1385
    %v1387 = vsel %vm1386, %v1378, %v1383
    %v1388 = vrsqrt.pop %v1255
    %v1389 = vmul.f32 %v1388, %v1255
    %v1390 = vmul.f32 %v1389, %v1388
    %v1391 = vmul.f32 0.5, %v1390
    %v1392 = vsub.f32 1.5, %v1391
    %v1393 = vmul.f32 %v1388, %v1392
    %vm1394 = vweird.f32 %v1255
    %vm1395 = vweird.f32 %v1388
    %vm1396 = vmor %vm1394, %vm1395
    %v1397 = vsel %vm1396, %v1388, %v1393
    %v1398 = vrsqrt.pop %v1256
    %v1399 = vmul.f32 %v1398, %v1256
    %v1400 = vmul.f32 %v1399, %v1398
    %v1401 = vmul.f32 0.5, %v1400
    %v1402 = vsub.f32 1.5, %v1401
    %v1403 = vmul.f32 %v1398, %v1402
    %vm1404 = vweird.f32 %v1256
    %vm1405 = vweird.f32 %v1398
    %vm1406 = vmor %vm1404, %vm1405
    %v1407 = vsel %vm1406, %v1398, %v1403
    %v1408 = vrsqrt.pop %v1257
    %v1409 = vmul.f32 %v1408, %v1257
    %v1410 = vmul.f32 %v1409, %v1408
    %v1411 = vmul.f32 0.5, %v1410
    %v1412 = vsub.f32 1.5, %v1411
    %v1413 = vmul.f32 %v1408, %v1412
    %vm1414 = vweird.f32 %v1257
    %vm1415 = vweird.f32 %v1408
    %vm1416 = vmor %vm1414, %vm1415
    %v1417 = vsel %vm1416, %v1408, %v1413
    %v1418 = vrsqrt.pop %v1258
    %v1419 = vmul.f32 %v1418, %v1258
    %v1420 = vmul.f32 %v1419, %v1418
    %v1421 = vmul.f32 0.5, %v1420
    %v1422 = vsub.f32 1.5, %v1421
    %v1423 = vmul.f32 %v1418, %v1422
    %vm1424 = vweird.f32 %v1258
    %vm1425 = vweird.f32 %v1418
    %vm1426 = vmor %vm1424, %vm1425
    %v1427 = vsel %vm1426, %v1418, %v1423
    %v1428 = vrsqrt.pop %v1259
    %v1429 = vmul.f32 %v1428, %v1259
    %v1430 = vmul.f32 %v1429, %v1428
    %v1431 = vmul.f32 0.5, %v1430
    %v1432 = vsub.f32 1.5, %v1431
    %v1433 = vmul.f32 %v1428, %v1432
    %vm1434 = vweird.f32 %v1259
    %vm1435 = vweird.f32 %v1428
    %vm1436 = vmor %vm1434, %vm1435
    %v1437 = vsel %vm1436, %v1428, %v1433
    %v1438 = vrsqrt.pop %v1260
    %v1439 = vmul.f32 %v1438, %v1260
    %v1440 = vmul.f32 %v1439, %v1438
    %v1441 = vmul.f32 0.5, %v1440
    %v1442 = vsub.f32 1.5, %v1441
    %v1443 = vmul.f32 %v1438, %v1442
    %vm1444 = vweird.f32 %v1260
    %vm1445 = vweird.f32 %v1438
    %vm1446 = vmor %vm1444, %vm1445
    %v1447 = vsel %vm1446, %v1438, %v1443
    %v1448 = vrsqrt.pop %v1261
    %v1449 = vmul.f32 %v1448, %v1261
    %v1450 = vmul.f32 %v1449, %v1448
    %v1451 = vmul.f32 0.5, %v1450
    %v1452 = vsub.f32 1.5, %v1451
    %v1453 = vmul.f32 %v1448, %v1452
    %vm1454 = vweird.f32 %v1261
    %vm1455 = vweird.f32 %v1448
    %vm1456 = vmor %vm1454, %vm1455
    %v1457 = vsel %vm1456, %v1448, %v1453
    %v1458 = vrsqrt.pop %v1262
    %v1459 = vmul.f32 %v1458, %v1262
    %v1460 = vmul.f32 %v1459, %v1458
    %v1461 = vmul.f32 0.5, %v1460
    %v1462 = vsub.f32 1.5, %v1461
    %v1463 = vmul.f32 %v1458, %v1462
    %vm1464 = vweird.f32 %v1262
    %vm1465 = vweird.f32 %v1458
    %vm1466 = vmor %vm1464, %vm1465
    %v1467 = vsel %vm1466, %v1458, %v1463
    %v1468 = vrsqrt.pop %v1263
    %v1469 = vmul.f32 %v1468, %v1263
    %v1470 = vmul.f32 %v1469, %v1468
    %v1471 = vmul.f32 0.5, %v1470
    %v1472 = vsub.f32 1.5, %v1471
    %v1473 = vmul.f32 %v1468, %v1472
    %vm1474 = vweird.f32 %v1263
    %vm1475 = vweird.f32 %v1468
    %vm1476 = vmor %vm1474, %vm1475
    %v1477 = vsel %vm1476, %v1468, %v1473
    %v1478 = vrsqrt.pop %v1264
    %v1479 = vmul.f32 %v1478, %v1264
    %v1480 = vmul.f32 %v1479, %v1478
    %v1481 = vmul.f32 0.5, %v1480
    %v1482 = vsub.f32 1.5, %v1481
    %v1483 = vmul.f32 %v1478, %v1482
    %vm1484 = vweird.f32 %v1264
    %vm1485 = vweird.f32 %v1478
    %vm1486 = vmor %vm1484, %vm1485
    %v1487 = vsel %vm1486, %v1478, %v1483
    %v1488 = vrsqrt.pop %v1265
    %v1489 = vmul.f32 %v1488, %v1265
    %v1490 = vmul.f32 %v1489, %v1488
    %v1491 = vmul.f32 0.5, %v1490
    %v1492 = vsub.f32 1.5, %v1491
    %v1493 = vmul.f32 %v1488, %v1492
    %vm1494 = vweird.f32 %v1265
    %vm1495 = vweird.f32 %v1488
    %vm1496 = vmor %vm1494, %vm1495
    %v1497 = vsel %vm1496, %v1488, %v1493
    %v1498 = vrsqrt.pop %v1266
    %v1499 = vmul.f32 %v1498, %v1266
    %v1500 = vmul.f32 %v1499, %v1498
    %v1501 = vmul.f32 0.5, %v1500
    %v1502 = vsub.f32 1.5, %v1501
    %v1503 = vmul.f32 %v1498, %v1502
    %vm1504 = vweird.f32 %v1266
    %vm1505 = vweird.f32 %v1498
    %vm1506 = vmor %vm1504, %vm1505
    %v1507 = vsel %vm1506, %v1498, %v1503
    %v1508 = vrsqrt.pop %v1267
    %v1509 = vmul.f32 %v1508, %v1267
    %v1510 = vmul.f32 %v1509, %v1508
    %v1511 = vmul.f32 0.5, %v1510
    %v1512 = vsub.f32 1.5, %v1511
    %v1513 = vmul.f32 %v1508, %v1512
    %vm1514 = vweird.f32 %v1267
    %vm1515 = vweird.f32 %v1508
    %vm1516 = vmor %vm1514, %vm1515
    %v1517 = vsel %vm1516, %v1508, %v1513
    %v1518 = vmul.f32 %v1118, %v1277
    %v1519 = vmul.f32 %v1119, %v1287
    %v1520 = vmul.f32 %v1120, %v1297
    %v1521 = vmul.f32 %v1121, %v1307
    %v1522 = vmul.f32 %v1122, %v1317
    %v1523 = vmul.f32 %v1123, %v1327
    %v1524 = vmul.f32 %v1124, %v1337
    %v1525 = vmul.f32 %v1125, %v1347
    %v1526 = vmul.f32 %v1126, %v1357
    %v1527 = vmul.f32 %v1127, %v1367
    %v1528 = vmul.f32 %v1128, %v1377
    %v1529 = vmul.f32 %v1129, %v1387
    %v1530 = vmul.f32 %v1130, %v1397
    %v1531 = vmul.f32 %v1131, %v1407
    %v1532 = vmul.f32 %v1132, %v1417
    %v1533 = vmul.f32 %v1133, %v1427
    %v1534 = vmul.f32 %v1134, %v1437
    %v1535 = vmul.f32 %v1135, %v1447
    %v1536 = vmul.f32 %v1136, %v1457
    %v1537 = vmul.f32 %v1137, %v1467
    %v1538 = vmul.f32 %v1138, %v1477
    %v1539 = vmul.f32 %v1139, %v1487
    %v1540 = vmul.f32 %v1140, %v1497
    %v1541 = vmul.f32 %v1141, %v1507
    %v1542 = vmul.f32 %v1142, %v1517
    %v1543 = vperm.slane %v72, 4
    %v1544 = vmul.f32 %v1518, %v1543
    %v1545 = vmul.f32 %v1519, %v1543
    %v1546 = vmul.f32 %v1520, %v1543
    %v1547 = vmul.f32 %v1521, %v1543
    %v1548 = vmul.f32 %v1522, %v1543
    %v1549 = vmul.f32 %v1523, %v1543
    %v1550 = vmul.f32 %v1524, %v1543
    %v1551 = vmul.f32 %v1525, %v1543
    %v1552 = vmul.f32 %v1526, %v1543
    %v1553 = vmul.f32 %v1527, %v1543
    %v1554 = vmul.f32 %v1528, %v1543
    %v1555 = vmul.f32 %v1529, %v1543
    %v1556 = vmul.f32 %v1530, %v1543
    %v1557 = vmul.f32 %v1531, %v1543
    %v1558 = vmul.f32 %v1532, %v1543
    %v1559 = vmul.f32 %v1533, %v1543
    %v1560 = vmul.f32 %v1534, %v1543
    %v1561 = vmul.f32 %v1535, %v1543
    %v1562 = vmul.f32 %v1536, %v1543
    %v1563 = vmul.f32 %v1537, %v1543
    %v1564 = vmul.f32 %v1538, %v1543
    %v1565 = vmul.f32 %v1539, %v1543
    %v1566 = vmul.f32 %v1540, %v1543
    %v1567 = vmul.f32 %v1541, %v1543
    %v1568 = vmul.f32 %v1542, %v1543
    %v1569 = vperm.slane %v72, 5
    %v1570 = vadd.f32 %v1544, %v1569
    %v1571 = vadd.f32 %v1545, %v1569
    %v1572 = vadd.f32 %v1546, %v1569
    %v1573 = vadd.f32 %v1547, %v1569
    %v1574 = vadd.f32 %v1548, %v1569
    %v1575 = vadd.f32 %v1549, %v1569
    %v1576 = vadd.f32 %v1550, %v1569
    %v1577 = vadd.f32 %v1551, %v1569
    %v1578 = vadd.f32 %v1552, %v1569
    %v1579 = vadd.f32 %v1553, %v1569
    %v1580 = vadd.f32 %v1554, %v1569
    %v1581 = vadd.f32 %v1555, %v1569
    %v1582 = vadd.f32 %v1556, %v1569
    %v1583 = vadd.f32 %v1557, %v1569
    %v1584 = vadd.f32 %v1558, %v1569
    %v1585 = vadd.f32 %v1559, %v1569
    %v1586 = vadd.f32 %v1560, %v1569
    %v1587 = vadd.f32 %v1561, %v1569
    %v1588 = vadd.f32 %v1562, %v1569
    %v1589 = vadd.f32 %v1563, %v1569
    %v1590 = vadd.f32 %v1564, %v1569
    %v1591 = vadd.f32 %v1565, %v1569
    %v1592 = vadd.f32 %v1566, %v1569
    %v1593 = vadd.f32 %v1567, %v1569
    %v1594 = vadd.f32 %v1568, %v1569
    %v1595 = vmax.f32 %v1570, 0.0
    %v1596 = vmax.f32 %v1571, 0.0
    %v1597 = vmax.f32 %v1572, 0.0
    %v1598 = vmax.f32 %v1573, 0.0
    %v1599 = vmax.f32 %v1574, 0.0
    %v1600 = vmax.f32 %v1575, 0.0
    %v1601 = vmax.f32 %v1576, 0.0
    %v1602 = vmax.f32 %v1577, 0.0
    %v1603 = vmax.f32 %v1578, 0.0
    %v1604 = vmax.f32 %v1579, 0.0
    %v1605 = vmax.f32 %v1580, 0.0
    %v1606 = vmax.f32 %v1581, 0.0
    %v1607 = vmax.f32 %v1582, 0.0
    %v1608 = vmax.f32 %v1583, 0.0
    %v1609 = vmax.f32 %v1584, 0.0
    %v1610 = vmax.f32 %v1585, 0.0
    %v1611 = vmax.f32 %v1586, 0.0
    %v1612 = vmax.f32 %v1587, 0.0
    %v1613 = vmax.f32 %v1588, 0.0
    %v1614 = vmax.f32 %v1589, 0.0
    %v1615 = vmax.f32 %v1590, 0.0
    %v1616 = vmax.f32 %v1591, 0.0
    %v1617 = vmax.f32 %v1592, 0.0
    %v1618 = vmax.f32 %v1593, 0.0
    %v1619 = vmax.f32 %v1594, 0.0
    %v1620 = vld [vmem:[%s3] sm:$0xff]
    %v1621 = vld [vmem:[%s3 + $0x8] sm:$0xff]
    %v1622 = vld [vmem:[%s3 + $0x10] sm:$0xff]
    %v1623 = vld [vmem:[%s3 + $0x18] sm:$0xff]
    %v1624 = vld [vmem:[%s3 + $0x20] sm:$0xff]
    %v1625 = vld [vmem:[%s3 + $0x28] sm:$0xff]
    %v1626 = vld [vmem:[%s3 + $0x30] sm:$0xff]
    %v1627 = vld [vmem:[%s3 + $0x38] sm:$0xff]
    %v1628 = vld [vmem:[%s3 + $0x40] sm:$0xff]
    %v1629 = vld [vmem:[%s3 + $0x48] sm:$0xff]
    %v1630 = vld [vmem:[%s3 + $0x50] sm:$0xff]
    %v1631 = vld [vmem:[%s3 + $0x58] sm:$0xff]
    %v1632 = vld [vmem:[%s3 + $0x60] sm:$0xff]
    %v1633 = vld [vmem:[%s3 + $0x68] sm:$0xff]
    %v1634 = vld [vmem:[%s3 + $0x70] sm:$0xff]
    %v1635 = vld [vmem:[%s3 + $0x78] sm:$0xff]
    %v1636 = vpack.c.bf16 %v1596, %v1595
    %v1637 = vpack.c.bf16 %v1598, %v1597
    %v1638 = vpack.c.bf16 %v1600, %v1599
    %v1639 = vpack.c.bf16 %v1602, %v1601
    %v1640 = vpack.c.bf16 %v1604, %v1603
    %v1641 = vpack.c.bf16 %v1606, %v1605
    %v1642 = vpack.c.bf16 %v1608, %v1607
    %v1643 = vpack.c.bf16 %v1610, %v1609
    %v1644 = vpack.c.bf16 %v1612, %v1611
    %v1645 = vpack.c.bf16 %v1614, %v1613
    %v1646 = vpack.c.bf16 %v1616, %v1615
    %v1647 = vpack.c.bf16 %v1618, %v1617
    %v1648 = vpack.c.bf16 %v1619, %v1619
    %v1665 = vunpack.c.l.b16 %v1620
    %v1666 = vunpack.c.h.b16 %v1620
    %v1667 = vunpack.c.l.b16 %v1621
    %v1668 = vunpack.c.h.b16 %v1621
    %v1669 = vunpack.c.l.b16 %v1622
    %v1670 = vunpack.c.h.b16 %v1622
    %v1671 = vunpack.c.l.b16 %v1623
    %v1672 = vunpack.c.h.b16 %v1623
    %v1673 = vunpack.c.l.b16 %v1624
    %v1674 = vunpack.c.h.b16 %v1624
    %v1675 = vunpack.c.l.b16 %v1625
    %v1676 = vunpack.c.h.b16 %v1625
    %v1677 = vunpack.c.l.b16 %v1626
    %v1678 = vunpack.c.h.b16 %v1626
    %v1679 = vunpack.c.l.b16 %v1627
    %v1680 = vunpack.c.h.b16 %v1627
    %v1681 = vunpack.c.l.b16 %v1628
    %v1682 = vunpack.c.h.b16 %v1628
    %v1683 = vunpack.c.l.b16 %v1629
    %v1684 = vunpack.c.h.b16 %v1629
    %v1685 = vunpack.c.l.b16 %v1630
    %v1686 = vunpack.c.h.b16 %v1630
    %v1687 = vunpack.c.l.b16 %v1631
    %v1688 = vunpack.c.h.b16 %v1631
    %v1689 = vunpack.c.l.b16 %v1632
    %v1690 = vunpack.c.h.b16 %v1632
    %v1691 = vunpack.c.l.b16 %v1633
    %v1692 = vunpack.c.h.b16 %v1633
    %v1693 = vunpack.c.l.b16 %v1634
    %v1694 = vunpack.c.h.b16 %v1634
    %v1695 = vunpack.c.l.b16 %v1635
    %v1696 = vunpack.c.h.b16 %v1635
    %v1697 = vpack.c.b16 %v1667, %v1665
    %v1698 = vpack.c.b16 %v1668, %v1666
    %v1699 = vpack.c.b16 %v1671, %v1669
    %v1700 = vpack.c.b16 %v1672, %v1670
    %v1701 = vpack.c.b16 %v1675, %v1673
    %v1702 = vpack.c.b16 %v1676, %v1674
    %v1703 = vpack.c.b16 %v1679, %v1677
    %v1704 = vpack.c.b16 %v1680, %v1678
    %v1705 = vpack.c.b16 %v1683, %v1681
    %v1706 = vpack.c.b16 %v1684, %v1682
    %v1707 = vpack.c.b16 %v1687, %v1685
    %v1708 = vpack.c.b16 %v1688, %v1686
    %v1709 = vpack.c.b16 %v1691, %v1689
    %v1710 = vpack.c.b16 %v1692, %v1690
    %v1711 = vpack.c.b16 %v1695, %v1693
    %v1712 = vpack.c.b16 %v1696, %v1694
    %1729 = vmatpush.bf16.msra.mxu0 %v1711
    %1730 = vmatpush.bf16.msra.mxu0 %v1709
    %1731 = vmatpush.bf16.msra.mxu0 %v1707
    %1732 = vmatpush.bf16.msra.mxu0 %v1705
    %1733 = vmatpush.bf16.msra.mxu0 %v1703
    %1734 = vmatpush.bf16.msra.mxu0 %v1701
    %1735 = vmatpush.bf16.msra.mxu0 %v1699
    %1736 = vmatpush.bf16.msra.mxu0 %v1697
    %1737 = vmatmul.bf16.gmra.mxu0 %v1636
    %v1738 = vpop.f32.mrf.mxu0
    %v1739 = vadd.f32 0.0, %v1738
    %v1740 = vpop.f32.mrf.mxu0
    %v1741 = vadd.f32 0.0, %v1740
    %1742 = vmatmul.bf16.gmra.mxu0 %v1637
    %v1743 = vpop.f32.mrf.mxu0
    %v1744 = vadd.f32 0.0, %v1743
    %v1745 = vpop.f32.mrf.mxu0
    %v1746 = vadd.f32 0.0, %v1745
    %1747 = vmatmul.bf16.gmra.mxu0 %v1638
    %v1748 = vpop.f32.mrf.mxu0
    %v1749 = vadd.f32 0.0, %v1748
    %v1750 = vpop.f32.mrf.mxu0
    %v1751 = vadd.f32 0.0, %v1750
    %1752 = vmatmul.bf16.gmra.mxu0 %v1639
    %v1753 = vpop.f32.mrf.mxu0
    %v1754 = vadd.f32 0.0, %v1753
    %v1755 = vpop.f32.mrf.mxu0
    %v1756 = vadd.f32 0.0, %v1755
    %1757 = vmatmul.bf16.gmra.mxu0 %v1640
    %v1758 = vpop.f32.mrf.mxu0
    %v1759 = vadd.f32 0.0, %v1758
    %v1760 = vpop.f32.mrf.mxu0
    %v1761 = vadd.f32 0.0, %v1760
    %1762 = vmatmul.bf16.gmra.mxu0 %v1641
    %v1763 = vpop.f32.mrf.mxu0
    %v1764 = vadd.f32 0.0, %v1763
    %v1765 = vpop.f32.mrf.mxu0
    %v1766 = vadd.f32 0.0, %v1765
    %1767 = vmatmul.bf16.gmra.mxu0 %v1642
    %v1768 = vpop.f32.mrf.mxu0
    %v1769 = vadd.f32 0.0, %v1768
    %v1770 = vpop.f32.mrf.mxu0
    %v1771 = vadd.f32 0.0, %v1770
    %1772 = vmatmul.bf16.gmra.mxu0 %v1643
    %v1773 = vpop.f32.mrf.mxu0
    %v1774 = vadd.f32 0.0, %v1773
    %v1775 = vpop.f32.mrf.mxu0
    %v1776 = vadd.f32 0.0, %v1775
    %1777 = vmatmul.bf16.gmra.mxu0 %v1644
    %v1778 = vpop.f32.mrf.mxu0
    %v1779 = vadd.f32 0.0, %v1778
    %v1780 = vpop.f32.mrf.mxu0
    %v1781 = vadd.f32 0.0, %v1780
    %1782 = vmatmul.bf16.gmra.mxu0 %v1645
    %v1783 = vpop.f32.mrf.mxu0
    %v1784 = vadd.f32 0.0, %v1783
    %v1785 = vpop.f32.mrf.mxu0
    %v1786 = vadd.f32 0.0, %v1785
    %1787 = vmatmul.bf16.gmra.mxu0 %v1646
    %v1788 = vpop.f32.mrf.mxu0
    %v1789 = vadd.f32 0.0, %v1788
    %v1790 = vpop.f32.mrf.mxu0
    %v1791 = vadd.f32 0.0, %v1790
    %1792 = vmatmul.bf16.gmra.mxu0 %v1647
    %v1793 = vpop.f32.mrf.mxu0
    %v1794 = vadd.f32 0.0, %v1793
    %v1795 = vpop.f32.mrf.mxu0
    %v1796 = vadd.f32 0.0, %v1795
    %1797 = vmatmul.bf16.gmra.mxu0 %v1648
    %v1798 = vpop.f32.mrf.mxu0
    %v1799 = vadd.f32 0.0, %v1798
    %v1800 = vpop.f32.mrf.mxu0
    %1801 = vdwg.mxu0
    %1802 = vmatpush.bf16.msra.mxu0 %v1712
    %1803 = vmatpush.bf16.msra.mxu0 %v1710
    %1804 = vmatpush.bf16.msra.mxu0 %v1708
    %1805 = vmatpush.bf16.msra.mxu0 %v1706
    %1806 = vmatpush.bf16.msra.mxu0 %v1704
    %1807 = vmatpush.bf16.msra.mxu0 %v1702
    %1808 = vmatpush.bf16.msra.mxu0 %v1700
    %1809 = vmatpush.bf16.msra.mxu0 %v1698
    %1810 = vmatmul.bf16.gmra.mxu0 %v1636
    %v1811 = vpop.f32.mrf.mxu0
    %v1812 = vadd.f32 0.0, %v1811
    %v1813 = vpop.f32.mrf.mxu0
    %v1814 = vadd.f32 0.0, %v1813
    %1815 = vmatmul.bf16.gmra.mxu0 %v1637
    %v1816 = vpop.f32.mrf.mxu0
    %v1817 = vadd.f32 0.0, %v1816
    %v1818 = vpop.f32.mrf.mxu0
    %v1819 = vadd.f32 0.0, %v1818
    %1820 = vmatmul.bf16.gmra.mxu0 %v1638
    %v1821 = vpop.f32.mrf.mxu0
    %v1822 = vadd.f32 0.0, %v1821
    %v1823 = vpop.f32.mrf.mxu0
    %v1824 = vadd.f32 0.0, %v1823
    %1825 = vmatmul.bf16.gmra.mxu0 %v1639
    %v1826 = vpop.f32.mrf.mxu0
    %v1827 = vadd.f32 0.0, %v1826
    %v1828 = vpop.f32.mrf.mxu0
    %v1829 = vadd.f32 0.0, %v1828
    %1830 = vmatmul.bf16.gmra.mxu0 %v1640
    %v1831 = vpop.f32.mrf.mxu0
    %v1832 = vadd.f32 0.0, %v1831
    %v1833 = vpop.f32.mrf.mxu0
    %v1834 = vadd.f32 0.0, %v1833
    %1835 = vmatmul.bf16.gmra.mxu0 %v1641
    %v1836 = vpop.f32.mrf.mxu0
    %v1837 = vadd.f32 0.0, %v1836
    %v1838 = vpop.f32.mrf.mxu0
    %v1839 = vadd.f32 0.0, %v1838
    %1840 = vmatmul.bf16.gmra.mxu0 %v1642
    %v1841 = vpop.f32.mrf.mxu0
    %v1842 = vadd.f32 0.0, %v1841
    %v1843 = vpop.f32.mrf.mxu0
    %v1844 = vadd.f32 0.0, %v1843
    %1845 = vmatmul.bf16.gmra.mxu0 %v1643
    %v1846 = vpop.f32.mrf.mxu0
    %v1847 = vadd.f32 0.0, %v1846
    %v1848 = vpop.f32.mrf.mxu0
    %v1849 = vadd.f32 0.0, %v1848
    %1850 = vmatmul.bf16.gmra.mxu0 %v1644
    %v1851 = vpop.f32.mrf.mxu0
    %v1852 = vadd.f32 0.0, %v1851
    %v1853 = vpop.f32.mrf.mxu0
    %v1854 = vadd.f32 0.0, %v1853
    %1855 = vmatmul.bf16.gmra.mxu0 %v1645
    %v1856 = vpop.f32.mrf.mxu0
    %v1857 = vadd.f32 0.0, %v1856
    %v1858 = vpop.f32.mrf.mxu0
    %v1859 = vadd.f32 0.0, %v1858
    %1860 = vmatmul.bf16.gmra.mxu0 %v1646
    %v1861 = vpop.f32.mrf.mxu0
    %v1862 = vadd.f32 0.0, %v1861
    %v1863 = vpop.f32.mrf.mxu0
    %v1864 = vadd.f32 0.0, %v1863
    %1865 = vmatmul.bf16.gmra.mxu0 %v1647
    %v1866 = vpop.f32.mrf.mxu0
    %v1867 = vadd.f32 0.0, %v1866
    %v1868 = vpop.f32.mrf.mxu0
    %v1869 = vadd.f32 0.0, %v1868
    %1870 = vmatmul.bf16.gmra.mxu0 %v1648
    %v1871 = vpop.f32.mrf.mxu0
    %v1872 = vadd.f32 0.0, %v1871
    %v1873 = vpop.f32.mrf.mxu0
    %1874 = vdwg.mxu0
    %v1875 = vperm.slane %v72, 6
    %v1876 = vadd.f32 %v1739, %v1875
    %v1877 = vadd.f32 %v1741, %v1875
    %v1878 = vadd.f32 %v1744, %v1875
    %v1879 = vadd.f32 %v1746, %v1875
    %v1880 = vadd.f32 %v1749, %v1875
    %v1881 = vadd.f32 %v1751, %v1875
    %v1882 = vadd.f32 %v1754, %v1875
    %v1883 = vadd.f32 %v1756, %v1875
    %v1884 = vadd.f32 %v1759, %v1875
    %v1885 = vadd.f32 %v1761, %v1875
    %v1886 = vadd.f32 %v1764, %v1875
    %v1887 = vadd.f32 %v1766, %v1875
    %v1888 = vadd.f32 %v1769, %v1875
    %v1889 = vadd.f32 %v1771, %v1875
    %v1890 = vadd.f32 %v1774, %v1875
    %v1891 = vadd.f32 %v1776, %v1875
    %v1892 = vadd.f32 %v1779, %v1875
    %v1893 = vadd.f32 %v1781, %v1875
    %v1894 = vadd.f32 %v1784, %v1875
    %v1895 = vadd.f32 %v1786, %v1875
    %v1896 = vadd.f32 %v1789, %v1875
    %v1897 = vadd.f32 %v1791, %v1875
    %v1898 = vadd.f32 %v1794, %v1875
    %v1899 = vadd.f32 %v1796, %v1875
    %v1900 = vadd.f32 %v1799, %v1875
    %1901 = vadd.xlane.f32.xlu0 %v1876
    %v1902 = vpop.xlane.xlu0 %1901
    %1903 = vadd.xlane.f32.xlu0 %v1877
    %v1904 = vpop.xlane.xlu0 %1903
    %1905 = vadd.xlane.f32.xlu0 %v1878
    %v1906 = vpop.xlane.xlu0 %1905
    %1907 = vadd.xlane.f32.xlu0 %v1879
    %v1908 = vpop.xlane.xlu0 %1907
    %1909 = vadd.xlane.f32.xlu0 %v1880
    %v1910 = vpop.xlane.xlu0 %1909
    %1911 = vadd.xlane.f32.xlu0 %v1881
    %v1912 = vpop.xlane.xlu0 %1911
    %1913 = vadd.xlane.f32.xlu0 %v1882
    %v1914 = vpop.xlane.xlu0 %1913
    %1915 = vadd.xlane.f32.xlu0 %v1883
    %v1916 = vpop.xlane.xlu0 %1915
    %1917 = vadd.xlane.f32.xlu0 %v1884
    %v1918 = vpop.xlane.xlu0 %1917
    %1919 = vadd.xlane.f32.xlu0 %v1885
    %v1920 = vpop.xlane.xlu0 %1919
    %1921 = vadd.xlane.f32.xlu0 %v1886
    %v1922 = vpop.xlane.xlu0 %1921
    %1923 = vadd.xlane.f32.xlu0 %v1887
    %v1924 = vpop.xlane.xlu0 %1923
    %1925 = vadd.xlane.f32.xlu0 %v1888
    %v1926 = vpop.xlane.xlu0 %1925
    %1927 = vadd.xlane.f32.xlu0 %v1889
    %v1928 = vpop.xlane.xlu0 %1927
    %1929 = vadd.xlane.f32.xlu0 %v1890
    %v1930 = vpop.xlane.xlu0 %1929
    %1931 = vadd.xlane.f32.xlu0 %v1891
    %v1932 = vpop.xlane.xlu0 %1931
    %1933 = vadd.xlane.f32.xlu0 %v1892
    %v1934 = vpop.xlane.xlu0 %1933
    %1935 = vadd.xlane.f32.xlu0 %v1893
    %v1936 = vpop.xlane.xlu0 %1935
    %1937 = vadd.xlane.f32.xlu0 %v1894
    %v1938 = vpop.xlane.xlu0 %1937
    %1939 = vadd.xlane.f32.xlu0 %v1895
    %v1940 = vpop.xlane.xlu0 %1939
    %1941 = vadd.xlane.f32.xlu0 %v1896
    %v1942 = vpop.xlane.xlu0 %1941
    %1943 = vadd.xlane.f32.xlu0 %v1897
    %v1944 = vpop.xlane.xlu0 %1943
    %1945 = vadd.xlane.f32.xlu0 %v1898
    %v1946 = vpop.xlane.xlu0 %1945
    %1947 = vadd.xlane.f32.xlu0 %v1899
    %v1948 = vpop.xlane.xlu0 %1947
    %1949 = vadd.xlane.f32.xlu0 %v1900
    %v1950 = vpop.xlane.xlu0 %1949
    %v1951 = vmul.f32 %v1902, %v364
    %v1952 = vmul.f32 %v1904, %v364
    %v1953 = vmul.f32 %v1906, %v364
    %v1954 = vmul.f32 %v1908, %v364
    %v1955 = vmul.f32 %v1910, %v364
    %v1956 = vmul.f32 %v1912, %v364
    %v1957 = vmul.f32 %v1914, %v364
    %v1958 = vmul.f32 %v1916, %v364
    %v1959 = vmul.f32 %v1918, %v364
    %v1960 = vmul.f32 %v1920, %v364
    %v1961 = vmul.f32 %v1922, %v364
    %v1962 = vmul.f32 %v1924, %v364
    %v1963 = vmul.f32 %v1926, %v364
    %v1964 = vmul.f32 %v1928, %v364
    %v1965 = vmul.f32 %v1930, %v364
    %v1966 = vmul.f32 %v1932, %v364
    %v1967 = vmul.f32 %v1934, %v364
    %v1968 = vmul.f32 %v1936, %v364
    %v1969 = vmul.f32 %v1938, %v364
    %v1970 = vmul.f32 %v1940, %v364
    %v1971 = vmul.f32 %v1942, %v364
    %v1972 = vmul.f32 %v1944, %v364
    %v1973 = vmul.f32 %v1946, %v364
    %v1974 = vmul.f32 %v1948, %v364
    %v1975 = vmul.f32 %v1950, %v364
    %v1976 = vsub.f32 %v1876, %v1951
    %v1977 = vsub.f32 %v1877, %v1952
    %v1978 = vsub.f32 %v1878, %v1953
    %v1979 = vsub.f32 %v1879, %v1954
    %v1980 = vsub.f32 %v1880, %v1955
    %v1981 = vsub.f32 %v1881, %v1956
    %v1982 = vsub.f32 %v1882, %v1957
    %v1983 = vsub.f32 %v1883, %v1958
    %v1984 = vsub.f32 %v1884, %v1959
    %v1985 = vsub.f32 %v1885, %v1960
    %v1986 = vsub.f32 %v1886, %v1961
    %v1987 = vsub.f32 %v1887, %v1962
    %v1988 = vsub.f32 %v1888, %v1963
    %v1989 = vsub.f32 %v1889, %v1964
    %v1990 = vsub.f32 %v1890, %v1965
    %v1991 = vsub.f32 %v1891, %v1966
    %v1992 = vsub.f32 %v1892, %v1967
    %v1993 = vsub.f32 %v1893, %v1968
    %v1994 = vsub.f32 %v1894, %v1969
    %v1995 = vsub.f32 %v1895, %v1970
    %v1996 = vsub.f32 %v1896, %v1971
    %v1997 = vsub.f32 %v1897, %v1972
    %v1998 = vsub.f32 %v1898, %v1973
    %v1999 = vsub.f32 %v1899, %v1974
    %v2000 = vsub.f32 %v1900, %v1975
    %v2001 = vmul.f32 %v1976, %v1976
    %v2002 = vmul.f32 %v1977, %v1977
    %v2003 = vmul.f32 %v1978, %v1978
    %v2004 = vmul.f32 %v1979, %v1979
    %v2005 = vmul.f32 %v1980, %v1980
    %v2006 = vmul.f32 %v1981, %v1981
    %v2007 = vmul.f32 %v1982, %v1982
    %v2008 = vmul.f32 %v1983, %v1983
    %v2009 = vmul.f32 %v1984, %v1984
    %v2010 = vmul.f32 %v1985, %v1985
    %v2011 = vmul.f32 %v1986, %v1986
    %v2012 = vmul.f32 %v1987, %v1987
    %v2013 = vmul.f32 %v1988, %v1988
    %v2014 = vmul.f32 %v1989, %v1989
    %v2015 = vmul.f32 %v1990, %v1990
    %v2016 = vmul.f32 %v1991, %v1991
    %v2017 = vmul.f32 %v1992, %v1992
    %v2018 = vmul.f32 %v1993, %v1993
    %v2019 = vmul.f32 %v1994, %v1994
    %v2020 = vmul.f32 %v1995, %v1995
    %v2021 = vmul.f32 %v1996, %v1996
    %v2022 = vmul.f32 %v1997, %v1997
    %v2023 = vmul.f32 %v1998, %v1998
    %v2024 = vmul.f32 %v1999, %v1999
    %v2025 = vmul.f32 %v2000, %v2000
    %2026 = vadd.xlane.f32.xlu0 %v2001
    %v2027 = vpop.xlane.xlu0 %2026
    %2028 = vadd.xlane.f32.xlu0 %v2002
    %v2029 = vpop.xlane.xlu0 %2028
    %2030 = vadd.xlane.f32.xlu0 %v2003
    %v2031 = vpop.xlane.xlu0 %2030
    %2032 = vadd.xlane.f32.xlu0 %v2004
    %v2033 = vpop.xlane.xlu0 %2032
    %2034 = vadd.xlane.f32.xlu0 %v2005
    %v2035 = vpop.xlane.xlu0 %2034
    %2036 = vadd.xlane.f32.xlu0 %v2006
    %v2037 = vpop.xlane.xlu0 %2036
    %2038 = vadd.xlane.f32.xlu0 %v2007
    %v2039 = vpop.xlane.xlu0 %2038
    %2040 = vadd.xlane.f32.xlu0 %v2008
    %v2041 = vpop.xlane.xlu0 %2040
    %2042 = vadd.xlane.f32.xlu0 %v2009
    %v2043 = vpop.xlane.xlu0 %2042
    %2044 = vadd.xlane.f32.xlu0 %v2010
    %v2045 = vpop.xlane.xlu0 %2044
    %2046 = vadd.xlane.f32.xlu0 %v2011
    %v2047 = vpop.xlane.xlu0 %2046
    %2048 = vadd.xlane.f32.xlu0 %v2012
    %v2049 = vpop.xlane.xlu0 %2048
    %2050 = vadd.xlane.f32.xlu0 %v2013
    %v2051 = vpop.xlane.xlu0 %2050
    %2052 = vadd.xlane.f32.xlu0 %v2014
    %v2053 = vpop.xlane.xlu0 %2052
    %2054 = vadd.xlane.f32.xlu0 %v2015
    %v2055 = vpop.xlane.xlu0 %2054
    %2056 = vadd.xlane.f32.xlu0 %v2016
    %v2057 = vpop.xlane.xlu0 %2056
    %2058 = vadd.xlane.f32.xlu0 %v2017
    %v2059 = vpop.xlane.xlu0 %2058
    %2060 = vadd.xlane.f32.xlu0 %v2018
    %v2061 = vpop.xlane.xlu0 %2060
    %2062 = vadd.xlane.f32.xlu0 %v2019
    %v2063 = vpop.xlane.xlu0 %2062
    %2064 = vadd.xlane.f32.xlu0 %v2020
    %v2065 = vpop.xlane.xlu0 %2064
    %2066 = vadd.xlane.f32.xlu0 %v2021
    %v2067 = vpop.xlane.xlu0 %2066
    %2068 = vadd.xlane.f32.xlu0 %v2022
    %v2069 = vpop.xlane.xlu0 %2068
    %2070 = vadd.xlane.f32.xlu0 %v2023
    %v2071 = vpop.xlane.xlu0 %2070
    %2072 = vadd.xlane.f32.xlu0 %v2024
    %v2073 = vpop.xlane.xlu0 %2072
    %2074 = vadd.xlane.f32.xlu0 %v2025
    %v2075 = vpop.xlane.xlu0 %2074
    %v2076 = vmul.f32 %v2027, %v364
    %v2077 = vmul.f32 %v2029, %v364
    %v2078 = vmul.f32 %v2031, %v364
    %v2079 = vmul.f32 %v2033, %v364
    %v2080 = vmul.f32 %v2035, %v364
    %v2081 = vmul.f32 %v2037, %v364
    %v2082 = vmul.f32 %v2039, %v364
    %v2083 = vmul.f32 %v2041, %v364
    %v2084 = vmul.f32 %v2043, %v364
    %v2085 = vmul.f32 %v2045, %v364
    %v2086 = vmul.f32 %v2047, %v364
    %v2087 = vmul.f32 %v2049, %v364
    %v2088 = vmul.f32 %v2051, %v364
    %v2089 = vmul.f32 %v2053, %v364
    %v2090 = vmul.f32 %v2055, %v364
    %v2091 = vmul.f32 %v2057, %v364
    %v2092 = vmul.f32 %v2059, %v364
    %v2093 = vmul.f32 %v2061, %v364
    %v2094 = vmul.f32 %v2063, %v364
    %v2095 = vmul.f32 %v2065, %v364
    %v2096 = vmul.f32 %v2067, %v364
    %v2097 = vmul.f32 %v2069, %v364
    %v2098 = vmul.f32 %v2071, %v364
    %v2099 = vmul.f32 %v2073, %v364
    %v2100 = vmul.f32 %v2075, %v364
    %v2101 = vadd.f32 %v2076, 1e-05
    %v2102 = vadd.f32 %v2077, 1e-05
    %v2103 = vadd.f32 %v2078, 1e-05
    %v2104 = vadd.f32 %v2079, 1e-05
    %v2105 = vadd.f32 %v2080, 1e-05
    %v2106 = vadd.f32 %v2081, 1e-05
    %v2107 = vadd.f32 %v2082, 1e-05
    %v2108 = vadd.f32 %v2083, 1e-05
    %v2109 = vadd.f32 %v2084, 1e-05
    %v2110 = vadd.f32 %v2085, 1e-05
    %v2111 = vadd.f32 %v2086, 1e-05
    %v2112 = vadd.f32 %v2087, 1e-05
    %v2113 = vadd.f32 %v2088, 1e-05
    %v2114 = vadd.f32 %v2089, 1e-05
    %v2115 = vadd.f32 %v2090, 1e-05
    %v2116 = vadd.f32 %v2091, 1e-05
    %v2117 = vadd.f32 %v2092, 1e-05
    %v2118 = vadd.f32 %v2093, 1e-05
    %v2119 = vadd.f32 %v2094, 1e-05
    %v2120 = vadd.f32 %v2095, 1e-05
    %v2121 = vadd.f32 %v2096, 1e-05
    %v2122 = vadd.f32 %v2097, 1e-05
    %v2123 = vadd.f32 %v2098, 1e-05
    %v2124 = vadd.f32 %v2099, 1e-05
    %v2125 = vadd.f32 %v2100, 1e-05
    %v2126 = vrsqrt.pop %v2101
    %v2127 = vmul.f32 %v2126, %v2101
    %v2128 = vmul.f32 %v2127, %v2126
    %v2129 = vmul.f32 0.5, %v2128
    %v2130 = vsub.f32 1.5, %v2129
    %v2131 = vmul.f32 %v2126, %v2130
    %vm2132 = vweird.f32 %v2101
    %vm2133 = vweird.f32 %v2126
    %vm2134 = vmor %vm2132, %vm2133
    %v2135 = vsel %vm2134, %v2126, %v2131
    %v2136 = vrsqrt.pop %v2102
    %v2137 = vmul.f32 %v2136, %v2102
    %v2138 = vmul.f32 %v2137, %v2136
    %v2139 = vmul.f32 0.5, %v2138
    %v2140 = vsub.f32 1.5, %v2139
    %v2141 = vmul.f32 %v2136, %v2140
    %vm2142 = vweird.f32 %v2102
    %vm2143 = vweird.f32 %v2136
    %vm2144 = vmor %vm2142, %vm2143
    %v2145 = vsel %vm2144, %v2136, %v2141
    %v2146 = vrsqrt.pop %v2103
    %v2147 = vmul.f32 %v2146, %v2103
    %v2148 = vmul.f32 %v2147, %v2146
    %v2149 = vmul.f32 0.5, %v2148
    %v2150 = vsub.f32 1.5, %v2149
    %v2151 = vmul.f32 %v2146, %v2150
    %vm2152 = vweird.f32 %v2103
    %vm2153 = vweird.f32 %v2146
    %vm2154 = vmor %vm2152, %vm2153
    %v2155 = vsel %vm2154, %v2146, %v2151
    %v2156 = vrsqrt.pop %v2104
    %v2157 = vmul.f32 %v2156, %v2104
    %v2158 = vmul.f32 %v2157, %v2156
    %v2159 = vmul.f32 0.5, %v2158
    %v2160 = vsub.f32 1.5, %v2159
    %v2161 = vmul.f32 %v2156, %v2160
    %vm2162 = vweird.f32 %v2104
    %vm2163 = vweird.f32 %v2156
    %vm2164 = vmor %vm2162, %vm2163
    %v2165 = vsel %vm2164, %v2156, %v2161
    %v2166 = vrsqrt.pop %v2105
    %v2167 = vmul.f32 %v2166, %v2105
    %v2168 = vmul.f32 %v2167, %v2166
    %v2169 = vmul.f32 0.5, %v2168
    %v2170 = vsub.f32 1.5, %v2169
    %v2171 = vmul.f32 %v2166, %v2170
    %vm2172 = vweird.f32 %v2105
    %vm2173 = vweird.f32 %v2166
    %vm2174 = vmor %vm2172, %vm2173
    %v2175 = vsel %vm2174, %v2166, %v2171
    %v2176 = vrsqrt.pop %v2106
    %v2177 = vmul.f32 %v2176, %v2106
    %v2178 = vmul.f32 %v2177, %v2176
    %v2179 = vmul.f32 0.5, %v2178
    %v2180 = vsub.f32 1.5, %v2179
    %v2181 = vmul.f32 %v2176, %v2180
    %vm2182 = vweird.f32 %v2106
    %vm2183 = vweird.f32 %v2176
    %vm2184 = vmor %vm2182, %vm2183
    %v2185 = vsel %vm2184, %v2176, %v2181
    %v2186 = vrsqrt.pop %v2107
    %v2187 = vmul.f32 %v2186, %v2107
    %v2188 = vmul.f32 %v2187, %v2186
    %v2189 = vmul.f32 0.5, %v2188
    %v2190 = vsub.f32 1.5, %v2189
    %v2191 = vmul.f32 %v2186, %v2190
    %vm2192 = vweird.f32 %v2107
    %vm2193 = vweird.f32 %v2186
    %vm2194 = vmor %vm2192, %vm2193
    %v2195 = vsel %vm2194, %v2186, %v2191
    %v2196 = vrsqrt.pop %v2108
    %v2197 = vmul.f32 %v2196, %v2108
    %v2198 = vmul.f32 %v2197, %v2196
    %v2199 = vmul.f32 0.5, %v2198
    %v2200 = vsub.f32 1.5, %v2199
    %v2201 = vmul.f32 %v2196, %v2200
    %vm2202 = vweird.f32 %v2108
    %vm2203 = vweird.f32 %v2196
    %vm2204 = vmor %vm2202, %vm2203
    %v2205 = vsel %vm2204, %v2196, %v2201
    %v2206 = vrsqrt.pop %v2109
    %v2207 = vmul.f32 %v2206, %v2109
    %v2208 = vmul.f32 %v2207, %v2206
    %v2209 = vmul.f32 0.5, %v2208
    %v2210 = vsub.f32 1.5, %v2209
    %v2211 = vmul.f32 %v2206, %v2210
    %vm2212 = vweird.f32 %v2109
    %vm2213 = vweird.f32 %v2206
    %vm2214 = vmor %vm2212, %vm2213
    %v2215 = vsel %vm2214, %v2206, %v2211
    %v2216 = vrsqrt.pop %v2110
    %v2217 = vmul.f32 %v2216, %v2110
    %v2218 = vmul.f32 %v2217, %v2216
    %v2219 = vmul.f32 0.5, %v2218
    %v2220 = vsub.f32 1.5, %v2219
    %v2221 = vmul.f32 %v2216, %v2220
    %vm2222 = vweird.f32 %v2110
    %vm2223 = vweird.f32 %v2216
    %vm2224 = vmor %vm2222, %vm2223
    %v2225 = vsel %vm2224, %v2216, %v2221
    %v2226 = vrsqrt.pop %v2111
    %v2227 = vmul.f32 %v2226, %v2111
    %v2228 = vmul.f32 %v2227, %v2226
    %v2229 = vmul.f32 0.5, %v2228
    %v2230 = vsub.f32 1.5, %v2229
    %v2231 = vmul.f32 %v2226, %v2230
    %vm2232 = vweird.f32 %v2111
    %vm2233 = vweird.f32 %v2226
    %vm2234 = vmor %vm2232, %vm2233
    %v2235 = vsel %vm2234, %v2226, %v2231
    %v2236 = vrsqrt.pop %v2112
    %v2237 = vmul.f32 %v2236, %v2112
    %v2238 = vmul.f32 %v2237, %v2236
    %v2239 = vmul.f32 0.5, %v2238
    %v2240 = vsub.f32 1.5, %v2239
    %v2241 = vmul.f32 %v2236, %v2240
    %vm2242 = vweird.f32 %v2112
    %vm2243 = vweird.f32 %v2236
    %vm2244 = vmor %vm2242, %vm2243
    %v2245 = vsel %vm2244, %v2236, %v2241
    %v2246 = vrsqrt.pop %v2113
    %v2247 = vmul.f32 %v2246, %v2113
    %v2248 = vmul.f32 %v2247, %v2246
    %v2249 = vmul.f32 0.5, %v2248
    %v2250 = vsub.f32 1.5, %v2249
    %v2251 = vmul.f32 %v2246, %v2250
    %vm2252 = vweird.f32 %v2113
    %vm2253 = vweird.f32 %v2246
    %vm2254 = vmor %vm2252, %vm2253
    %v2255 = vsel %vm2254, %v2246, %v2251
    %v2256 = vrsqrt.pop %v2114
    %v2257 = vmul.f32 %v2256, %v2114
    %v2258 = vmul.f32 %v2257, %v2256
    %v2259 = vmul.f32 0.5, %v2258
    %v2260 = vsub.f32 1.5, %v2259
    %v2261 = vmul.f32 %v2256, %v2260
    %vm2262 = vweird.f32 %v2114
    %vm2263 = vweird.f32 %v2256
    %vm2264 = vmor %vm2262, %vm2263
    %v2265 = vsel %vm2264, %v2256, %v2261
    %v2266 = vrsqrt.pop %v2115
    %v2267 = vmul.f32 %v2266, %v2115
    %v2268 = vmul.f32 %v2267, %v2266
    %v2269 = vmul.f32 0.5, %v2268
    %v2270 = vsub.f32 1.5, %v2269
    %v2271 = vmul.f32 %v2266, %v2270
    %vm2272 = vweird.f32 %v2115
    %vm2273 = vweird.f32 %v2266
    %vm2274 = vmor %vm2272, %vm2273
    %v2275 = vsel %vm2274, %v2266, %v2271
    %v2276 = vrsqrt.pop %v2116
    %v2277 = vmul.f32 %v2276, %v2116
    %v2278 = vmul.f32 %v2277, %v2276
    %v2279 = vmul.f32 0.5, %v2278
    %v2280 = vsub.f32 1.5, %v2279
    %v2281 = vmul.f32 %v2276, %v2280
    %vm2282 = vweird.f32 %v2116
    %vm2283 = vweird.f32 %v2276
    %vm2284 = vmor %vm2282, %vm2283
    %v2285 = vsel %vm2284, %v2276, %v2281
    %v2286 = vrsqrt.pop %v2117
    %v2287 = vmul.f32 %v2286, %v2117
    %v2288 = vmul.f32 %v2287, %v2286
    %v2289 = vmul.f32 0.5, %v2288
    %v2290 = vsub.f32 1.5, %v2289
    %v2291 = vmul.f32 %v2286, %v2290
    %vm2292 = vweird.f32 %v2117
    %vm2293 = vweird.f32 %v2286
    %vm2294 = vmor %vm2292, %vm2293
    %v2295 = vsel %vm2294, %v2286, %v2291
    %v2296 = vrsqrt.pop %v2118
    %v2297 = vmul.f32 %v2296, %v2118
    %v2298 = vmul.f32 %v2297, %v2296
    %v2299 = vmul.f32 0.5, %v2298
    %v2300 = vsub.f32 1.5, %v2299
    %v2301 = vmul.f32 %v2296, %v2300
    %vm2302 = vweird.f32 %v2118
    %vm2303 = vweird.f32 %v2296
    %vm2304 = vmor %vm2302, %vm2303
    %v2305 = vsel %vm2304, %v2296, %v2301
    %v2306 = vrsqrt.pop %v2119
    %v2307 = vmul.f32 %v2306, %v2119
    %v2308 = vmul.f32 %v2307, %v2306
    %v2309 = vmul.f32 0.5, %v2308
    %v2310 = vsub.f32 1.5, %v2309
    %v2311 = vmul.f32 %v2306, %v2310
    %vm2312 = vweird.f32 %v2119
    %vm2313 = vweird.f32 %v2306
    %vm2314 = vmor %vm2312, %vm2313
    %v2315 = vsel %vm2314, %v2306, %v2311
    %v2316 = vrsqrt.pop %v2120
    %v2317 = vmul.f32 %v2316, %v2120
    %v2318 = vmul.f32 %v2317, %v2316
    %v2319 = vmul.f32 0.5, %v2318
    %v2320 = vsub.f32 1.5, %v2319
    %v2321 = vmul.f32 %v2316, %v2320
    %vm2322 = vweird.f32 %v2120
    %vm2323 = vweird.f32 %v2316
    %vm2324 = vmor %vm2322, %vm2323
    %v2325 = vsel %vm2324, %v2316, %v2321
    %v2326 = vrsqrt.pop %v2121
    %v2327 = vmul.f32 %v2326, %v2121
    %v2328 = vmul.f32 %v2327, %v2326
    %v2329 = vmul.f32 0.5, %v2328
    %v2330 = vsub.f32 1.5, %v2329
    %v2331 = vmul.f32 %v2326, %v2330
    %vm2332 = vweird.f32 %v2121
    %vm2333 = vweird.f32 %v2326
    %vm2334 = vmor %vm2332, %vm2333
    %v2335 = vsel %vm2334, %v2326, %v2331
    %v2336 = vrsqrt.pop %v2122
    %v2337 = vmul.f32 %v2336, %v2122
    %v2338 = vmul.f32 %v2337, %v2336
    %v2339 = vmul.f32 0.5, %v2338
    %v2340 = vsub.f32 1.5, %v2339
    %v2341 = vmul.f32 %v2336, %v2340
    %vm2342 = vweird.f32 %v2122
    %vm2343 = vweird.f32 %v2336
    %vm2344 = vmor %vm2342, %vm2343
    %v2345 = vsel %vm2344, %v2336, %v2341
    %v2346 = vrsqrt.pop %v2123
    %v2347 = vmul.f32 %v2346, %v2123
    %v2348 = vmul.f32 %v2347, %v2346
    %v2349 = vmul.f32 0.5, %v2348
    %v2350 = vsub.f32 1.5, %v2349
    %v2351 = vmul.f32 %v2346, %v2350
    %vm2352 = vweird.f32 %v2123
    %vm2353 = vweird.f32 %v2346
    %vm2354 = vmor %vm2352, %vm2353
    %v2355 = vsel %vm2354, %v2346, %v2351
    %v2356 = vrsqrt.pop %v2124
    %v2357 = vmul.f32 %v2356, %v2124
    %v2358 = vmul.f32 %v2357, %v2356
    %v2359 = vmul.f32 0.5, %v2358
    %v2360 = vsub.f32 1.5, %v2359
    %v2361 = vmul.f32 %v2356, %v2360
    %vm2362 = vweird.f32 %v2124
    %vm2363 = vweird.f32 %v2356
    %vm2364 = vmor %vm2362, %vm2363
    %v2365 = vsel %vm2364, %v2356, %v2361
    %v2366 = vrsqrt.pop %v2125
    %v2367 = vmul.f32 %v2366, %v2125
    %v2368 = vmul.f32 %v2367, %v2366
    %v2369 = vmul.f32 0.5, %v2368
    %v2370 = vsub.f32 1.5, %v2369
    %v2371 = vmul.f32 %v2366, %v2370
    %vm2372 = vweird.f32 %v2125
    %vm2373 = vweird.f32 %v2366
    %vm2374 = vmor %vm2372, %vm2373
    %v2375 = vsel %vm2374, %v2366, %v2371
    %v2376 = vmul.f32 %v1976, %v2135
    %v2377 = vmul.f32 %v1977, %v2145
    %v2378 = vmul.f32 %v1978, %v2155
    %v2379 = vmul.f32 %v1979, %v2165
    %v2380 = vmul.f32 %v1980, %v2175
    %v2381 = vmul.f32 %v1981, %v2185
    %v2382 = vmul.f32 %v1982, %v2195
    %v2383 = vmul.f32 %v1983, %v2205
    %v2384 = vmul.f32 %v1984, %v2215
    %v2385 = vmul.f32 %v1985, %v2225
    %v2386 = vmul.f32 %v1986, %v2235
    %v2387 = vmul.f32 %v1987, %v2245
    %v2388 = vmul.f32 %v1988, %v2255
    %v2389 = vmul.f32 %v1989, %v2265
    %v2390 = vmul.f32 %v1990, %v2275
    %v2391 = vmul.f32 %v1991, %v2285
    %v2392 = vmul.f32 %v1992, %v2295
    %v2393 = vmul.f32 %v1993, %v2305
    %v2394 = vmul.f32 %v1994, %v2315
    %v2395 = vmul.f32 %v1995, %v2325
    %v2396 = vmul.f32 %v1996, %v2335
    %v2397 = vmul.f32 %v1997, %v2345
    %v2398 = vmul.f32 %v1998, %v2355
    %v2399 = vmul.f32 %v1999, %v2365
    %v2400 = vmul.f32 %v2000, %v2375
    %v2401 = vperm.slane %v73, 0
    %v2402 = vmul.f32 %v2376, %v2401
    %v2403 = vmul.f32 %v2377, %v2401
    %v2404 = vmul.f32 %v2378, %v2401
    %v2405 = vmul.f32 %v2379, %v2401
    %v2406 = vmul.f32 %v2380, %v2401
    %v2407 = vmul.f32 %v2381, %v2401
    %v2408 = vmul.f32 %v2382, %v2401
    %v2409 = vmul.f32 %v2383, %v2401
    %v2410 = vmul.f32 %v2384, %v2401
    %v2411 = vmul.f32 %v2385, %v2401
    %v2412 = vmul.f32 %v2386, %v2401
    %v2413 = vmul.f32 %v2387, %v2401
    %v2414 = vmul.f32 %v2388, %v2401
    %v2415 = vmul.f32 %v2389, %v2401
    %v2416 = vmul.f32 %v2390, %v2401
    %v2417 = vmul.f32 %v2391, %v2401
    %v2418 = vmul.f32 %v2392, %v2401
    %v2419 = vmul.f32 %v2393, %v2401
    %v2420 = vmul.f32 %v2394, %v2401
    %v2421 = vmul.f32 %v2395, %v2401
    %v2422 = vmul.f32 %v2396, %v2401
    %v2423 = vmul.f32 %v2397, %v2401
    %v2424 = vmul.f32 %v2398, %v2401
    %v2425 = vmul.f32 %v2399, %v2401
    %v2426 = vmul.f32 %v2400, %v2401
    %v2427 = vperm.slane %v73, 1
    %v2428 = vadd.f32 %v2402, %v2427
    %v2429 = vadd.f32 %v2403, %v2427
    %v2430 = vadd.f32 %v2404, %v2427
    %v2431 = vadd.f32 %v2405, %v2427
    %v2432 = vadd.f32 %v2406, %v2427
    %v2433 = vadd.f32 %v2407, %v2427
    %v2434 = vadd.f32 %v2408, %v2427
    %v2435 = vadd.f32 %v2409, %v2427
    %v2436 = vadd.f32 %v2410, %v2427
    %v2437 = vadd.f32 %v2411, %v2427
    %v2438 = vadd.f32 %v2412, %v2427
    %v2439 = vadd.f32 %v2413, %v2427
    %v2440 = vadd.f32 %v2414, %v2427
    %v2441 = vadd.f32 %v2415, %v2427
    %v2442 = vadd.f32 %v2416, %v2427
    %v2443 = vadd.f32 %v2417, %v2427
    %v2444 = vadd.f32 %v2418, %v2427
    %v2445 = vadd.f32 %v2419, %v2427
    %v2446 = vadd.f32 %v2420, %v2427
    %v2447 = vadd.f32 %v2421, %v2427
    %v2448 = vadd.f32 %v2422, %v2427
    %v2449 = vadd.f32 %v2423, %v2427
    %v2450 = vadd.f32 %v2424, %v2427
    %v2451 = vadd.f32 %v2425, %v2427
    %v2452 = vadd.f32 %v2426, %v2427
    %v2453 = vmax.f32 %v2428, 0.0
    %v2454 = vmax.f32 %v2429, 0.0
    %v2455 = vmax.f32 %v2430, 0.0
    %v2456 = vmax.f32 %v2431, 0.0
    %v2457 = vmax.f32 %v2432, 0.0
    %v2458 = vmax.f32 %v2433, 0.0
    %v2459 = vmax.f32 %v2434, 0.0
    %v2460 = vmax.f32 %v2435, 0.0
    %v2461 = vmax.f32 %v2436, 0.0
    %v2462 = vmax.f32 %v2437, 0.0
    %v2463 = vmax.f32 %v2438, 0.0
    %v2464 = vmax.f32 %v2439, 0.0
    %v2465 = vmax.f32 %v2440, 0.0
    %v2466 = vmax.f32 %v2441, 0.0
    %v2467 = vmax.f32 %v2442, 0.0
    %v2468 = vmax.f32 %v2443, 0.0
    %v2469 = vmax.f32 %v2444, 0.0
    %v2470 = vmax.f32 %v2445, 0.0
    %v2471 = vmax.f32 %v2446, 0.0
    %v2472 = vmax.f32 %v2447, 0.0
    %v2473 = vmax.f32 %v2448, 0.0
    %v2474 = vmax.f32 %v2449, 0.0
    %v2475 = vmax.f32 %v2450, 0.0
    %v2476 = vmax.f32 %v2451, 0.0
    %v2477 = vmax.f32 %v2452, 0.0
    %v2478 = vperm.slane %v72, 7
    %v2479 = vadd.f32 %v1812, %v2478
    %v2480 = vadd.f32 %v1814, %v2478
    %v2481 = vadd.f32 %v1817, %v2478
    %v2482 = vadd.f32 %v1819, %v2478
    %v2483 = vadd.f32 %v1822, %v2478
    %v2484 = vadd.f32 %v1824, %v2478
    %v2485 = vadd.f32 %v1827, %v2478
    %v2486 = vadd.f32 %v1829, %v2478
    %v2487 = vadd.f32 %v1832, %v2478
    %v2488 = vadd.f32 %v1834, %v2478
    %v2489 = vadd.f32 %v1837, %v2478
    %v2490 = vadd.f32 %v1839, %v2478
    %v2491 = vadd.f32 %v1842, %v2478
    %v2492 = vadd.f32 %v1844, %v2478
    %v2493 = vadd.f32 %v1847, %v2478
    %v2494 = vadd.f32 %v1849, %v2478
    %v2495 = vadd.f32 %v1852, %v2478
    %v2496 = vadd.f32 %v1854, %v2478
    %v2497 = vadd.f32 %v1857, %v2478
    %v2498 = vadd.f32 %v1859, %v2478
    %v2499 = vadd.f32 %v1862, %v2478
    %v2500 = vadd.f32 %v1864, %v2478
    %v2501 = vadd.f32 %v1867, %v2478
    %v2502 = vadd.f32 %v1869, %v2478
    %v2503 = vadd.f32 %v1872, %v2478
    %2504 = vadd.xlane.f32.xlu0 %v2479
    %v2505 = vpop.xlane.xlu0 %2504
    %2506 = vadd.xlane.f32.xlu0 %v2480
    %v2507 = vpop.xlane.xlu0 %2506
    %2508 = vadd.xlane.f32.xlu0 %v2481
    %v2509 = vpop.xlane.xlu0 %2508
    %2510 = vadd.xlane.f32.xlu0 %v2482
    %v2511 = vpop.xlane.xlu0 %2510
    %2512 = vadd.xlane.f32.xlu0 %v2483
    %v2513 = vpop.xlane.xlu0 %2512
    %2514 = vadd.xlane.f32.xlu0 %v2484
    %v2515 = vpop.xlane.xlu0 %2514
    %2516 = vadd.xlane.f32.xlu0 %v2485
    %v2517 = vpop.xlane.xlu0 %2516
    %2518 = vadd.xlane.f32.xlu0 %v2486
    %v2519 = vpop.xlane.xlu0 %2518
    %2520 = vadd.xlane.f32.xlu0 %v2487
    %v2521 = vpop.xlane.xlu0 %2520
    %2522 = vadd.xlane.f32.xlu0 %v2488
    %v2523 = vpop.xlane.xlu0 %2522
    %2524 = vadd.xlane.f32.xlu0 %v2489
    %v2525 = vpop.xlane.xlu0 %2524
    %2526 = vadd.xlane.f32.xlu0 %v2490
    %v2527 = vpop.xlane.xlu0 %2526
    %2528 = vadd.xlane.f32.xlu0 %v2491
    %v2529 = vpop.xlane.xlu0 %2528
    %2530 = vadd.xlane.f32.xlu0 %v2492
    %v2531 = vpop.xlane.xlu0 %2530
    %2532 = vadd.xlane.f32.xlu0 %v2493
    %v2533 = vpop.xlane.xlu0 %2532
    %2534 = vadd.xlane.f32.xlu0 %v2494
    %v2535 = vpop.xlane.xlu0 %2534
    %2536 = vadd.xlane.f32.xlu0 %v2495
    %v2537 = vpop.xlane.xlu0 %2536
    %2538 = vadd.xlane.f32.xlu0 %v2496
    %v2539 = vpop.xlane.xlu0 %2538
    %2540 = vadd.xlane.f32.xlu0 %v2497
    %v2541 = vpop.xlane.xlu0 %2540
    %2542 = vadd.xlane.f32.xlu0 %v2498
    %v2543 = vpop.xlane.xlu0 %2542
    %2544 = vadd.xlane.f32.xlu0 %v2499
    %v2545 = vpop.xlane.xlu0 %2544
    %2546 = vadd.xlane.f32.xlu0 %v2500
    %v2547 = vpop.xlane.xlu0 %2546
    %2548 = vadd.xlane.f32.xlu0 %v2501
    %v2549 = vpop.xlane.xlu0 %2548
    %2550 = vadd.xlane.f32.xlu0 %v2502
    %v2551 = vpop.xlane.xlu0 %2550
    %2552 = vadd.xlane.f32.xlu0 %v2503
    %v2553 = vpop.xlane.xlu0 %2552
    %v2554 = vmul.f32 %v2505, %v364
    %v2555 = vmul.f32 %v2507, %v364
    %v2556 = vmul.f32 %v2509, %v364
    %v2557 = vmul.f32 %v2511, %v364
    %v2558 = vmul.f32 %v2513, %v364
    %v2559 = vmul.f32 %v2515, %v364
    %v2560 = vmul.f32 %v2517, %v364
    %v2561 = vmul.f32 %v2519, %v364
    %v2562 = vmul.f32 %v2521, %v364
    %v2563 = vmul.f32 %v2523, %v364
    %v2564 = vmul.f32 %v2525, %v364
    %v2565 = vmul.f32 %v2527, %v364
    %v2566 = vmul.f32 %v2529, %v364
    %v2567 = vmul.f32 %v2531, %v364
    %v2568 = vmul.f32 %v2533, %v364
    %v2569 = vmul.f32 %v2535, %v364
    %v2570 = vmul.f32 %v2537, %v364
    %v2571 = vmul.f32 %v2539, %v364
    %v2572 = vmul.f32 %v2541, %v364
    %v2573 = vmul.f32 %v2543, %v364
    %v2574 = vmul.f32 %v2545, %v364
    %v2575 = vmul.f32 %v2547, %v364
    %v2576 = vmul.f32 %v2549, %v364
    %v2577 = vmul.f32 %v2551, %v364
    %v2578 = vmul.f32 %v2553, %v364
    %v2579 = vsub.f32 %v2479, %v2554
    %v2580 = vsub.f32 %v2480, %v2555
    %v2581 = vsub.f32 %v2481, %v2556
    %v2582 = vsub.f32 %v2482, %v2557
    %v2583 = vsub.f32 %v2483, %v2558
    %v2584 = vsub.f32 %v2484, %v2559
    %v2585 = vsub.f32 %v2485, %v2560
    %v2586 = vsub.f32 %v2486, %v2561
    %v2587 = vsub.f32 %v2487, %v2562
    %v2588 = vsub.f32 %v2488, %v2563
    %v2589 = vsub.f32 %v2489, %v2564
    %v2590 = vsub.f32 %v2490, %v2565
    %v2591 = vsub.f32 %v2491, %v2566
    %v2592 = vsub.f32 %v2492, %v2567
    %v2593 = vsub.f32 %v2493, %v2568
    %v2594 = vsub.f32 %v2494, %v2569
    %v2595 = vsub.f32 %v2495, %v2570
    %v2596 = vsub.f32 %v2496, %v2571
    %v2597 = vsub.f32 %v2497, %v2572
    %v2598 = vsub.f32 %v2498, %v2573
    %v2599 = vsub.f32 %v2499, %v2574
    %v2600 = vsub.f32 %v2500, %v2575
    %v2601 = vsub.f32 %v2501, %v2576
    %v2602 = vsub.f32 %v2502, %v2577
    %v2603 = vsub.f32 %v2503, %v2578
    %v2604 = vmul.f32 %v2579, %v2579
    %v2605 = vmul.f32 %v2580, %v2580
    %v2606 = vmul.f32 %v2581, %v2581
    %v2607 = vmul.f32 %v2582, %v2582
    %v2608 = vmul.f32 %v2583, %v2583
    %v2609 = vmul.f32 %v2584, %v2584
    %v2610 = vmul.f32 %v2585, %v2585
    %v2611 = vmul.f32 %v2586, %v2586
    %v2612 = vmul.f32 %v2587, %v2587
    %v2613 = vmul.f32 %v2588, %v2588
    %v2614 = vmul.f32 %v2589, %v2589
    %v2615 = vmul.f32 %v2590, %v2590
    %v2616 = vmul.f32 %v2591, %v2591
    %v2617 = vmul.f32 %v2592, %v2592
    %v2618 = vmul.f32 %v2593, %v2593
    %v2619 = vmul.f32 %v2594, %v2594
    %v2620 = vmul.f32 %v2595, %v2595
    %v2621 = vmul.f32 %v2596, %v2596
    %v2622 = vmul.f32 %v2597, %v2597
    %v2623 = vmul.f32 %v2598, %v2598
    %v2624 = vmul.f32 %v2599, %v2599
    %v2625 = vmul.f32 %v2600, %v2600
    %v2626 = vmul.f32 %v2601, %v2601
    %v2627 = vmul.f32 %v2602, %v2602
    %v2628 = vmul.f32 %v2603, %v2603
    %2629 = vadd.xlane.f32.xlu0 %v2604
    %v2630 = vpop.xlane.xlu0 %2629
    %2631 = vadd.xlane.f32.xlu0 %v2605
    %v2632 = vpop.xlane.xlu0 %2631
    %2633 = vadd.xlane.f32.xlu0 %v2606
    %v2634 = vpop.xlane.xlu0 %2633
    %2635 = vadd.xlane.f32.xlu0 %v2607
    %v2636 = vpop.xlane.xlu0 %2635
    %2637 = vadd.xlane.f32.xlu0 %v2608
    %v2638 = vpop.xlane.xlu0 %2637
    %2639 = vadd.xlane.f32.xlu0 %v2609
    %v2640 = vpop.xlane.xlu0 %2639
    %2641 = vadd.xlane.f32.xlu0 %v2610
    %v2642 = vpop.xlane.xlu0 %2641
    %2643 = vadd.xlane.f32.xlu0 %v2611
    %v2644 = vpop.xlane.xlu0 %2643
    %2645 = vadd.xlane.f32.xlu0 %v2612
    %v2646 = vpop.xlane.xlu0 %2645
    %2647 = vadd.xlane.f32.xlu0 %v2613
    %v2648 = vpop.xlane.xlu0 %2647
    %2649 = vadd.xlane.f32.xlu0 %v2614
    %v2650 = vpop.xlane.xlu0 %2649
    %2651 = vadd.xlane.f32.xlu0 %v2615
    %v2652 = vpop.xlane.xlu0 %2651
    %2653 = vadd.xlane.f32.xlu0 %v2616
    %v2654 = vpop.xlane.xlu0 %2653
    %2655 = vadd.xlane.f32.xlu0 %v2617
    %v2656 = vpop.xlane.xlu0 %2655
    %2657 = vadd.xlane.f32.xlu0 %v2618
    %v2658 = vpop.xlane.xlu0 %2657
    %2659 = vadd.xlane.f32.xlu0 %v2619
    %v2660 = vpop.xlane.xlu0 %2659
    %2661 = vadd.xlane.f32.xlu0 %v2620
    %v2662 = vpop.xlane.xlu0 %2661
    %2663 = vadd.xlane.f32.xlu0 %v2621
    %v2664 = vpop.xlane.xlu0 %2663
    %2665 = vadd.xlane.f32.xlu0 %v2622
    %v2666 = vpop.xlane.xlu0 %2665
    %2667 = vadd.xlane.f32.xlu0 %v2623
    %v2668 = vpop.xlane.xlu0 %2667
    %2669 = vadd.xlane.f32.xlu0 %v2624
    %v2670 = vpop.xlane.xlu0 %2669
    %2671 = vadd.xlane.f32.xlu0 %v2625
    %v2672 = vpop.xlane.xlu0 %2671
    %2673 = vadd.xlane.f32.xlu0 %v2626
    %v2674 = vpop.xlane.xlu0 %2673
    %2675 = vadd.xlane.f32.xlu0 %v2627
    %v2676 = vpop.xlane.xlu0 %2675
    %2677 = vadd.xlane.f32.xlu0 %v2628
    %v2678 = vpop.xlane.xlu0 %2677
    %v2679 = vmul.f32 %v2630, %v364
    %v2680 = vmul.f32 %v2632, %v364
    %v2681 = vmul.f32 %v2634, %v364
    %v2682 = vmul.f32 %v2636, %v364
    %v2683 = vmul.f32 %v2638, %v364
    %v2684 = vmul.f32 %v2640, %v364
    %v2685 = vmul.f32 %v2642, %v364
    %v2686 = vmul.f32 %v2644, %v364
    %v2687 = vmul.f32 %v2646, %v364
    %v2688 = vmul.f32 %v2648, %v364
    %v2689 = vmul.f32 %v2650, %v364
    %v2690 = vmul.f32 %v2652, %v364
    %v2691 = vmul.f32 %v2654, %v364
    %v2692 = vmul.f32 %v2656, %v364
    %v2693 = vmul.f32 %v2658, %v364
    %v2694 = vmul.f32 %v2660, %v364
    %v2695 = vmul.f32 %v2662, %v364
    %v2696 = vmul.f32 %v2664, %v364
    %v2697 = vmul.f32 %v2666, %v364
    %v2698 = vmul.f32 %v2668, %v364
    %v2699 = vmul.f32 %v2670, %v364
    %v2700 = vmul.f32 %v2672, %v364
    %v2701 = vmul.f32 %v2674, %v364
    %v2702 = vmul.f32 %v2676, %v364
    %v2703 = vmul.f32 %v2678, %v364
    %v2704 = vadd.f32 %v2679, 1e-05
    %v2705 = vadd.f32 %v2680, 1e-05
    %v2706 = vadd.f32 %v2681, 1e-05
    %v2707 = vadd.f32 %v2682, 1e-05
    %v2708 = vadd.f32 %v2683, 1e-05
    %v2709 = vadd.f32 %v2684, 1e-05
    %v2710 = vadd.f32 %v2685, 1e-05
    %v2711 = vadd.f32 %v2686, 1e-05
    %v2712 = vadd.f32 %v2687, 1e-05
    %v2713 = vadd.f32 %v2688, 1e-05
    %v2714 = vadd.f32 %v2689, 1e-05
    %v2715 = vadd.f32 %v2690, 1e-05
    %v2716 = vadd.f32 %v2691, 1e-05
    %v2717 = vadd.f32 %v2692, 1e-05
    %v2718 = vadd.f32 %v2693, 1e-05
    %v2719 = vadd.f32 %v2694, 1e-05
    %v2720 = vadd.f32 %v2695, 1e-05
    %v2721 = vadd.f32 %v2696, 1e-05
    %v2722 = vadd.f32 %v2697, 1e-05
    %v2723 = vadd.f32 %v2698, 1e-05
    %v2724 = vadd.f32 %v2699, 1e-05
    %v2725 = vadd.f32 %v2700, 1e-05
    %v2726 = vadd.f32 %v2701, 1e-05
    %v2727 = vadd.f32 %v2702, 1e-05
    %v2728 = vadd.f32 %v2703, 1e-05
    %v2729 = vrsqrt.pop %v2704
    %v2730 = vmul.f32 %v2729, %v2704
    %v2731 = vmul.f32 %v2730, %v2729
    %v2732 = vmul.f32 0.5, %v2731
    %v2733 = vsub.f32 1.5, %v2732
    %v2734 = vmul.f32 %v2729, %v2733
    %vm2735 = vweird.f32 %v2704
    %vm2736 = vweird.f32 %v2729
    %vm2737 = vmor %vm2735, %vm2736
    %v2738 = vsel %vm2737, %v2729, %v2734
    %v2739 = vrsqrt.pop %v2705
    %v2740 = vmul.f32 %v2739, %v2705
    %v2741 = vmul.f32 %v2740, %v2739
    %v2742 = vmul.f32 0.5, %v2741
    %v2743 = vsub.f32 1.5, %v2742
    %v2744 = vmul.f32 %v2739, %v2743
    %vm2745 = vweird.f32 %v2705
    %vm2746 = vweird.f32 %v2739
    %vm2747 = vmor %vm2745, %vm2746
    %v2748 = vsel %vm2747, %v2739, %v2744
    %v2749 = vrsqrt.pop %v2706
    %v2750 = vmul.f32 %v2749, %v2706
    %v2751 = vmul.f32 %v2750, %v2749
    %v2752 = vmul.f32 0.5, %v2751
    %v2753 = vsub.f32 1.5, %v2752
    %v2754 = vmul.f32 %v2749, %v2753
    %vm2755 = vweird.f32 %v2706
    %vm2756 = vweird.f32 %v2749
    %vm2757 = vmor %vm2755, %vm2756
    %v2758 = vsel %vm2757, %v2749, %v2754
    %v2759 = vrsqrt.pop %v2707
    %v2760 = vmul.f32 %v2759, %v2707
    %v2761 = vmul.f32 %v2760, %v2759
    %v2762 = vmul.f32 0.5, %v2761
    %v2763 = vsub.f32 1.5, %v2762
    %v2764 = vmul.f32 %v2759, %v2763
    %vm2765 = vweird.f32 %v2707
    %vm2766 = vweird.f32 %v2759
    %vm2767 = vmor %vm2765, %vm2766
    %v2768 = vsel %vm2767, %v2759, %v2764
    %v2769 = vrsqrt.pop %v2708
    %v2770 = vmul.f32 %v2769, %v2708
    %v2771 = vmul.f32 %v2770, %v2769
    %v2772 = vmul.f32 0.5, %v2771
    %v2773 = vsub.f32 1.5, %v2772
    %v2774 = vmul.f32 %v2769, %v2773
    %vm2775 = vweird.f32 %v2708
    %vm2776 = vweird.f32 %v2769
    %vm2777 = vmor %vm2775, %vm2776
    %v2778 = vsel %vm2777, %v2769, %v2774
    %v2779 = vrsqrt.pop %v2709
    %v2780 = vmul.f32 %v2779, %v2709
    %v2781 = vmul.f32 %v2780, %v2779
    %v2782 = vmul.f32 0.5, %v2781
    %v2783 = vsub.f32 1.5, %v2782
    %v2784 = vmul.f32 %v2779, %v2783
    %vm2785 = vweird.f32 %v2709
    %vm2786 = vweird.f32 %v2779
    %vm2787 = vmor %vm2785, %vm2786
    %v2788 = vsel %vm2787, %v2779, %v2784
    %v2789 = vrsqrt.pop %v2710
    %v2790 = vmul.f32 %v2789, %v2710
    %v2791 = vmul.f32 %v2790, %v2789
    %v2792 = vmul.f32 0.5, %v2791
    %v2793 = vsub.f32 1.5, %v2792
    %v2794 = vmul.f32 %v2789, %v2793
    %vm2795 = vweird.f32 %v2710
    %vm2796 = vweird.f32 %v2789
    %vm2797 = vmor %vm2795, %vm2796
    %v2798 = vsel %vm2797, %v2789, %v2794
    %v2799 = vrsqrt.pop %v2711
    %v2800 = vmul.f32 %v2799, %v2711
    %v2801 = vmul.f32 %v2800, %v2799
    %v2802 = vmul.f32 0.5, %v2801
    %v2803 = vsub.f32 1.5, %v2802
    %v2804 = vmul.f32 %v2799, %v2803
    %vm2805 = vweird.f32 %v2711
    %vm2806 = vweird.f32 %v2799
    %vm2807 = vmor %vm2805, %vm2806
    %v2808 = vsel %vm2807, %v2799, %v2804
    %v2809 = vrsqrt.pop %v2712
    %v2810 = vmul.f32 %v2809, %v2712
    %v2811 = vmul.f32 %v2810, %v2809
    %v2812 = vmul.f32 0.5, %v2811
    %v2813 = vsub.f32 1.5, %v2812
    %v2814 = vmul.f32 %v2809, %v2813
    %vm2815 = vweird.f32 %v2712
    %vm2816 = vweird.f32 %v2809
    %vm2817 = vmor %vm2815, %vm2816
    %v2818 = vsel %vm2817, %v2809, %v2814
    %v2819 = vrsqrt.pop %v2713
    %v2820 = vmul.f32 %v2819, %v2713
    %v2821 = vmul.f32 %v2820, %v2819
    %v2822 = vmul.f32 0.5, %v2821
    %v2823 = vsub.f32 1.5, %v2822
    %v2824 = vmul.f32 %v2819, %v2823
    %vm2825 = vweird.f32 %v2713
    %vm2826 = vweird.f32 %v2819
    %vm2827 = vmor %vm2825, %vm2826
    %v2828 = vsel %vm2827, %v2819, %v2824
    %v2829 = vrsqrt.pop %v2714
    %v2830 = vmul.f32 %v2829, %v2714
    %v2831 = vmul.f32 %v2830, %v2829
    %v2832 = vmul.f32 0.5, %v2831
    %v2833 = vsub.f32 1.5, %v2832
    %v2834 = vmul.f32 %v2829, %v2833
    %vm2835 = vweird.f32 %v2714
    %vm2836 = vweird.f32 %v2829
    %vm2837 = vmor %vm2835, %vm2836
    %v2838 = vsel %vm2837, %v2829, %v2834
    %v2839 = vrsqrt.pop %v2715
    %v2840 = vmul.f32 %v2839, %v2715
    %v2841 = vmul.f32 %v2840, %v2839
    %v2842 = vmul.f32 0.5, %v2841
    %v2843 = vsub.f32 1.5, %v2842
    %v2844 = vmul.f32 %v2839, %v2843
    %vm2845 = vweird.f32 %v2715
    %vm2846 = vweird.f32 %v2839
    %vm2847 = vmor %vm2845, %vm2846
    %v2848 = vsel %vm2847, %v2839, %v2844
    %v2849 = vrsqrt.pop %v2716
    %v2850 = vmul.f32 %v2849, %v2716
    %v2851 = vmul.f32 %v2850, %v2849
    %v2852 = vmul.f32 0.5, %v2851
    %v2853 = vsub.f32 1.5, %v2852
    %v2854 = vmul.f32 %v2849, %v2853
    %vm2855 = vweird.f32 %v2716
    %vm2856 = vweird.f32 %v2849
    %vm2857 = vmor %vm2855, %vm2856
    %v2858 = vsel %vm2857, %v2849, %v2854
    %v2859 = vrsqrt.pop %v2717
    %v2860 = vmul.f32 %v2859, %v2717
    %v2861 = vmul.f32 %v2860, %v2859
    %v2862 = vmul.f32 0.5, %v2861
    %v2863 = vsub.f32 1.5, %v2862
    %v2864 = vmul.f32 %v2859, %v2863
    %vm2865 = vweird.f32 %v2717
    %vm2866 = vweird.f32 %v2859
    %vm2867 = vmor %vm2865, %vm2866
    %v2868 = vsel %vm2867, %v2859, %v2864
    %v2869 = vrsqrt.pop %v2718
    %v2870 = vmul.f32 %v2869, %v2718
    %v2871 = vmul.f32 %v2870, %v2869
    %v2872 = vmul.f32 0.5, %v2871
    %v2873 = vsub.f32 1.5, %v2872
    %v2874 = vmul.f32 %v2869, %v2873
    %vm2875 = vweird.f32 %v2718
    %vm2876 = vweird.f32 %v2869
    %vm2877 = vmor %vm2875, %vm2876
    %v2878 = vsel %vm2877, %v2869, %v2874
    %v2879 = vrsqrt.pop %v2719
    %v2880 = vmul.f32 %v2879, %v2719
    %v2881 = vmul.f32 %v2880, %v2879
    %v2882 = vmul.f32 0.5, %v2881
    %v2883 = vsub.f32 1.5, %v2882
    %v2884 = vmul.f32 %v2879, %v2883
    %vm2885 = vweird.f32 %v2719
    %vm2886 = vweird.f32 %v2879
    %vm2887 = vmor %vm2885, %vm2886
    %v2888 = vsel %vm2887, %v2879, %v2884
    %v2889 = vrsqrt.pop %v2720
    %v2890 = vmul.f32 %v2889, %v2720
    %v2891 = vmul.f32 %v2890, %v2889
    %v2892 = vmul.f32 0.5, %v2891
    %v2893 = vsub.f32 1.5, %v2892
    %v2894 = vmul.f32 %v2889, %v2893
    %vm2895 = vweird.f32 %v2720
    %vm2896 = vweird.f32 %v2889
    %vm2897 = vmor %vm2895, %vm2896
    %v2898 = vsel %vm2897, %v2889, %v2894
    %v2899 = vrsqrt.pop %v2721
    %v2900 = vmul.f32 %v2899, %v2721
    %v2901 = vmul.f32 %v2900, %v2899
    %v2902 = vmul.f32 0.5, %v2901
    %v2903 = vsub.f32 1.5, %v2902
    %v2904 = vmul.f32 %v2899, %v2903
    %vm2905 = vweird.f32 %v2721
    %vm2906 = vweird.f32 %v2899
    %vm2907 = vmor %vm2905, %vm2906
    %v2908 = vsel %vm2907, %v2899, %v2904
    %v2909 = vrsqrt.pop %v2722
    %v2910 = vmul.f32 %v2909, %v2722
    %v2911 = vmul.f32 %v2910, %v2909
    %v2912 = vmul.f32 0.5, %v2911
    %v2913 = vsub.f32 1.5, %v2912
    %v2914 = vmul.f32 %v2909, %v2913
    %vm2915 = vweird.f32 %v2722
    %vm2916 = vweird.f32 %v2909
    %vm2917 = vmor %vm2915, %vm2916
    %v2918 = vsel %vm2917, %v2909, %v2914
    %v2919 = vrsqrt.pop %v2723
    %v2920 = vmul.f32 %v2919, %v2723
    %v2921 = vmul.f32 %v2920, %v2919
    %v2922 = vmul.f32 0.5, %v2921
    %v2923 = vsub.f32 1.5, %v2922
    %v2924 = vmul.f32 %v2919, %v2923
    %vm2925 = vweird.f32 %v2723
    %vm2926 = vweird.f32 %v2919
    %vm2927 = vmor %vm2925, %vm2926
    %v2928 = vsel %vm2927, %v2919, %v2924
    %v2929 = vrsqrt.pop %v2724
    %v2930 = vmul.f32 %v2929, %v2724
    %v2931 = vmul.f32 %v2930, %v2929
    %v2932 = vmul.f32 0.5, %v2931
    %v2933 = vsub.f32 1.5, %v2932
    %v2934 = vmul.f32 %v2929, %v2933
    %vm2935 = vweird.f32 %v2724
    %vm2936 = vweird.f32 %v2929
    %vm2937 = vmor %vm2935, %vm2936
    %v2938 = vsel %vm2937, %v2929, %v2934
    %v2939 = vrsqrt.pop %v2725
    %v2940 = vmul.f32 %v2939, %v2725
    %v2941 = vmul.f32 %v2940, %v2939
    %v2942 = vmul.f32 0.5, %v2941
    %v2943 = vsub.f32 1.5, %v2942
    %v2944 = vmul.f32 %v2939, %v2943
    %vm2945 = vweird.f32 %v2725
    %vm2946 = vweird.f32 %v2939
    %vm2947 = vmor %vm2945, %vm2946
    %v2948 = vsel %vm2947, %v2939, %v2944
    %v2949 = vrsqrt.pop %v2726
    %v2950 = vmul.f32 %v2949, %v2726
    %v2951 = vmul.f32 %v2950, %v2949
    %v2952 = vmul.f32 0.5, %v2951
    %v2953 = vsub.f32 1.5, %v2952
    %v2954 = vmul.f32 %v2949, %v2953
    %vm2955 = vweird.f32 %v2726
    %vm2956 = vweird.f32 %v2949
    %vm2957 = vmor %vm2955, %vm2956
    %v2958 = vsel %vm2957, %v2949, %v2954
    %v2959 = vrsqrt.pop %v2727
    %v2960 = vmul.f32 %v2959, %v2727
    %v2961 = vmul.f32 %v2960, %v2959
    %v2962 = vmul.f32 0.5, %v2961
    %v2963 = vsub.f32 1.5, %v2962
    %v2964 = vmul.f32 %v2959, %v2963
    %vm2965 = vweird.f32 %v2727
    %vm2966 = vweird.f32 %v2959
    %vm2967 = vmor %vm2965, %vm2966
    %v2968 = vsel %vm2967, %v2959, %v2964
    %v2969 = vrsqrt.pop %v2728
    %v2970 = vmul.f32 %v2969, %v2728
    %v2971 = vmul.f32 %v2970, %v2969
    %v2972 = vmul.f32 0.5, %v2971
    %v2973 = vsub.f32 1.5, %v2972
    %v2974 = vmul.f32 %v2969, %v2973
    %vm2975 = vweird.f32 %v2728
    %vm2976 = vweird.f32 %v2969
    %vm2977 = vmor %vm2975, %vm2976
    %v2978 = vsel %vm2977, %v2969, %v2974
    %v2979 = vmul.f32 %v2579, %v2738
    %v2980 = vmul.f32 %v2580, %v2748
    %v2981 = vmul.f32 %v2581, %v2758
    %v2982 = vmul.f32 %v2582, %v2768
    %v2983 = vmul.f32 %v2583, %v2778
    %v2984 = vmul.f32 %v2584, %v2788
    %v2985 = vmul.f32 %v2585, %v2798
    %v2986 = vmul.f32 %v2586, %v2808
    %v2987 = vmul.f32 %v2587, %v2818
    %v2988 = vmul.f32 %v2588, %v2828
    %v2989 = vmul.f32 %v2589, %v2838
    %v2990 = vmul.f32 %v2590, %v2848
    %v2991 = vmul.f32 %v2591, %v2858
    %v2992 = vmul.f32 %v2592, %v2868
    %v2993 = vmul.f32 %v2593, %v2878
    %v2994 = vmul.f32 %v2594, %v2888
    %v2995 = vmul.f32 %v2595, %v2898
    %v2996 = vmul.f32 %v2596, %v2908
    %v2997 = vmul.f32 %v2597, %v2918
    %v2998 = vmul.f32 %v2598, %v2928
    %v2999 = vmul.f32 %v2599, %v2938
    %v3000 = vmul.f32 %v2600, %v2948
    %v3001 = vmul.f32 %v2601, %v2958
    %v3002 = vmul.f32 %v2602, %v2968
    %v3003 = vmul.f32 %v2603, %v2978
    %v3004 = vperm.slane %v73, 2
    %v3005 = vmul.f32 %v2979, %v3004
    %v3006 = vmul.f32 %v2980, %v3004
    %v3007 = vmul.f32 %v2981, %v3004
    %v3008 = vmul.f32 %v2982, %v3004
    %v3009 = vmul.f32 %v2983, %v3004
    %v3010 = vmul.f32 %v2984, %v3004
    %v3011 = vmul.f32 %v2985, %v3004
    %v3012 = vmul.f32 %v2986, %v3004
    %v3013 = vmul.f32 %v2987, %v3004
    %v3014 = vmul.f32 %v2988, %v3004
    %v3015 = vmul.f32 %v2989, %v3004
    %v3016 = vmul.f32 %v2990, %v3004
    %v3017 = vmul.f32 %v2991, %v3004
    %v3018 = vmul.f32 %v2992, %v3004
    %v3019 = vmul.f32 %v2993, %v3004
    %v3020 = vmul.f32 %v2994, %v3004
    %v3021 = vmul.f32 %v2995, %v3004
    %v3022 = vmul.f32 %v2996, %v3004
    %v3023 = vmul.f32 %v2997, %v3004
    %v3024 = vmul.f32 %v2998, %v3004
    %v3025 = vmul.f32 %v2999, %v3004
    %v3026 = vmul.f32 %v3000, %v3004
    %v3027 = vmul.f32 %v3001, %v3004
    %v3028 = vmul.f32 %v3002, %v3004
    %v3029 = vmul.f32 %v3003, %v3004
    %v3030 = vperm.slane %v73, 3
    %v3031 = vadd.f32 %v3005, %v3030
    %v3032 = vadd.f32 %v3006, %v3030
    %v3033 = vadd.f32 %v3007, %v3030
    %v3034 = vadd.f32 %v3008, %v3030
    %v3035 = vadd.f32 %v3009, %v3030
    %v3036 = vadd.f32 %v3010, %v3030
    %v3037 = vadd.f32 %v3011, %v3030
    %v3038 = vadd.f32 %v3012, %v3030
    %v3039 = vadd.f32 %v3013, %v3030
    %v3040 = vadd.f32 %v3014, %v3030
    %v3041 = vadd.f32 %v3015, %v3030
    %v3042 = vadd.f32 %v3016, %v3030
    %v3043 = vadd.f32 %v3017, %v3030
    %v3044 = vadd.f32 %v3018, %v3030
    %v3045 = vadd.f32 %v3019, %v3030
    %v3046 = vadd.f32 %v3020, %v3030
    %v3047 = vadd.f32 %v3021, %v3030
    %v3048 = vadd.f32 %v3022, %v3030
    %v3049 = vadd.f32 %v3023, %v3030
    %v3050 = vadd.f32 %v3024, %v3030
    %v3051 = vadd.f32 %v3025, %v3030
    %v3052 = vadd.f32 %v3026, %v3030
    %v3053 = vadd.f32 %v3027, %v3030
    %v3054 = vadd.f32 %v3028, %v3030
    %v3055 = vadd.f32 %v3029, %v3030
    %v3056 = vmax.f32 %v3031, 0.0
    %v3057 = vmax.f32 %v3032, 0.0
    %v3058 = vmax.f32 %v3033, 0.0
    %v3059 = vmax.f32 %v3034, 0.0
    %v3060 = vmax.f32 %v3035, 0.0
    %v3061 = vmax.f32 %v3036, 0.0
    %v3062 = vmax.f32 %v3037, 0.0
    %v3063 = vmax.f32 %v3038, 0.0
    %v3064 = vmax.f32 %v3039, 0.0
    %v3065 = vmax.f32 %v3040, 0.0
    %v3066 = vmax.f32 %v3041, 0.0
    %v3067 = vmax.f32 %v3042, 0.0
    %v3068 = vmax.f32 %v3043, 0.0
    %v3069 = vmax.f32 %v3044, 0.0
    %v3070 = vmax.f32 %v3045, 0.0
    %v3071 = vmax.f32 %v3046, 0.0
    %v3072 = vmax.f32 %v3047, 0.0
    %v3073 = vmax.f32 %v3048, 0.0
    %v3074 = vmax.f32 %v3049, 0.0
    %v3075 = vmax.f32 %v3050, 0.0
    %v3076 = vmax.f32 %v3051, 0.0
    %v3077 = vmax.f32 %v3052, 0.0
    %v3078 = vmax.f32 %v3053, 0.0
    %v3079 = vmax.f32 %v3054, 0.0
    %v3080 = vmax.f32 %v3055, 0.0
    %v3081 = vld [vmem:[#allocation5] sm:$0xf]
    %v3082 = vld [vmem:[#allocation5 + $0x4] sm:$0xf]
    %v3083 = vld [vmem:[#allocation5 + $0x8] sm:$0xf]
    %v3084 = vld [vmem:[#allocation5 + $0xc] sm:$0xf]
    %v3085 = vld [vmem:[#allocation5 + $0x10] sm:$0xf]
    %v3086 = vld [vmem:[#allocation5 + $0x14] sm:$0xf]
    %v3087 = vld [vmem:[#allocation5 + $0x18] sm:$0xf]
    %v3088 = vld [vmem:[#allocation5 + $0x1c] sm:$0xf]
    %v3089 = vld [vmem:[#allocation5 + $0x20] sm:$0xf]
    %v3090 = vld [vmem:[#allocation5 + $0x24] sm:$0xf]
    %v3091 = vld [vmem:[#allocation5 + $0x28] sm:$0xf]
    %v3092 = vld [vmem:[#allocation5 + $0x2c] sm:$0xf]
    %v3093 = vld [vmem:[#allocation5 + $0x30] sm:$0xf]
    %v3094 = vld [vmem:[#allocation5 + $0x34] sm:$0xf]
    %v3095 = vld [vmem:[#allocation5 + $0x38] sm:$0xf]
    %v3096 = vld [vmem:[#allocation5 + $0x3c] sm:$0xf]
    %v3097 = vpack.c.bf16 %v2454, %v2453
    %v3098 = vpack.c.bf16 %v2456, %v2455
    %v3099 = vpack.c.bf16 %v2458, %v2457
    %v3100 = vpack.c.bf16 %v2460, %v2459
    %v3101 = vpack.c.bf16 %v2462, %v2461
    %v3102 = vpack.c.bf16 %v2464, %v2463
    %v3103 = vpack.c.bf16 %v2466, %v2465
    %v3104 = vpack.c.bf16 %v2468, %v2467
    %v3105 = vpack.c.bf16 %v2470, %v2469
    %v3106 = vpack.c.bf16 %v2472, %v2471
    %v3107 = vpack.c.bf16 %v2474, %v2473
    %v3108 = vpack.c.bf16 %v2476, %v2475
    %v3109 = vpack.c.bf16 %v2477, %v2477
    %v3110 = vperm.slane %v73, 5
    %v3111 = vmul.f32 %v3056, %v3110
    %v3112 = vmul.f32 %v3057, %v3110
    %v3113 = vmul.f32 %v3058, %v3110
    %v3114 = vmul.f32 %v3059, %v3110
    %v3115 = vmul.f32 %v3060, %v3110
    %v3116 = vmul.f32 %v3061, %v3110
    %v3117 = vmul.f32 %v3062, %v3110
    %v3118 = vmul.f32 %v3063, %v3110
    %v3119 = vmul.f32 %v3064, %v3110
    %v3120 = vmul.f32 %v3065, %v3110
    %v3121 = vmul.f32 %v3066, %v3110
    %v3122 = vmul.f32 %v3067, %v3110
    %v3123 = vmul.f32 %v3068, %v3110
    %v3124 = vmul.f32 %v3069, %v3110
    %v3125 = vmul.f32 %v3070, %v3110
    %v3126 = vmul.f32 %v3071, %v3110
    %v3127 = vmul.f32 %v3072, %v3110
    %v3128 = vmul.f32 %v3073, %v3110
    %v3129 = vmul.f32 %v3074, %v3110
    %v3130 = vmul.f32 %v3075, %v3110
    %v3131 = vmul.f32 %v3076, %v3110
    %v3132 = vmul.f32 %v3077, %v3110
    %v3133 = vmul.f32 %v3078, %v3110
    %v3134 = vmul.f32 %v3079, %v3110
    %v3135 = vmul.f32 %v3080, %v3110
    %3136 = vadd.xlane.f32.xlu0 %v3111
    %v3137 = vpop.xlane.xlu0 %3136
    %3138 = vadd.xlane.f32.xlu0 %v3112
    %v3139 = vpop.xlane.xlu0 %3138
    %3140 = vadd.xlane.f32.xlu0 %v3113
    %v3141 = vpop.xlane.xlu0 %3140
    %3142 = vadd.xlane.f32.xlu0 %v3114
    %v3143 = vpop.xlane.xlu0 %3142
    %3144 = vadd.xlane.f32.xlu0 %v3115
    %v3145 = vpop.xlane.xlu0 %3144
    %3146 = vadd.xlane.f32.xlu0 %v3116
    %v3147 = vpop.xlane.xlu0 %3146
    %3148 = vadd.xlane.f32.xlu0 %v3117
    %v3149 = vpop.xlane.xlu0 %3148
    %3150 = vadd.xlane.f32.xlu0 %v3118
    %v3151 = vpop.xlane.xlu0 %3150
    %3152 = vadd.xlane.f32.xlu0 %v3119
    %v3153 = vpop.xlane.xlu0 %3152
    %3154 = vadd.xlane.f32.xlu0 %v3120
    %v3155 = vpop.xlane.xlu0 %3154
    %3156 = vadd.xlane.f32.xlu0 %v3121
    %v3157 = vpop.xlane.xlu0 %3156
    %3158 = vadd.xlane.f32.xlu0 %v3122
    %v3159 = vpop.xlane.xlu0 %3158
    %3160 = vadd.xlane.f32.xlu0 %v3123
    %v3161 = vpop.xlane.xlu0 %3160
    %3162 = vadd.xlane.f32.xlu0 %v3124
    %v3163 = vpop.xlane.xlu0 %3162
    %3164 = vadd.xlane.f32.xlu0 %v3125
    %v3165 = vpop.xlane.xlu0 %3164
    %3166 = vadd.xlane.f32.xlu0 %v3126
    %v3167 = vpop.xlane.xlu0 %3166
    %3168 = vadd.xlane.f32.xlu0 %v3127
    %v3169 = vpop.xlane.xlu0 %3168
    %3170 = vadd.xlane.f32.xlu0 %v3128
    %v3171 = vpop.xlane.xlu0 %3170
    %3172 = vadd.xlane.f32.xlu0 %v3129
    %v3173 = vpop.xlane.xlu0 %3172
    %3174 = vadd.xlane.f32.xlu0 %v3130
    %v3175 = vpop.xlane.xlu0 %3174
    %3176 = vadd.xlane.f32.xlu0 %v3131
    %v3177 = vpop.xlane.xlu0 %3176
    %3178 = vadd.xlane.f32.xlu0 %v3132
    %v3179 = vpop.xlane.xlu0 %3178
    %3180 = vadd.xlane.f32.xlu0 %v3133
    %v3181 = vpop.xlane.xlu0 %3180
    %3182 = vadd.xlane.f32.xlu0 %v3134
    %v3183 = vpop.xlane.xlu0 %3182
    %3184 = vadd.xlane.f32.xlu0 %v3135
    %v3185 = vpop.xlane.xlu0 %3184
    %v3186 = vlaneseq
    %v3187 = vand.u32 %v3186, 127
    %vm3188 = vcmp.eq.s32.totalorder %v3187, 56
    %v3189 = vsel %vm3188, 1, 0
    %v3190 = vcvt.s32.f32 %v3189
    %v3191 = vperm.slane %v73, 4
    %v3208 = vunpack.c.l.b16 %v3081
    %v3209 = vunpack.c.l.b16 %v3082
    %v3210 = vunpack.c.l.b16 %v3083
    %v3211 = vunpack.c.l.b16 %v3084
    %v3212 = vunpack.c.l.b16 %v3085
    %v3213 = vunpack.c.l.b16 %v3086
    %v3214 = vunpack.c.l.b16 %v3087
    %v3215 = vunpack.c.l.b16 %v3088
    %v3216 = vunpack.c.l.b16 %v3089
    %v3217 = vunpack.c.l.b16 %v3090
    %v3218 = vunpack.c.l.b16 %v3091
    %v3219 = vunpack.c.l.b16 %v3092
    %v3220 = vunpack.c.l.b16 %v3093
    %v3221 = vunpack.c.l.b16 %v3094
    %v3222 = vunpack.c.l.b16 %v3095
    %v3223 = vunpack.c.l.b16 %v3096
    %v3224 = vpack.c.b16 %v3209, %v3208
    %v3225 = vpack.c.b16 %v3211, %v3210
    %v3226 = vpack.c.b16 %v3213, %v3212
    %v3227 = vpack.c.b16 %v3215, %v3214
    %v3228 = vpack.c.b16 %v3217, %v3216
    %v3229 = vpack.c.b16 %v3219, %v3218
    %v3230 = vpack.c.b16 %v3221, %v3220
    %v3231 = vpack.c.b16 %v3223, %v3222
    %3240 = vmatpush.bf16.msra.mxu0 %v3231
    %3241 = vmatpush.bf16.msra.mxu0 %v3230
    %3242 = vmatpush.bf16.msra.mxu0 %v3229
    %3243 = vmatpush.bf16.msra.mxu0 %v3228
    %3244 = vmatpush.bf16.msra.mxu0 %v3227
    %3245 = vmatpush.bf16.msra.mxu0 %v3226
    %3246 = vmatpush.bf16.msra.mxu0 %v3225
    %3247 = vmatpush.bf16.msra.mxu0 %v3224
    %3248 = vmatmul.bf16.gmra.mxu0 %v3097
    %v3249 = vpop.f32.mrf.mxu0
    %v3250 = vadd.f32 %v3191, %v3249
    %v3251 = vpop.f32.mrf.mxu0
    %v3252 = vadd.f32 %v3191, %v3251
    %3253 = vmatmul.bf16.gmra.mxu0 %v3098
    %v3254 = vpop.f32.mrf.mxu0
    %v3255 = vadd.f32 %v3191, %v3254
    %v3256 = vpop.f32.mrf.mxu0
    %v3257 = vadd.f32 %v3191, %v3256
    %3258 = vmatmul.bf16.gmra.mxu0 %v3099
    %v3259 = vpop.f32.mrf.mxu0
    %v3260 = vadd.f32 %v3191, %v3259
    %v3261 = vpop.f32.mrf.mxu0
    %v3262 = vadd.f32 %v3191, %v3261
    %3263 = vmatmul.bf16.gmra.mxu0 %v3100
    %v3264 = vpop.f32.mrf.mxu0
    %v3265 = vadd.f32 %v3191, %v3264
    %v3266 = vpop.f32.mrf.mxu0
    %v3267 = vadd.f32 %v3191, %v3266
    %3268 = vmatmul.bf16.gmra.mxu0 %v3101
    %v3269 = vpop.f32.mrf.mxu0
    %v3270 = vadd.f32 %v3191, %v3269
    %v3271 = vpop.f32.mrf.mxu0
    %v3272 = vadd.f32 %v3191, %v3271
    %3273 = vmatmul.bf16.gmra.mxu0 %v3102
    %v3274 = vpop.f32.mrf.mxu0
    %v3275 = vadd.f32 %v3191, %v3274
    %v3276 = vpop.f32.mrf.mxu0
    %v3277 = vadd.f32 %v3191, %v3276
    %3278 = vmatmul.bf16.gmra.mxu0 %v3103
    %v3279 = vpop.f32.mrf.mxu0
    %v3280 = vadd.f32 %v3191, %v3279
    %v3281 = vpop.f32.mrf.mxu0
    %v3282 = vadd.f32 %v3191, %v3281
    %3283 = vmatmul.bf16.gmra.mxu0 %v3104
    %v3284 = vpop.f32.mrf.mxu0
    %v3285 = vadd.f32 %v3191, %v3284
    %v3286 = vpop.f32.mrf.mxu0
    %v3287 = vadd.f32 %v3191, %v3286
    %3288 = vmatmul.bf16.gmra.mxu0 %v3105
    %v3289 = vpop.f32.mrf.mxu0
    %v3290 = vadd.f32 %v3191, %v3289
    %v3291 = vpop.f32.mrf.mxu0
    %v3292 = vadd.f32 %v3191, %v3291
    %3293 = vmatmul.bf16.gmra.mxu0 %v3106
    %v3294 = vpop.f32.mrf.mxu0
    %v3295 = vadd.f32 %v3191, %v3294
    %v3296 = vpop.f32.mrf.mxu0
    %v3297 = vadd.f32 %v3191, %v3296
    %3298 = vmatmul.bf16.gmra.mxu0 %v3107
    %v3299 = vpop.f32.mrf.mxu0
    %v3300 = vadd.f32 %v3191, %v3299
    %v3301 = vpop.f32.mrf.mxu0
    %v3302 = vadd.f32 %v3191, %v3301
    %3303 = vmatmul.bf16.gmra.mxu0 %v3108
    %v3304 = vpop.f32.mrf.mxu0
    %v3305 = vadd.f32 %v3191, %v3304
    %v3306 = vpop.f32.mrf.mxu0
    %v3307 = vadd.f32 %v3191, %v3306
    %3308 = vmatmul.bf16.gmra.mxu0 %v3109
    %v3309 = vpop.f32.mrf.mxu0
    %v3310 = vadd.f32 %v3191, %v3309
    %v3311 = vpop.f32.mrf.mxu0
    %3312 = vdwg.mxu0
    %v3313 = vmul.f32 %v3137, %v3190
    %v3314 = vmul.f32 %v3139, %v3190
    %v3315 = vmul.f32 %v3141, %v3190
    %v3316 = vmul.f32 %v3143, %v3190
    %v3317 = vmul.f32 %v3145, %v3190
    %v3318 = vmul.f32 %v3147, %v3190
    %v3319 = vmul.f32 %v3149, %v3190
    %v3320 = vmul.f32 %v3151, %v3190
    %v3321 = vmul.f32 %v3153, %v3190
    %v3322 = vmul.f32 %v3155, %v3190
    %v3323 = vmul.f32 %v3157, %v3190
    %v3324 = vmul.f32 %v3159, %v3190
    %v3325 = vmul.f32 %v3161, %v3190
    %v3326 = vmul.f32 %v3163, %v3190
    %v3327 = vmul.f32 %v3165, %v3190
    %v3328 = vmul.f32 %v3167, %v3190
    %v3329 = vmul.f32 %v3169, %v3190
    %v3330 = vmul.f32 %v3171, %v3190
    %v3331 = vmul.f32 %v3173, %v3190
    %v3332 = vmul.f32 %v3175, %v3190
    %v3333 = vmul.f32 %v3177, %v3190
    %v3334 = vmul.f32 %v3179, %v3190
    %v3335 = vmul.f32 %v3181, %v3190
    %v3336 = vmul.f32 %v3183, %v3190
    %v3337 = vmul.f32 %v3185, %v3190
    %v3338 = vadd.f32 %v3250, %v3313
    %v3339 = vadd.f32 %v3252, %v3314
    %v3340 = vadd.f32 %v3255, %v3315
    %v3341 = vadd.f32 %v3257, %v3316
    %v3342 = vadd.f32 %v3260, %v3317
    %v3343 = vadd.f32 %v3262, %v3318
    %v3344 = vadd.f32 %v3265, %v3319
    %v3345 = vadd.f32 %v3267, %v3320
    %v3346 = vadd.f32 %v3270, %v3321
    %v3347 = vadd.f32 %v3272, %v3322
    %v3348 = vadd.f32 %v3275, %v3323
    %v3349 = vadd.f32 %v3277, %v3324
    %v3350 = vadd.f32 %v3280, %v3325
    %v3351 = vadd.f32 %v3282, %v3326
    %v3352 = vadd.f32 %v3285, %v3327
    %v3353 = vadd.f32 %v3287, %v3328
    %v3354 = vadd.f32 %v3290, %v3329
    %v3355 = vadd.f32 %v3292, %v3330
    %v3356 = vadd.f32 %v3295, %v3331
    %v3357 = vadd.f32 %v3297, %v3332
    %v3358 = vadd.f32 %v3300, %v3333
    %v3359 = vadd.f32 %v3302, %v3334
    %v3360 = vadd.f32 %v3305, %v3335
    %v3361 = vadd.f32 %v3307, %v3336
    %v3362 = vadd.f32 %v3310, %v3337
    %v3363 = vpack.c.bf16 %v3338, %v3338
    %v3364 = vpack.c.bf16 %v3339, %v3339
    %v3365 = vpack.c.bf16 %v3340, %v3340
    %v3366 = vpack.c.bf16 %v3341, %v3341
    %v3367 = vpack.c.bf16 %v3342, %v3342
    %v3368 = vpack.c.bf16 %v3343, %v3343
    %v3369 = vpack.c.bf16 %v3344, %v3344
    %v3370 = vpack.c.bf16 %v3345, %v3345
    %v3371 = vpack.c.bf16 %v3346, %v3346
    %v3372 = vpack.c.bf16 %v3347, %v3347
    %v3373 = vpack.c.bf16 %v3348, %v3348
    %v3374 = vpack.c.bf16 %v3349, %v3349
    %v3375 = vpack.c.bf16 %v3350, %v3350
    %v3376 = vpack.c.bf16 %v3351, %v3351
    %v3377 = vpack.c.bf16 %v3352, %v3352
    %v3378 = vpack.c.bf16 %v3353, %v3353
    %v3379 = vpack.c.bf16 %v3354, %v3354
    %v3380 = vpack.c.bf16 %v3355, %v3355
    %v3381 = vpack.c.bf16 %v3356, %v3356
    %v3382 = vpack.c.bf16 %v3357, %v3357
    %v3383 = vpack.c.bf16 %v3358, %v3358
    %v3384 = vpack.c.bf16 %v3359, %v3359
    %v3385 = vpack.c.bf16 %v3360, %v3360
    %v3386 = vpack.c.bf16 %v3361, %v3361
    %v3387 = vpack.c.bf16 %v3362, %v3362
    %3388 = vst [vmem:[#allocation8] sm:$0xf] %v3363
    %3389 = vst [vmem:[#allocation8 + $0x4] sm:$0xf] %v3364
    %3390 = vst [vmem:[#allocation8 + $0x8] sm:$0xf] %v3365
    %3391 = vst [vmem:[#allocation8 + $0xc] sm:$0xf] %v3366
    %3392 = vst [vmem:[#allocation8 + $0x10] sm:$0xf] %v3367
    %3393 = vst [vmem:[#allocation8 + $0x14] sm:$0xf] %v3368
    %3394 = vst [vmem:[#allocation8 + $0x18] sm:$0xf] %v3369
    %3395 = vst [vmem:[#allocation8 + $0x1c] sm:$0xf] %v3370
    %3396 = vst [vmem:[#allocation8 + $0x20] sm:$0xf] %v3371
    %3397 = vst [vmem:[#allocation8 + $0x24] sm:$0xf] %v3372
    %3398 = vst [vmem:[#allocation8 + $0x28] sm:$0xf] %v3373
    %3399 = vst [vmem:[#allocation8 + $0x2c] sm:$0xf] %v3374
    %3400 = vst [vmem:[#allocation8 + $0x30] sm:$0xf] %v3375
    %3401 = vst [vmem:[#allocation8 + $0x34] sm:$0xf] %v3376
    %3402 = vst [vmem:[#allocation8 + $0x38] sm:$0xf] %v3377
    %3403 = vst [vmem:[#allocation8 + $0x3c] sm:$0xf] %v3378
    %3404 = vst [vmem:[#allocation8 + $0x40] sm:$0xf] %v3379
    %3405 = vst [vmem:[#allocation8 + $0x44] sm:$0xf] %v3380
    %3406 = vst [vmem:[#allocation8 + $0x48] sm:$0xf] %v3381
    %3407 = vst [vmem:[#allocation8 + $0x4c] sm:$0xf] %v3382
    %3408 = vst [vmem:[#allocation8 + $0x50] sm:$0xf] %v3383
    %3409 = vst [vmem:[#allocation8 + $0x54] sm:$0xf] %v3384
    %3410 = vst [vmem:[#allocation8 + $0x58] sm:$0xf] %v3385
    %3411 = vst [vmem:[#allocation8 + $0x5c] sm:$0xf] %v3386
    %3412 = vst [vmem:[#allocation8 + $0x60] sm:$0xf] %v3387
    // Predicated region
    $region38: #{tpu_custom_call.1} parent=1 // pred_check
      _
    $region39: #{tpu_custom_call.1} parent=1 // pred_check_branch
      %3414 = sbr.rel (0) target = $region41
    $region40: #{tpu_custom_call.1} parent=1 // pred_region
      %3416 = vsyncadd [#allocation4], 0
      %s3417 = sshll.u32 [#allocation8], 4
      %s3418 = int_to_ptr.vmem [resolvable:$true] %s3417
      %s3419 = sshll.u32 %s6, 4
      %s3420 = int_to_ptr.hbm [resolvable:$true] %s3419
      %3425 = dma.vmem_to_hbm [thread:$0]  %s3418, 1600, %s3420, [#allocation4], 64, 64, 4
    $region41: #{tpu_custom_call.1} parent=1 // pred_fallthru
      _
    // Predicated region
    $region42: #{tpu_custom_call.1} parent=1 // pred_check
      _
    $region43: #{tpu_custom_call.1} parent=1 // pred_check_branch
      %3427 = sbr.rel (0) target = $region45
    $region44: #{tpu_custom_call.1} parent=1 // pred_region
      %3429 = dma.done [#allocation4], 1600
    $region45: #{tpu_custom_call.1} parent=1 // pred_fallthru
      _
    %3430 = vsyncpa [#allocation3], 1
    %3431 = vsyncpa [#allocation6], 1
    %3432 = vsyncpa [#allocation4], 1

</llo_original>
